<compile_context>
chip_gen: v7x
topology: tpu7x:2x2x1
jax: 0.10.0
libtpu: 0.0.40
codegen_flags: <defaults>
</compile_context>

<pallas_src>
import functools

import jax
import jax.numpy as jnp
from jax import lax
from jax.experimental import pallas as pl
from jax.experimental.pallas import tpu as pltpu


# ----------------------------------------------------------------------------
# helpers
# ----------------------------------------------------------------------------

def _round_up(v, m):
    return ((v + m - 1) // m) * m


def _identity(v):
    return v


def _relu(v):
    return jnp.maximum(v, 0.0)


_PAR1 = pltpu.CompilerParams(dimension_semantics=("parallel",))
_PAR2 = pltpu.CompilerParams(dimension_semantics=("parallel", "parallel"))


# ----------------------------------------------------------------------------
# generic row-tiled linear (optionally fused accumulator add)
# ----------------------------------------------------------------------------

def _linear_kernel(act, x_ref, w_ref, b_ref, o_ref):
    y = jnp.dot(x_ref[...], w_ref[...], preferred_element_type=jnp.float32)
    o_ref[...] = act(y + b_ref[...]).astype(o_ref.dtype)


def _linear_add_kernel(act, x_ref, w_ref, b_ref, a_ref, o_ref):
    y = jnp.dot(x_ref[...], w_ref[...], preferred_element_type=jnp.float32)
    o_ref[...] = (act(y + b_ref[...]) + a_ref[...]).astype(o_ref.dtype)


def linear_pallas(x, w, b, act=_identity, add=None, tm=1024):
    """act(x @ w + b) [+ add], row-tiled; bf16 MXU operands, f32 accumulate."""
    lead = x.shape[:-1]
    K = x.shape[-1]
    N = w.shape[-1]
    x2 = x.reshape(-1, K).astype(jnp.bfloat16)
    M = x2.shape[0]
    TM = min(tm, _round_up(M, 8))          # <=1024 rows: fits v7x 64MiB VMEM
    grid = (pl.cdiv(M, TM),)

    in_specs = [pl.BlockSpec((TM, K), lambda i: (i, 0)),
                pl.BlockSpec((K, N), lambda i: (0, 0)),
                pl.BlockSpec((1, N), lambda i: (0, 0))]
    args = [x2, w.astype(jnp.bfloat16), b.reshape(1, N).astype(jnp.float32)]
    if add is None:
        kernel = functools.partial(_linear_kernel, act)
    else:
        kernel = functools.partial(_linear_add_kernel, act)
        in_specs.append(pl.BlockSpec((TM, N), lambda i: (i, 0)))
        args.append(add.reshape(-1, N).astype(jnp.float32))

    out = pl.pallas_call(
        kernel,
        grid=grid,
        out_shape=jax.ShapeDtypeStruct((M, N), jnp.float32),
        in_specs=in_specs,
        out_specs=pl.BlockSpec((TM, N), lambda i: (i, 0)),
        compiler_params=_PAR1,
    )(*args)
    return out.reshape(*lead, N)


# ----------------------------------------------------------------------------
# adjacency: softmax(relu(E @ E^T))
# ----------------------------------------------------------------------------

def _adj_kernel(e_ref, o_ref):
    e = e_ref[...]
    logits = lax.dot_general(e, e, dimension_numbers=(((1,), (1,)), ((), ())),
                             preferred_element_type=jnp.float32)
    logits = jnp.maximum(logits, 0.0)
    m = jnp.max(logits, axis=-1, keepdims=True)
    p = jnp.exp(logits - m)
    o_ref[...] = p * pl.reciprocal(jnp.sum(p, axis=-1, keepdims=True),
                                   approx=True)


def adjacency_pallas(node_emb):
    n, h = node_emb.shape
    return pl.pallas_call(
        _adj_kernel,
        out_shape=jax.ShapeDtypeStruct((n, n), jnp.float32),
        in_specs=[pl.BlockSpec((n, h), lambda: (0, 0))],
        out_specs=pl.BlockSpec((n, n), lambda: (0, 0)),
    )(node_emb.astype(jnp.bfloat16))


# ----------------------------------------------------------------------------
# gated (dilated, optionally causal) temporal conv
# ----------------------------------------------------------------------------

def _gated_tconv_kernel(K, dilation, t_out, x_ref, wa_ref, wb_ref,
                        ba_ref, bb_ref, o_ref):
    # x_ref: (t_in, TN, c_in) bf16. Taps sliced in VMEM and concatenated along
    # features -> one wide-contraction (K*c_in) dot per gate half; two dots so
    # the tanh/sigmoid halves never lane-split a 2*c_out vector.
    tn = x_ref.shape[1]
    taps = [x_ref[pl.ds(k * dilation, t_out), :, :] for k in range(K)]
    xt = jnp.concatenate(taps, axis=-1).reshape(t_out * tn, -1)
    pa = jnp.dot(xt, wa_ref[...], preferred_element_type=jnp.float32) + ba_ref[...]
    pb = jnp.dot(xt, wb_ref[...], preferred_element_type=jnp.float32) + bb_ref[...]
    y = jnp.tanh(pa) * jax.nn.sigmoid(pb)
    o_ref[...] = y.reshape(t_out, tn, o_ref.shape[-1])


def gated_temp_conv(x, w, b, dilation, causal_pad, tn_max=256):
    """x: (b, t, n, c_in); w: (K, c_in, 2*c_out); b: (2*c_out,)."""
    K, c_in, c2 = w.shape
    c_out = c2 // 2
    bsz, t, n, _ = x.shape
    if causal_pad:
        pad = dilation * (K - 1)
        x = jnp.pad(x, ((0, 0), (pad, 0), (0, 0), (0, 0)))
        t_out = t
    else:
        t_out = t - dilation * (K - 1)
    t_in = x.shape[1]

    w2 = w.reshape(K * c_in, c2).astype(jnp.bfloat16)      # fold kernel taps
    wa, wb = w2[:, :c_out], w2[:, c_out:]
    ba = b[:c_out].reshape(1, c_out).astype(jnp.float32)
    bb = b[c_out:].reshape(1, c_out).astype(jnp.float32)

    TN = min(_round_up(n, 8), tn_max)
    grid = (bsz, pl.cdiv(n, TN))
    return pl.pallas_call(
        functools.partial(_gated_tconv_kernel, K, dilation, t_out),
        grid=grid,
        out_shape=jax.ShapeDtypeStruct((bsz, t_out, n, c_out), jnp.float32),
        in_specs=[pl.BlockSpec((None, t_in, TN, c_in), lambda i, j: (i, 0, j, 0)),
                  pl.BlockSpec((K * c_in, c_out), lambda i, j: (0, 0)),
                  pl.BlockSpec((K * c_in, c_out), lambda i, j: (0, 0)),
                  pl.BlockSpec((1, c_out), lambda i, j: (0, 0)),
                  pl.BlockSpec((1, c_out), lambda i, j: (0, 0))],
        out_specs=pl.BlockSpec((None, t_out, TN, c_out), lambda i, j: (i, 0, j, 0)),
        compiler_params=_PAR2,
    )(x.astype(jnp.bfloat16), wa, wb, ba, bb)


# ----------------------------------------------------------------------------
# fused ConditionalBlock
# ----------------------------------------------------------------------------

def _cond_block_kernel(x_ref, u_ref, w_in_ref, w_cond_ref, w_oi_ref, w_oc_ref,
                       w_skip_ref, b_ref, o_ref):
    # TODO(synk): tsl.ConditionalBlock internals assumed (affinities on x and
    # exog fused by relu, output affinities, skip connection; dropout=0).
    x = x_ref[...]
    u = u_ref[...]
    bias = b_ref[...]                                       # (4, H) f32
    x_aff = jnp.dot(x, w_in_ref[...], preferred_element_type=jnp.float32) + bias[0:1]
    u_aff = jnp.dot(u, w_cond_ref[...], preferred_element_type=jnp.float32) + bias[1:2]
    h = jnp.maximum(x_aff + u_aff, 0.0)
    out = (jnp.dot(h.astype(jnp.bfloat16), w_oi_ref[...],
                   preferred_element_type=jnp.float32)
           + jnp.dot(u_aff.astype(jnp.bfloat16), w_oc_ref[...],
                     preferred_element_type=jnp.float32)
           + bias[2:3])
    out = jnp.maximum(out, 0.0)
    skip = jnp.dot(x, w_skip_ref[...], preferred_element_type=jnp.float32) + bias[3:4]
    o_ref[...] = out + skip


def conditional_block(p, x, u, tm=1024):
    w_in, b_in = p['input_affinity']
    w_cond, b_cond = p['condition_affinity']
    w_oi, b_oi = p['out_inputs_affinity']
    w_oc, b_oc = p['out_cond_affinity']
    w_skip, b_skip = p['skip_conn']
    H = w_in.shape[-1]
    bias = jnp.stack([b_in, b_cond, b_oi + b_oc, b_skip], axis=0).astype(jnp.float32)

    lead = x.shape[:-1]
    kx, ku = x.shape[-1], u.shape[-1]
    x2 = x.reshape(-1, kx).astype(jnp.bfloat16)
    u2 = u.reshape(-1, ku).astype(jnp.bfloat16)
    M = x2.shape[0]
    TM = min(tm, _round_up(M, 8))
    out = pl.pallas_call(
        _cond_block_kernel,
        grid=(pl.cdiv(M, TM),),
        out_shape=jax.ShapeDtypeStruct((M, H), jnp.float32),
        in_specs=[pl.BlockSpec((TM, kx), lambda i: (i, 0)),
                  pl.BlockSpec((TM, ku), lambda i: (i, 0)),
                  pl.BlockSpec((kx, H), lambda i: (0, 0)),
                  pl.BlockSpec((ku, H), lambda i: (0, 0)),
                  pl.BlockSpec((H, H), lambda i: (0, 0)),
                  pl.BlockSpec((H, H), lambda i: (0, 0)),
                  pl.BlockSpec((kx, H), lambda i: (0, 0)),
                  pl.BlockSpec((4, H), lambda i: (0, 0))],
        out_specs=pl.BlockSpec((TM, H), lambda i: (i, 0)),
        compiler_params=_PAR1,
    )(x2, u2,
      w_in.astype(jnp.bfloat16), w_cond.astype(jnp.bfloat16),
      w_oi.astype(jnp.bfloat16), w_oc.astype(jnp.bfloat16),
      w_skip.astype(jnp.bfloat16), bias)
    return out.reshape(*lead, H)


# ----------------------------------------------------------------------------
# fused DenseFiLMConv (+ learnable weights + residual add)
# ----------------------------------------------------------------------------

def _film_conv_kernel(x_ref, res_ref, adj_ref, w_h_ref, w_g_ref, w_b_ref,
                      nh_ref, ng_ref, nb_ref, o_ref):
    # TODO(synk): DenseFiLMConv internals assumed:
    #   h = xW_h ; (gamma,beta) = xW_{g,b} ; out = ELU(gamma*(A@h)+beta) + res
    # (learnable node features + biases pre-folded into nh/ng/nb offsets).
    x = x_ref[...]                                          # (n, H) bf16
    h = jnp.dot(x, w_h_ref[...], preferred_element_type=jnp.float32) + nh_ref[...]
    gamma = jnp.dot(x, w_g_ref[...], preferred_element_type=jnp.float32) + ng_ref[...]
    beta = jnp.dot(x, w_b_ref[...], preferred_element_type=jnp.float32) + nb_ref[...]
    agg = jnp.dot(adj_ref[...], h.astype(jnp.bfloat16),
                  preferred_element_type=jnp.float32)
    y = gamma * agg + beta
    y = jnp.where(y > 0, y, jnp.exp(jnp.minimum(y, 0.0)) - 1.0)   # ELU
    o_ref[...] = y + res_ref[...]


def dense_film_conv(p, x, res, lw, adj):
    """x, res: (b, t, n, H); lw: (n, L); adj: (n, n)."""
    w_lin, b_lin = p['lin']                 # (H+L, H), (H,)
    w_film, b_film = p['film']              # (H+L, 2H), (2H,)
    bsz, t_, n, H = x.shape

    w_g, w_b = w_film[:, :H], w_film[:, H:]
    b_g, b_b = b_film[:H], b_film[H:]
    # per-node offsets from the learnable features (+ biases): one tiny matmul
    node_w = jnp.concatenate([w_lin[H:], w_g[H:], w_b[H:]], axis=1)   # (L, 3H)
    node_b = jnp.concatenate([b_lin, b_g, b_b], axis=0)               # (3H,)
    node_off = linear_pallas(lw, node_w, node_b)                      # (n, 3H)
    nh, ng, nb = node_off[:, :H], node_off[:, H:2 * H], node_off[:, 2 * H:]

    bt = bsz * t_
    x3 = x.reshape(bt, n, H).astype(jnp.bfloat16)
    res3 = res.reshape(bt, n, H).astype(jnp.float32)
    out = pl.pallas_call(
        _film_conv_kernel,
        grid=(bt,),
        out_shape=jax.ShapeDtypeStruct((bt, n, H), jnp.float32),
        in_specs=[pl.BlockSpec((None, n, H), lambda i: (i, 0, 0)),
                  pl.BlockSpec((None, n, H), lambda i: (i, 0, 0)),
                  pl.BlockSpec((n, n), lambda i: (0, 0)),
                  pl.BlockSpec((H, H), lambda i: (0, 0)),
                  pl.BlockSpec((H, H), lambda i: (0, 0)),
                  pl.BlockSpec((H, H), lambda i: (0, 0)),
                  pl.BlockSpec((n, H), lambda i: (0, 0)),
                  pl.BlockSpec((n, H), lambda i: (0, 0)),
                  pl.BlockSpec((n, H), lambda i: (0, 0))],
        out_specs=pl.BlockSpec((None, n, H), lambda i: (i, 0, 0)),
        compiler_params=_PAR1,
    )(x3, res3, adj.astype(jnp.bfloat16),
      w_lin[:H].astype(jnp.bfloat16), w_g[:H].astype(jnp.bfloat16),
      w_b[:H].astype(jnp.bfloat16), nh, ng, nb)
    return out.reshape(bsz, t_, n, H)


# ----------------------------------------------------------------------------
# fused MLP decoder (4 relu layers + readout, weights resident across grid)
# ----------------------------------------------------------------------------

def _decoder_kernel(x_ref, w0_ref, w1_ref, w2_ref, w3_ref, wr_ref,
                    bh_ref, br_ref, o_ref):
    bh = bh_ref[...]
    h = jnp.dot(x_ref[...], w0_ref[...], preferred_element_type=jnp.float32) + bh[0:1]
    h = jnp.maximum(h, 0.0)
    for w_ref, k in ((w1_ref, 1), (w2_ref, 2), (w3_ref, 3)):
        h = jnp.dot(h.astype(jnp.bfloat16), w_ref[...],
                    preferred_element_type=jnp.float32) + bh[k:k + 1]
        h = jnp.maximum(h, 0.0)
    o_ref[...] = jnp.dot(h.astype(jnp.bfloat16), wr_ref[...],
                         preferred_element_type=jnp.float32) + br_ref[...]


def mlp_decoder(p, x, receptive_field, horizon, out_features, tm=1024):
    # TODO(synk): tsl.MLPDecoder internals assumed (flatten last rf steps,
    # n_layers relu MLP, linear readout to horizon*out_features).
    bsz, t_, n, f = x.shape
    h = x[:, -receptive_field:]
    h = jnp.transpose(h, (0, 2, 1, 3)).reshape(bsz * n, receptive_field * f)
    (w0, b0), (w1, b1), (w2, b2), (w3, b3) = p['mlp']
    wr, br = p['readout']
    Hh = w0.shape[-1]
    Nout = wr.shape[-1]
    bh = jnp.stack([b0, b1, b2, b3], axis=0).astype(jnp.float32)

    M = bsz * n
    K = receptive_field * f
    TM = min(tm, _round_up(M, 8))
    out = pl.pallas_call(
        _decoder_kernel,
        grid=(pl.cdiv(M, TM),),
        out_shape=jax.ShapeDtypeStruct((M, Nout), jnp.float32),
        in_specs=[pl.BlockSpec((TM, K), lambda i: (i, 0)),
                  pl.BlockSpec((K, Hh), lambda i: (0, 0)),
                  pl.BlockSpec((Hh, Hh), lambda i: (0, 0)),
                  pl.BlockSpec((Hh, Hh), lambda i: (0, 0)),
                  pl.BlockSpec((Hh, Hh), lambda i: (0, 0)),
                  pl.BlockSpec((Hh, Nout), lambda i: (0, 0)),
                  pl.BlockSpec((4, Hh), lambda i: (0, 0)),
                  pl.BlockSpec((1, Nout), lambda i: (0, 0))],
        out_specs=pl.BlockSpec((TM, Nout), lambda i: (i, 0)),
        compiler_params=_PAR1,
    )(h.astype(jnp.bfloat16),
      w0.astype(jnp.bfloat16), w1.astype(jnp.bfloat16),
      w2.astype(jnp.bfloat16), w3.astype(jnp.bfloat16),
      wr.astype(jnp.bfloat16), bh, br.reshape(1, Nout).astype(jnp.float32))
    out = out.reshape(bsz, n, horizon, out_features)
    return jnp.transpose(out, (0, 2, 1, 3))


# ----------------------------------------------------------------------------
# forward pass
# ----------------------------------------------------------------------------

def film_forward(params, static, x, exog, radiation):
    bsz, t, n, f = x.shape
    x_orig = x

    xr = jnp.concatenate([x, radiation], axis=-1)                 # (b,t,n,f+1)

    lsm = params['lsm'].T.squeeze()                               # (n,)
    lsm = jnp.broadcast_to(lsm[None, None, :, None], (bsz, t, n, 1))
    exog_s = jnp.concatenate([jnp.sin(exog), jnp.cos(exog)], axis=-1)
    exog_s = jnp.broadcast_to(exog_s[:, :, None, :],
                              (bsz, t, n, exog_s.shape[-1]))
    lat_lon = jnp.broadcast_to(params['lat_lon'][None, None], (bsz, t, n, 4))
    pos_emb = params['node_emb']                                  # (n, hidden)
    pe = jnp.broadcast_to(pos_emb[None, None], (bsz, t, n, pos_emb.shape[-1]))
    full_exog = jnp.concatenate([exog_s, lat_lon, pe, lsm], axis=-1)

    h = conditional_block(params['cond'], xr, full_exog)          # (b,t,n,H)
    adj = adjacency_pallas(pos_emb)                               # (n, n)

    # skip accumulator — dead in the reference forward, kept for fidelity
    out = None
    for layer, (dilation, causal_pad) in enumerate(static['layer_cfg']):
        lp = params['layers'][layer]
        res = h
        h = gated_temp_conv(h, lp['tconv_w'], lp['tconv_b'],
                            dilation, causal_pad)
        t_cur = h.shape[1]
        skip_add = None if out is None else out[:, -t_cur:]
        out = linear_pallas(h, *lp['skip'], add=skip_add)
        h = dense_film_conv(lp['space'], h, res[:, -t_cur:],
                            lp['learnable'], adj)

    res = mlp_decoder(params['readout'], h, static['readout_rf'],
                      static['horizon'], static['out_features'])
    return res + x_orig[:, -1:]


# ----------------------------------------------------------------------------
# deterministic parameter construction
# ----------------------------------------------------------------------------

def init_linear(key, fan_in, fan_out):
    kw, kb = jax.random.split(key)
    s = 1.0 / jnp.sqrt(jnp.float32(fan_in))
    W = jax.random.uniform(kw, (fan_in, fan_out), jnp.float32, -s, s)
    b = jax.random.uniform(kb, (fan_out,), jnp.float32, -s, s)
    return W, b


def build_layer_config(window, horizon, n_layers, kernel_size=3, dil_base=2):
    cfg = []
    receptive_field = 1
    for layer in range(n_layers):
        d = dil_base ** (layer % 2)
        pad = (window - receptive_field) <= (horizon + 1)
        cfg.append((d, pad))
        if not pad:
            receptive_field += d * (kernel_size - 1)
    readout_rf = window - 1 - (receptive_field - 1)
    return cfg, receptive_field, readout_rf


def build_params(key, *, n_nodes, input_size, hidden, out_features, horizon,
                 n_layers, learnable_size, kernel_size, window):
    keys = iter(jax.random.split(key, 64))
    params = {}

    lats = jnp.linspace(-1.5, 1.5, n_nodes)
    lons = jnp.linspace(0.0, 6.0, n_nodes)
    stacked = jnp.stack([lats, lons], axis=-1)
    params['lat_lon'] = jnp.concatenate([jnp.sin(stacked), jnp.cos(stacked)],
                                        axis=-1)                  # (n, 4)
    params['lsm'] = jax.random.uniform(next(keys), (n_nodes, 1), jnp.float32)
    params['node_emb'] = 0.1 * jax.random.normal(next(keys), (n_nodes, hidden),
                                                 jnp.float32)

    cond_in = input_size + 1
    cond_exog = 9 + hidden
    params['cond'] = {
        'input_affinity': init_linear(next(keys), cond_in, hidden),
        'condition_affinity': init_linear(next(keys), cond_exog, hidden),
        'out_inputs_affinity': init_linear(next(keys), hidden, hidden),
        'out_cond_affinity': init_linear(next(keys), hidden, hidden),
        'skip_conn': init_linear(next(keys), cond_in, hidden),
    }

    layer_cfg, receptive_field, readout_rf = build_layer_config(
        window, horizon, n_layers, kernel_size)

    params['layers'] = []
    for _ in range(n_layers):
        s = 1.0 / jnp.sqrt(jnp.float32(hidden * kernel_size))
        lp = {
            'tconv_w': jax.random.uniform(next(keys),
                                          (kernel_size, hidden, 2 * hidden),
                                          jnp.float32, -s, s),
            'tconv_b': jax.random.uniform(next(keys), (2 * hidden,),
                                          jnp.float32, -s, s),
            'skip': init_linear(next(keys), hidden, hidden),
            'learnable': 0.1 * jax.random.normal(
                next(keys), (n_nodes, learnable_size), jnp.float32),
            'space': {
                'lin': init_linear(next(keys), hidden + learnable_size, hidden),
                'film': init_linear(next(keys), hidden + learnable_size,
                                    2 * hidden),
            },
        }
        params['layers'].append(lp)

    mlp = [init_linear(next(keys), readout_rf * hidden, 2 * hidden)]
    for _ in range(3):
        mlp.append(init_linear(next(keys), 2 * hidden, 2 * hidden))
    params['readout'] = {
        'mlp': mlp,
        'readout': init_linear(next(keys), 2 * hidden, out_features * horizon),
    }
    # NOTE: self.film Linear(input_size, out_features*2) is never used in the
    # reference forward(); omitted on purpose.

    static = {'layer_cfg': layer_cfg, 'readout_rf': readout_rf,
              'horizon': horizon, 'out_features': out_features}
    return params, static


# ----------------------------------------------------------------------------

if __name__ == "__main__":
    # small synthetic configuration (module defaults are much larger)
    B, WINDOW, N_NODES = 2, 8, 16
    INPUT_SIZE = 6
    HIDDEN = 32
    OUT_FEATURES = 6
    HORIZON = 2
    N_LAYERS = 2
    LEARNABLE = 8
    KERNEL = 3
    EXOG_RAW = 2          # sin/cos -> 4, +4 latlon +1 lsm = 9 (module exog_size)

    key = jax.random.PRNGKey(0)
    kp, kx, ke, kr = jax.random.split(key, 4)

    params, static = build_params(
        kp, n_nodes=N_NODES, input_size=INPUT_SIZE, hidden=HIDDEN,
        out_features=OUT_FEATURES, horizon=HORIZON, n_layers=N_LAYERS,
        learnable_size=LEARNABLE, kernel_size=KERNEL, window=WINDOW)

    x = jax.random.normal(kx, (B, WINDOW, N_NODES, INPUT_SIZE), jnp.float32)
    exog = jax.random.uniform(ke, (B, WINDOW, EXOG_RAW), jnp.float32,
                              0.0, 2.0 * 3.14159)
    radiation = jax.random.normal(kr, (B, WINDOW, N_NODES, 1), jnp.float32)

    fwd = jax.jit(lambda p, a, b_, c: film_forward(p, static, a, b_, c))
    out = jax.block_until_ready(fwd(params, x, exog, radiation))

    assert out.shape == (B, HORIZON, N_NODES, OUT_FEATURES), out.shape
    assert jnp.all(jnp.isfinite(out))
    print("KERNEL_OK")
</pallas_src>

<mosaic_0001>
module attributes {stable_mosaic.version = 11 : i64} {
  func.func @_cond_block_kernel(%arg0: i32, %arg1: memref<256x7xbf16, #tpu.memory_space<vmem>>, %arg2: memref<256x41xbf16, #tpu.memory_space<vmem>>, %arg3: memref<7x32xbf16, #tpu.memory_space<vmem>>, %arg4: memref<41x32xbf16, #tpu.memory_space<vmem>>, %arg5: memref<32x32xbf16, #tpu.memory_space<vmem>>, %arg6: memref<32x32xbf16, #tpu.memory_space<vmem>>, %arg7: memref<7x32xbf16, #tpu.memory_space<vmem>>, %arg8: memref<4x32xf32, #tpu.memory_space<vmem>>, %arg9: memref<256x32xf32, #tpu.memory_space<vmem>>) attributes {dimension_semantics = [#tpu.dimension_semantics<parallel>], iteration_bounds = array<i64: 1>, scalar_prefetch = 0 : i64, scratch_operands = 0 : i64, tpu.core_type = #tpu.core_type<tc>, window_params = [{transform_indices = @transform_0, window_bounds = array<i64: 256, 7>}, {transform_indices = @transform_1, window_bounds = array<i64: 256, 41>}, {pipeline_mode = #tpu.pipeline_mode<synchronous>, transform_indices = @transform_2, window_bounds = array<i64: 7, 32>}, {pipeline_mode = #tpu.pipeline_mode<synchronous>, transform_indices = @transform_3, window_bounds = array<i64: 41, 32>}, {pipeline_mode = #tpu.pipeline_mode<synchronous>, transform_indices = @transform_4, window_bounds = array<i64: 32, 32>}, {pipeline_mode = #tpu.pipeline_mode<synchronous>, transform_indices = @transform_5, window_bounds = array<i64: 32, 32>}, {pipeline_mode = #tpu.pipeline_mode<synchronous>, transform_indices = @transform_6, window_bounds = array<i64: 7, 32>}, {pipeline_mode = #tpu.pipeline_mode<synchronous>, transform_indices = @transform_7, window_bounds = array<i64: 4, 32>}, {transform_indices = @transform_8, window_bounds = array<i64: 256, 32>}]} {
    %c0 = arith.constant 0 : index
    %c0_0 = arith.constant 0 : index
    %0 = vector.load %arg1[%c0, %c0_0] : memref<256x7xbf16, #tpu.memory_space<vmem>>, vector<256x7xbf16>
    %c0_1 = arith.constant 0 : index
    %c0_2 = arith.constant 0 : index
    %1 = vector.load %arg2[%c0_1, %c0_2] : memref<256x41xbf16, #tpu.memory_space<vmem>>, vector<256x41xbf16>
    %c0_3 = arith.constant 0 : index
    %c0_4 = arith.constant 0 : index
    %2 = vector.load %arg8[%c0_3, %c0_4] : memref<4x32xf32, #tpu.memory_space<vmem>>, vector<4x32xf32>
    %c0_5 = arith.constant 0 : index
    %c0_6 = arith.constant 0 : index
    %3 = vector.load %arg3[%c0_5, %c0_6] : memref<7x32xbf16, #tpu.memory_space<vmem>>, vector<7x32xbf16>
    %cst = arith.constant dense<0.000000e+00> : vector<256x32xf32>
    %4 = tpu.matmul %0, %3, %cst {dimension_numbers = #tpu.dot_dimension_numbers<[1], [0], [0], [1], [0, 0, 1, 1], [], []>} : vector<256x7xbf16>, vector<7x32xbf16>, vector<256x32xf32> -> vector<256x32xf32>
    %5 = vector.extract_strided_slice %2 {offsets = [0, 0], sizes = [1, 32], strides = [1, 1]} : vector<4x32xf32> to vector<1x32xf32>
    %6 = vector.broadcast %5 : vector<1x32xf32> to vector<256x32xf32>
    %7 = arith.addf %4, %6 : vector<256x32xf32>
    %c0_7 = arith.constant 0 : index
    %c0_8 = arith.constant 0 : index
    %8 = vector.load %arg4[%c0_7, %c0_8] : memref<41x32xbf16, #tpu.memory_space<vmem>>, vector<41x32xbf16>
    %cst_9 = arith.constant dense<0.000000e+00> : vector<256x32xf32>
    %9 = tpu.matmul %1, %8, %cst_9 {dimension_numbers = #tpu.dot_dimension_numbers<[1], [0], [0], [1], [0, 0, 1, 1], [], []>} : vector<256x41xbf16>, vector<41x32xbf16>, vector<256x32xf32> -> vector<256x32xf32>
    %10 = vector.extract_strided_slice %2 {offsets = [1, 0], sizes = [1, 32], strides = [1, 1]} : vector<4x32xf32> to vector<1x32xf32>
    %11 = vector.broadcast %10 : vector<1x32xf32> to vector<256x32xf32>
    %12 = arith.addf %9, %11 : vector<256x32xf32>
    %13 = arith.addf %7, %12 : vector<256x32xf32>
    %cst_10 = arith.constant 0.000000e+00 : f32
    %14 = vector.broadcast %cst_10 : f32 to vector<256x32xf32>
    %15 = arith.maximumf %13, %14 : vector<256x32xf32>
    %16 = arith.truncf %15 : vector<256x32xf32> to vector<256x32xbf16>
    %c0_11 = arith.constant 0 : index
    %c0_12 = arith.constant 0 : index
    %17 = vector.load %arg5[%c0_11, %c0_12] : memref<32x32xbf16, #tpu.memory_space<vmem>>, vector<32x32xbf16>
    %cst_13 = arith.constant dense<0.000000e+00> : vector<256x32xf32>
    %18 = tpu.matmul %16, %17, %cst_13 {dimension_numbers = #tpu.dot_dimension_numbers<[1], [0], [0], [1], [0, 0, 1, 1], [], []>} : vector<256x32xbf16>, vector<32x32xbf16>, vector<256x32xf32> -> vector<256x32xf32>
    %19 = arith.truncf %12 : vector<256x32xf32> to vector<256x32xbf16>
    %c0_14 = arith.constant 0 : index
    %c0_15 = arith.constant 0 : index
    %20 = vector.load %arg6[%c0_14, %c0_15] : memref<32x32xbf16, #tpu.memory_space<vmem>>, vector<32x32xbf16>
    %cst_16 = arith.constant dense<0.000000e+00> : vector<256x32xf32>
    %21 = tpu.matmul %19, %20, %cst_16 {dimension_numbers = #tpu.dot_dimension_numbers<[1], [0], [0], [1], [0, 0, 1, 1], [], []>} : vector<256x32xbf16>, vector<32x32xbf16>, vector<256x32xf32> -> vector<256x32xf32>
    %22 = arith.addf %18, %21 : vector<256x32xf32>
    %23 = vector.extract_strided_slice %2 {offsets = [2, 0], sizes = [1, 32], strides = [1, 1]} : vector<4x32xf32> to vector<1x32xf32>
    %24 = vector.broadcast %23 : vector<1x32xf32> to vector<256x32xf32>
    %25 = arith.addf %22, %24 : vector<256x32xf32>
    %cst_17 = arith.constant 0.000000e+00 : f32
    %26 = vector.broadcast %cst_17 : f32 to vector<256x32xf32>
    %27 = arith.maximumf %25, %26 : vector<256x32xf32>
    %c0_18 = arith.constant 0 : index
    %c0_19 = arith.constant 0 : index
    %28 = vector.load %arg7[%c0_18, %c0_19] : memref<7x32xbf16, #tpu.memory_space<vmem>>, vector<7x32xbf16>
    %cst_20 = arith.constant dense<0.000000e+00> : vector<256x32xf32>
    %29 = tpu.matmul %0, %28, %cst_20 {dimension_numbers = #tpu.dot_dimension_numbers<[1], [0], [0], [1], [0, 0, 1, 1], [], []>} : vector<256x7xbf16>, vector<7x32xbf16>, vector<256x32xf32> -> vector<256x32xf32>
    %30 = vector.extract_strided_slice %2 {offsets = [3, 0], sizes = [1, 32], strides = [1, 1]} : vector<4x32xf32> to vector<1x32xf32>
    %31 = vector.broadcast %30 : vector<1x32xf32> to vector<256x32xf32>
    %32 = arith.addf %29, %31 : vector<256x32xf32>
    %33 = arith.addf %27, %32 : vector<256x32xf32>
    %c0_21 = arith.constant 0 : index
    %c0_22 = arith.constant 0 : index
    %34 = vector.load %arg9[%c0_21, %c0_22] : memref<256x32xf32, #tpu.memory_space<vmem>>, vector<256x32xf32>
    tpu.vector_store %arg9[%c0_21, %c0_22], %33 {strides = array<i32>} : memref<256x32xf32, #tpu.memory_space<vmem>>, vector<256x32xf32>,
    return
  }
  func.func @transform_0(%arg0: i32) -> (i32, i32) {
    %c0_i32 = arith.constant 0 : i32
    %c0_i32_0 = arith.constant 0 : i32
    return %arg0, %c0_i32 : i32, i32
  }
  func.func @transform_1(%arg0: i32) -> (i32, i32) {
    %c0_i32 = arith.constant 0 : i32
    %c0_i32_0 = arith.constant 0 : i32
    return %arg0, %c0_i32 : i32, i32
  }
  func.func @transform_2(%arg0: i32) -> (i32, i32) {
    %c0_i32 = arith.constant 0 : i32
    %c0_i32_0 = arith.constant 0 : i32
    %c0_i32_1 = arith.constant 0 : i32
    return %c0_i32, %c0_i32_0 : i32, i32
  }
  func.func @transform_3(%arg0: i32) -> (i32, i32) {
    %c0_i32 = arith.constant 0 : i32
    %c0_i32_0 = arith.constant 0 : i32
    %c0_i32_1 = arith.constant 0 : i32
    return %c0_i32, %c0_i32_0 : i32, i32
  }
  func.func @transform_4(%arg0: i32) -> (i32, i32) {
    %c0_i32 = arith.constant 0 : i32
    %c0_i32_0 = arith.constant 0 : i32
    %c0_i32_1 = arith.constant 0 : i32
    return %c0_i32, %c0_i32_0 : i32, i32
  }
  func.func @transform_5(%arg0: i32) -> (i32, i32) {
    %c0_i32 = arith.constant 0 : i32
    %c0_i32_0 = arith.constant 0 : i32
    %c0_i32_1 = arith.constant 0 : i32
    return %c0_i32, %c0_i32_0 : i32, i32
  }
  func.func @transform_6(%arg0: i32) -> (i32, i32) {
    %c0_i32 = arith.constant 0 : i32
    %c0_i32_0 = arith.constant 0 : i32
    %c0_i32_1 = arith.constant 0 : i32
    return %c0_i32, %c0_i32_0 : i32, i32
  }
  func.func @transform_7(%arg0: i32) -> (i32, i32) {
    %c0_i32 = arith.constant 0 : i32
    %c0_i32_0 = arith.constant 0 : i32
    %c0_i32_1 = arith.constant 0 : i32
    return %c0_i32, %c0_i32_0 : i32, i32
  }
  func.func @transform_8(%arg0: i32) -> (i32, i32) {
    %c0_i32 = arith.constant 0 : i32
    %c0_i32_0 = arith.constant 0 : i32
    return %arg0, %c0_i32 : i32, i32
  }
}

module attributes {stable_mosaic.version = 11 : i64} {
  func.func @_gated_tconv_kernel(%arg0: i32, %arg1: i32, %arg2: memref<1x8x16x32xbf16, #tpu.memory_space<vmem>>, %arg3: memref<96x32xbf16, #tpu.memory_space<vmem>>, %arg4: memref<96x32xbf16, #tpu.memory_space<vmem>>, %arg5: memref<1x32xf32, #tpu.memory_space<vmem>>, %arg6: memref<1x32xf32, #tpu.memory_space<vmem>>, %arg7: memref<1x6x16x32xf32, #tpu.memory_space<vmem>>) attributes {dimension_semantics = [#tpu.dimension_semantics<parallel>, #tpu.dimension_semantics<parallel>], iteration_bounds = array<i64: 2, 1>, scalar_prefetch = 0 : i64, scratch_operands = 0 : i64, tpu.core_type = #tpu.core_type<tc>, window_params = [{transform_indices = @transform_0, window_bounds = array<i64: 1, 8, 16, 32>}, {pipeline_mode = #tpu.pipeline_mode<synchronous>, transform_indices = @transform_1, window_bounds = array<i64: 96, 32>}, {pipeline_mode = #tpu.pipeline_mode<synchronous>, transform_indices = @transform_2, window_bounds = array<i64: 96, 32>}, {pipeline_mode = #tpu.pipeline_mode<synchronous>, transform_indices = @transform_3, window_bounds = array<i64: 1, 32>}, {pipeline_mode = #tpu.pipeline_mode<synchronous>, transform_indices = @transform_4, window_bounds = array<i64: 1, 32>}, {transform_indices = @transform_5, window_bounds = array<i64: 1, 6, 16, 32>}]} {
    %c0 = arith.constant 0 : index
    %c0_0 = arith.constant 0 : index
    %c0_1 = arith.constant 0 : index
    %c0_2 = arith.constant 0 : index
    %0 = vector.load %arg2[%c0, %c0_0, %c0_1, %c0_2] : memref<1x8x16x32xbf16, #tpu.memory_space<vmem>>, vector<1x6x16x32xbf16>
    %1 = vector.shape_cast %0 : vector<1x6x16x32xbf16> to vector<6x16x32xbf16>
    %c0_3 = arith.constant 0 : index
    %c1 = arith.constant 1 : index
    %c0_4 = arith.constant 0 : index
    %c0_5 = arith.constant 0 : index
    %2 = vector.load %arg2[%c0_3, %c1, %c0_4, %c0_5] : memref<1x8x16x32xbf16, #tpu.memory_space<vmem>>, vector<1x6x16x32xbf16>
    %3 = vector.shape_cast %2 : vector<1x6x16x32xbf16> to vector<6x16x32xbf16>
    %c0_6 = arith.constant 0 : index
    %c2 = arith.constant 2 : index
    %c0_7 = arith.constant 0 : index
    %c0_8 = arith.constant 0 : index
    %4 = vector.load %arg2[%c0_6, %c2, %c0_7, %c0_8] : memref<1x8x16x32xbf16, #tpu.memory_space<vmem>>, vector<1x6x16x32xbf16>
    %5 = vector.shape_cast %4 : vector<1x6x16x32xbf16> to vector<6x16x32xbf16>
    %6 = tpu.concatenate %1, %3, %5 in 2 : vector<6x16x32xbf16>, vector<6x16x32xbf16>, vector<6x16x32xbf16> -> vector<6x16x96xbf16>
    %7 = vector.shape_cast %6 : vector<6x16x96xbf16> to vector<96x96xbf16>
    %c0_9 = arith.constant 0 : index
    %c0_10 = arith.constant 0 : index
    %8 = vector.load %arg3[%c0_9, %c0_10] : memref<96x32xbf16, #tpu.memory_space<vmem>>, vector<96x32xbf16>
    %cst = arith.constant dense<0.000000e+00> : vector<96x32xf32>
    %9 = tpu.matmul %7, %8, %cst {dimension_numbers = #tpu.dot_dimension_numbers<[1], [0], [0], [1], [0, 0, 1, 1], [], []>} : vector<96x96xbf16>, vector<96x32xbf16>, vector<96x32xf32> -> vector<96x32xf32>
    %c0_11 = arith.constant 0 : index
    %c0_12 = arith.constant 0 : index
    %10 = vector.load %arg5[%c0_11, %c0_12] : memref<1x32xf32, #tpu.memory_space<vmem>>, vector<1x32xf32>
    %11 = vector.broadcast %10 : vector<1x32xf32> to vector<96x32xf32>
    %12 = arith.addf %9, %11 : vector<96x32xf32>
    %c0_13 = arith.constant 0 : index
    %c0_14 = arith.constant 0 : index
    %13 = vector.load %arg4[%c0_13, %c0_14] : memref<96x32xbf16, #tpu.memory_space<vmem>>, vector<96x32xbf16>
    %cst_15 = arith.constant dense<0.000000e+00> : vector<96x32xf32>
    %14 = tpu.matmul %7, %13, %cst_15 {dimension_numbers = #tpu.dot_dimension_numbers<[1], [0], [0], [1], [0, 0, 1, 1], [], []>} : vector<96x96xbf16>, vector<96x32xbf16>, vector<96x32xf32> -> vector<96x32xf32>
    %c0_16 = arith.constant 0 : index
    %c0_17 = arith.constant 0 : index
    %15 = vector.load %arg6[%c0_16, %c0_17] : memref<1x32xf32, #tpu.memory_space<vmem>>, vector<1x32xf32>
    %16 = vector.broadcast %15 : vector<1x32xf32> to vector<96x32xf32>
    %17 = arith.addf %14, %16 : vector<96x32xf32>
    %18 = math.tanh %12 : vector<96x32xf32>
    %19 = arith.negf %17 : vector<96x32xf32>
    %20 = math.exp %19 : vector<96x32xf32>
    %cst_18 = arith.constant 1.000000e+00 : f32
    %21 = vector.broadcast %cst_18 : f32 to vector<96x32xf32>
    %22 = arith.addf %21, %20 : vector<96x32xf32>
    %23 = arith.divf %21, %22 : vector<96x32xf32>
    %24 = arith.mulf %18, %23 : vector<96x32xf32>
    %25 = vector.shape_cast %24 : vector<96x32xf32> to vector<6x16x32xf32>
    %c0_19 = arith.constant 0 : index
    %c0_20 = arith.constant 0 : index
    %c0_21 = arith.constant 0 : index
    %c0_22 = arith.constant 0 : index
    %26 = vector.load %arg7[%c0_19, %c0_20, %c0_21, %c0_22] : memref<1x6x16x32xf32, #tpu.memory_space<vmem>>, vector<1x6x16x32xf32>
    %27 = vector.shape_cast %26 : vector<1x6x16x32xf32> to vector<6x16x32xf32>
    %28 = vector.shape_cast %25 : vector<6x16x32xf32> to vector<1x6x16x32xf32>
    tpu.vector_store %arg7[%c0_19, %c0_20, %c0_21, %c0_22], %28 {strides = array<i32>} : memref<1x6x16x32xf32, #tpu.memory_space<vmem>>, vector<1x6x16x32xf32>,
    return
  }
  func.func @transform_0(%arg0: i32, %arg1: i32) -> (i32, i32, i32, i32) {
    %c0_i32 = arith.constant 0 : i32
    %c0_i32_0 = arith.constant 0 : i32
    %c0_i32_1 = arith.constant 0 : i32
    return %arg0, %c0_i32, %arg1, %c0_i32_0 : i32, i32, i32, i32
  }
  func.func @transform_1(%arg0: i32, %arg1: i32) -> (i32, i32) {
    %c0_i32 = arith.constant 0 : i32
    %c0_i32_0 = arith.constant 0 : i32
    %c0_i32_1 = arith.constant 0 : i32
    return %c0_i32, %c0_i32_0 : i32, i32
  }
  func.func @transform_2(%arg0: i32, %arg1: i32) -> (i32, i32) {
    %c0_i32 = arith.constant 0 : i32
    %c0_i32_0 = arith.constant 0 : i32
    %c0_i32_1 = arith.constant 0 : i32
    return %c0_i32, %c0_i32_0 : i32, i32
  }
  func.func @transform_3(%arg0: i32, %arg1: i32) -> (i32, i32) {
    %c0_i32 = arith.constant 0 : i32
    %c0_i32_0 = arith.constant 0 : i32
    %c0_i32_1 = arith.constant 0 : i32
    return %c0_i32, %c0_i32_0 : i32, i32
  }
  func.func @transform_4(%arg0: i32, %arg1: i32) -> (i32, i32) {
    %c0_i32 = arith.constant 0 : i32
    %c0_i32_0 = arith.constant 0 : i32
    %c0_i32_1 = arith.constant 0 : i32
    return %c0_i32, %c0_i32_0 : i32, i32
  }
  func.func @transform_5(%arg0: i32, %arg1: i32) -> (i32, i32, i32, i32) {
    %c0_i32 = arith.constant 0 : i32
    %c0_i32_0 = arith.constant 0 : i32
    %c0_i32_1 = arith.constant 0 : i32
    return %arg0, %c0_i32, %arg1, %c0_i32_0 : i32, i32, i32, i32
  }
}

module attributes {stable_mosaic.version = 11 : i64} {
  func.func @_linear_kernel(%arg0: i32, %arg1: memref<16x8xbf16, #tpu.memory_space<vmem>>, %arg2: memref<8x96xbf16, #tpu.memory_space<vmem>>, %arg3: memref<1x96xf32, #tpu.memory_space<vmem>>, %arg4: memref<16x96xf32, #tpu.memory_space<vmem>>) attributes {dimension_semantics = [#tpu.dimension_semantics<parallel>], iteration_bounds = array<i64: 1>, scalar_prefetch = 0 : i64, scratch_operands = 0 : i64, tpu.core_type = #tpu.core_type<tc>, window_params = [{transform_indices = @transform_0, window_bounds = array<i64: 16, 8>}, {pipeline_mode = #tpu.pipeline_mode<synchronous>, transform_indices = @transform_1, window_bounds = array<i64: 8, 96>}, {pipeline_mode = #tpu.pipeline_mode<synchronous>, transform_indices = @transform_2, window_bounds = array<i64: 1, 96>}, {transform_indices = @transform_3, window_bounds = array<i64: 16, 96>}]} {
    %c0 = arith.constant 0 : index
    %c0_0 = arith.constant 0 : index
    %0 = vector.load %arg1[%c0, %c0_0] : memref<16x8xbf16, #tpu.memory_space<vmem>>, vector<16x8xbf16>
    %c0_1 = arith.constant 0 : index
    %c0_2 = arith.constant 0 : index
    %1 = vector.load %arg2[%c0_1, %c0_2] : memref<8x96xbf16, #tpu.memory_space<vmem>>, vector<8x96xbf16>
    %cst = arith.constant dense<0.000000e+00> : vector<16x96xf32>
    %2 = tpu.matmul %0, %1, %cst {dimension_numbers = #tpu.dot_dimension_numbers<[1], [0], [0], [1], [0, 0, 1, 1], [], []>} : vector<16x8xbf16>, vector<8x96xbf16>, vector<16x96xf32> -> vector<16x96xf32>
    %c0_3 = arith.constant 0 : index
    %c0_4 = arith.constant 0 : index
    %3 = vector.load %arg3[%c0_3, %c0_4] : memref<1x96xf32, #tpu.memory_space<vmem>>, vector<1x96xf32>
    %4 = vector.broadcast %3 : vector<1x96xf32> to vector<16x96xf32>
    %5 = arith.addf %2, %4 : vector<16x96xf32>
    %c0_5 = arith.constant 0 : index
    %c0_6 = arith.constant 0 : index
    %6 = vector.load %arg4[%c0_5, %c0_6] : memref<16x96xf32, #tpu.memory_space<vmem>>, vector<16x96xf32>
    tpu.vector_store %arg4[%c0_5, %c0_6], %5 {strides = array<i32>} : memref<16x96xf32, #tpu.memory_space<vmem>>, vector<16x96xf32>,
    return
  }
  func.func @transform_0(%arg0: i32) -> (i32, i32) {
    %c0_i32 = arith.constant 0 : i32
    %c0_i32_0 = arith.constant 0 : i32
    return %arg0, %c0_i32 : i32, i32
  }
  func.func @transform_1(%arg0: i32) -> (i32, i32) {
    %c0_i32 = arith.constant 0 : i32
    %c0_i32_0 = arith.constant 0 : i32
    %c0_i32_1 = arith.constant 0 : i32
    return %c0_i32, %c0_i32_0 : i32, i32
  }
  func.func @transform_2(%arg0: i32) -> (i32, i32) {
    %c0_i32 = arith.constant 0 : i32
    %c0_i32_0 = arith.constant 0 : i32
    %c0_i32_1 = arith.constant 0 : i32
    return %c0_i32, %c0_i32_0 : i32, i32
  }
  func.func @transform_3(%arg0: i32) -> (i32, i32) {
    %c0_i32 = arith.constant 0 : i32
    %c0_i32_0 = arith.constant 0 : i32
    return %arg0, %c0_i32 : i32, i32
  }
}

module attributes {stable_mosaic.version = 11 : i64} {
  func.func @_adj_kernel(%arg0: memref<16x32xbf16, #tpu.memory_space<vmem>>, %arg1: memref<16x16xf32, #tpu.memory_space<vmem>>) attributes {dimension_semantics = [], scalar_prefetch = 0 : i64, scratch_operands = 0 : i64, tpu.core_type = #tpu.core_type<tc>} {
    %c0 = arith.constant 0 : index
    %c0_0 = arith.constant 0 : index
    %0 = vector.load %arg0[%c0, %c0_0] : memref<16x32xbf16, #tpu.memory_space<vmem>>, vector<16x32xbf16>
    %cst = arith.constant dense<0.000000e+00> : vector<16x16xf32>
    %1 = tpu.matmul %0, %0, %cst {dimension_numbers = #tpu.dot_dimension_numbers<[1], [1], [0], [0], [0, 0, 1, 0], [], []>} : vector<16x32xbf16>, vector<16x32xbf16>, vector<16x16xf32> -> vector<16x16xf32>
    %cst_1 = arith.constant 0.000000e+00 : f32
    %2 = vector.broadcast %cst_1 : f32 to vector<16x16xf32>
    %3 = arith.maximumf %1, %2 : vector<16x16xf32>
    %cst_2 = arith.constant dense<0xFF800000> : vector<16xf32>
    %4 = vector.multi_reduction <maximumf>, %3, %cst_2 [1] : vector<16x16xf32> to vector<16xf32>
    %5 = vector.shape_cast %4 : vector<16xf32> to vector<16x1xf32>
    %6 = vector.broadcast %5 : vector<16x1xf32> to vector<16x16xf32>
    %7 = arith.subf %3, %6 : vector<16x16xf32>
    %8 = math.exp %7 : vector<16x16xf32>
    %cst_3 = arith.constant dense<0.000000e+00> : vector<16xf32>
    %9 = vector.multi_reduction <add>, %8, %cst_3 [1] : vector<16x16xf32> to vector<16xf32>
    %10 = vector.shape_cast %9 : vector<16xf32> to vector<16x1xf32>
    %11 = tpu.reciprocal %10 {approx = true} : vector<16x1xf32> -> vector<16x1xf32>
    %12 = vector.broadcast %11 : vector<16x1xf32> to vector<16x16xf32>
    %13 = arith.mulf %8, %12 : vector<16x16xf32>
    %c0_4 = arith.constant 0 : index
    %c0_5 = arith.constant 0 : index
    %14 = vector.load %arg1[%c0_4, %c0_5] : memref<16x16xf32, #tpu.memory_space<vmem>>, vector<16x16xf32>
    tpu.vector_store %arg1[%c0_4, %c0_5], %13 {strides = array<i32>} : memref<16x16xf32, #tpu.memory_space<vmem>>, vector<16x16xf32>,
    return
  }
}

module attributes {stable_mosaic.version = 11 : i64} {
  func.func @_film_conv_kernel(%arg0: i32, %arg1: memref<1x16x32xbf16, #tpu.memory_space<vmem>>, %arg2: memref<1x16x32xf32, #tpu.memory_space<vmem>>, %arg3: memref<16x16xbf16, #tpu.memory_space<vmem>>, %arg4: memref<32x32xbf16, #tpu.memory_space<vmem>>, %arg5: memref<32x32xbf16, #tpu.memory_space<vmem>>, %arg6: memref<32x32xbf16, #tpu.memory_space<vmem>>, %arg7: memref<16x32xf32, #tpu.memory_space<vmem>>, %arg8: memref<16x32xf32, #tpu.memory_space<vmem>>, %arg9: memref<16x32xf32, #tpu.memory_space<vmem>>, %arg10: memref<1x16x32xf32, #tpu.memory_space<vmem>>) attributes {dimension_semantics = [#tpu.dimension_semantics<parallel>], iteration_bounds = array<i64: 12>, scalar_prefetch = 0 : i64, scratch_operands = 0 : i64, tpu.core_type = #tpu.core_type<tc>, window_params = [{transform_indices = @transform_0, window_bounds = array<i64: 1, 16, 32>}, {transform_indices = @transform_1, window_bounds = array<i64: 1, 16, 32>}, {pipeline_mode = #tpu.pipeline_mode<synchronous>, transform_indices = @transform_2, window_bounds = array<i64: 16, 16>}, {pipeline_mode = #tpu.pipeline_mode<synchronous>, transform_indices = @transform_3, window_bounds = array<i64: 32, 32>}, {pipeline_mode = #tpu.pipeline_mode<synchronous>, transform_indices = @transform_4, window_bounds = array<i64: 32, 32>}, {pipeline_mode = #tpu.pipeline_mode<synchronous>, transform_indices = @transform_5, window_bounds = array<i64: 32, 32>}, {pipeline_mode = #tpu.pipeline_mode<synchronous>, transform_indices = @transform_6, window_bounds = array<i64: 16, 32>}, {pipeline_mode = #tpu.pipeline_mode<synchronous>, transform_indices = @transform_7, window_bounds = array<i64: 16, 32>}, {pipeline_mode = #tpu.pipeline_mode<synchronous>, transform_indices = @transform_8, window_bounds = array<i64: 16, 32>}, {transform_indices = @transform_9, window_bounds = array<i64: 1, 16, 32>}]} {
    %c0 = arith.constant 0 : index
    %c0_0 = arith.constant 0 : index
    %c0_1 = arith.constant 0 : index
    %0 = vector.load %arg1[%c0, %c0_0, %c0_1] : memref<1x16x32xbf16, #tpu.memory_space<vmem>>, vector<1x16x32xbf16>
    %1 = vector.shape_cast %0 : vector<1x16x32xbf16> to vector<16x32xbf16>
    %c0_2 = arith.constant 0 : index
    %c0_3 = arith.constant 0 : index
    %2 = vector.load %arg4[%c0_2, %c0_3] : memref<32x32xbf16, #tpu.memory_space<vmem>>, vector<32x32xbf16>
    %cst = arith.constant dense<0.000000e+00> : vector<16x32xf32>
    %3 = tpu.matmul %1, %2, %cst {dimension_numbers = #tpu.dot_dimension_numbers<[1], [0], [0], [1], [0, 0, 1, 1], [], []>} : vector<16x32xbf16>, vector<32x32xbf16>, vector<16x32xf32> -> vector<16x32xf32>
    %c0_4 = arith.constant 0 : index
    %c0_5 = arith.constant 0 : index
    %4 = vector.load %arg7[%c0_4, %c0_5] : memref<16x32xf32, #tpu.memory_space<vmem>>, vector<16x32xf32>
    %5 = arith.addf %3, %4 : vector<16x32xf32>
    %c0_6 = arith.constant 0 : index
    %c0_7 = arith.constant 0 : index
    %6 = vector.load %arg5[%c0_6, %c0_7] : memref<32x32xbf16, #tpu.memory_space<vmem>>, vector<32x32xbf16>
    %cst_8 = arith.constant dense<0.000000e+00> : vector<16x32xf32>
    %7 = tpu.matmul %1, %6, %cst_8 {dimension_numbers = #tpu.dot_dimension_numbers<[1], [0], [0], [1], [0, 0, 1, 1], [], []>} : vector<16x32xbf16>, vector<32x32xbf16>, vector<16x32xf32> -> vector<16x32xf32>
    %c0_9 = arith.constant 0 : index
    %c0_10 = arith.constant 0 : index
    %8 = vector.load %arg8[%c0_9, %c0_10] : memref<16x32xf32, #tpu.memory_space<vmem>>, vector<16x32xf32>
    %9 = arith.addf %7, %8 : vector<16x32xf32>
    %c0_11 = arith.constant 0 : index
    %c0_12 = arith.constant 0 : index
    %10 = vector.load %arg6[%c0_11, %c0_12] : memref<32x32xbf16, #tpu.memory_space<vmem>>, vector<32x32xbf16>
    %cst_13 = arith.constant dense<0.000000e+00> : vector<16x32xf32>
    %11 = tpu.matmul %1, %10, %cst_13 {dimension_numbers = #tpu.dot_dimension_numbers<[1], [0], [0], [1], [0, 0, 1, 1], [], []>} : vector<16x32xbf16>, vector<32x32xbf16>, vector<16x32xf32> -> vector<16x32xf32>
    %c0_14 = arith.constant 0 : index
    %c0_15 = arith.constant 0 : index
    %12 = vector.load %arg9[%c0_14, %c0_15] : memref<16x32xf32, #tpu.memory_space<vmem>>, vector<16x32xf32>
    %13 = arith.addf %11, %12 : vector<16x32xf32>
    %c0_16 = arith.constant 0 : index
    %c0_17 = arith.constant 0 : index
    %14 = vector.load %arg3[%c0_16, %c0_17] : memref<16x16xbf16, #tpu.memory_space<vmem>>, vector<16x16xbf16>
    %15 = arith.truncf %5 : vector<16x32xf32> to vector<16x32xbf16>
    %cst_18 = arith.constant dense<0.000000e+00> : vector<16x32xf32>
    %16 = tpu.matmul %14, %15, %cst_18 {dimension_numbers = #tpu.dot_dimension_numbers<[1], [0], [0], [1], [0, 0, 1, 1], [], []>} : vector<16x16xbf16>, vector<16x32xbf16>, vector<16x32xf32> -> vector<16x32xf32>
    %17 = arith.mulf %9, %16 : vector<16x32xf32>
    %18 = arith.addf %17, %13 : vector<16x32xf32>
    %cst_19 = arith.constant 0.000000e+00 : f32
    %19 = vector.broadcast %cst_19 : f32 to vector<16x32xf32>
    %20 = arith.cmpf ogt, %18, %19 : vector<16x32xf32>
    %cst_20 = arith.constant 0.000000e+00 : f32
    %21 = vector.broadcast %cst_20 : f32 to vector<16x32xf32>
    %22 = arith.minimumf %18, %21 : vector<16x32xf32>
    %23 = math.exp %22 : vector<16x32xf32>
    %cst_21 = arith.constant 1.000000e+00 : f32
    %24 = vector.broadcast %cst_21 : f32 to vector<16x32xf32>
    %25 = arith.subf %23, %24 : vector<16x32xf32>
    %26 = arith.select %20, %18, %25 : vector<16x32xi1>, vector<16x32xf32>
    %c0_22 = arith.constant 0 : index
    %c0_23 = arith.constant 0 : index
    %c0_24 = arith.constant 0 : index
    %27 = vector.load %arg2[%c0_22, %c0_23, %c0_24] : memref<1x16x32xf32, #tpu.memory_space<vmem>>, vector<1x16x32xf32>
    %28 = vector.shape_cast %27 : vector<1x16x32xf32> to vector<16x32xf32>
    %29 = arith.addf %26, %28 : vector<16x32xf32>
    %c0_25 = arith.constant 0 : index
    %c0_26 = arith.constant 0 : index
    %c0_27 = arith.constant 0 : index
    %30 = vector.load %arg10[%c0_25, %c0_26, %c0_27] : memref<1x16x32xf32, #tpu.memory_space<vmem>>, vector<1x16x32xf32>
    %31 = vector.shape_cast %30 : vector<1x16x32xf32> to vector<16x32xf32>
    %32 = vector.shape_cast %29 : vector<16x32xf32> to vector<1x16x32xf32>
    tpu.vector_store %arg10[%c0_25, %c0_26, %c0_27], %32 {strides = array<i32>} : memref<1x16x32xf32, #tpu.memory_space<vmem>>, vector<1x16x32xf32>,
    return
  }
  func.func @transform_0(%arg0: i32) -> (i32, i32, i32) {
    %c0_i32 = arith.constant 0 : i32
    %c0_i32_0 = arith.constant 0 : i32
    %c0_i32_1 = arith.constant 0 : i32
    return %arg0, %c0_i32, %c0_i32_0 : i32, i32, i32
  }
  func.func @transform_1(%arg0: i32) -> (i32, i32, i32) {
    %c0_i32 = arith.constant 0 : i32
    %c0_i32_0 = arith.constant 0 : i32
    %c0_i32_1 = arith.constant 0 : i32
    return %arg0, %c0_i32, %c0_i32_0 : i32, i32, i32
  }
  func.func @transform_2(%arg0: i32) -> (i32, i32) {
    %c0_i32 = arith.constant 0 : i32
    %c0_i32_0 = arith.constant 0 : i32
    %c0_i32_1 = arith.constant 0 : i32
    return %c0_i32, %c0_i32_0 : i32, i32
  }
  func.func @transform_3(%arg0: i32) -> (i32, i32) {
    %c0_i32 = arith.constant 0 : i32
    %c0_i32_0 = arith.constant 0 : i32
    %c0_i32_1 = arith.constant 0 : i32
    return %c0_i32, %c0_i32_0 : i32, i32
  }
  func.func @transform_4(%arg0: i32) -> (i32, i32) {
    %c0_i32 = arith.constant 0 : i32
    %c0_i32_0 = arith.constant 0 : i32
    %c0_i32_1 = arith.constant 0 : i32
    return %c0_i32, %c0_i32_0 : i32, i32
  }
  func.func @transform_5(%arg0: i32) -> (i32, i32) {
    %c0_i32 = arith.constant 0 : i32
    %c0_i32_0 = arith.constant 0 : i32
    %c0_i32_1 = arith.constant 0 : i32
    return %c0_i32, %c0_i32_0 : i32, i32
  }
  func.func @transform_6(%arg0: i32) -> (i32, i32) {
    %c0_i32 = arith.constant 0 : i32
    %c0_i32_0 = arith.constant 0 : i32
    %c0_i32_1 = arith.constant 0 : i32
    return %c0_i32, %c0_i32_0 : i32, i32
  }
  func.func @transform_7(%arg0: i32) -> (i32, i32) {
    %c0_i32 = arith.constant 0 : i32
    %c0_i32_0 = arith.constant 0 : i32
    %c0_i32_1 = arith.constant 0 : i32
    return %c0_i32, %c0_i32_0 : i32, i32
  }
  func.func @transform_8(%arg0: i32) -> (i32, i32) {
    %c0_i32 = arith.constant 0 : i32
    %c0_i32_0 = arith.constant 0 : i32
    %c0_i32_1 = arith.constant 0 : i32
    return %c0_i32, %c0_i32_0 : i32, i32
  }
  func.func @transform_9(%arg0: i32) -> (i32, i32, i32) {
    %c0_i32 = arith.constant 0 : i32
    %c0_i32_0 = arith.constant 0 : i32
    %c0_i32_1 = arith.constant 0 : i32
    return %arg0, %c0_i32, %c0_i32_0 : i32, i32, i32
  }
}

module attributes {stable_mosaic.version = 11 : i64} {
  func.func @_gated_tconv_kernel(%arg0: i32, %arg1: i32, %arg2: memref<1x6x16x32xbf16, #tpu.memory_space<vmem>>, %arg3: memref<96x32xbf16, #tpu.memory_space<vmem>>, %arg4: memref<96x32xbf16, #tpu.memory_space<vmem>>, %arg5: memref<1x32xf32, #tpu.memory_space<vmem>>, %arg6: memref<1x32xf32, #tpu.memory_space<vmem>>, %arg7: memref<1x2x16x32xf32, #tpu.memory_space<vmem>>) attributes {dimension_semantics = [#tpu.dimension_semantics<parallel>, #tpu.dimension_semantics<parallel>], iteration_bounds = array<i64: 2, 1>, scalar_prefetch = 0 : i64, scratch_operands = 0 : i64, tpu.core_type = #tpu.core_type<tc>, window_params = [{transform_indices = @transform_0, window_bounds = array<i64: 1, 6, 16, 32>}, {pipeline_mode = #tpu.pipeline_mode<synchronous>, transform_indices = @transform_1, window_bounds = array<i64: 96, 32>}, {pipeline_mode = #tpu.pipeline_mode<synchronous>, transform_indices = @transform_2, window_bounds = array<i64: 96, 32>}, {pipeline_mode = #tpu.pipeline_mode<synchronous>, transform_indices = @transform_3, window_bounds = array<i64: 1, 32>}, {pipeline_mode = #tpu.pipeline_mode<synchronous>, transform_indices = @transform_4, window_bounds = array<i64: 1, 32>}, {transform_indices = @transform_5, window_bounds = array<i64: 1, 2, 16, 32>}]} {
    %c0 = arith.constant 0 : index
    %c0_0 = arith.constant 0 : index
    %c0_1 = arith.constant 0 : index
    %c0_2 = arith.constant 0 : index
    %0 = vector.load %arg2[%c0, %c0_0, %c0_1, %c0_2] : memref<1x6x16x32xbf16, #tpu.memory_space<vmem>>, vector<1x2x16x32xbf16>
    %1 = vector.shape_cast %0 : vector<1x2x16x32xbf16> to vector<2x16x32xbf16>
    %c0_3 = arith.constant 0 : index
    %c2 = arith.constant 2 : index
    %c0_4 = arith.constant 0 : index
    %c0_5 = arith.constant 0 : index
    %2 = vector.load %arg2[%c0_3, %c2, %c0_4, %c0_5] : memref<1x6x16x32xbf16, #tpu.memory_space<vmem>>, vector<1x2x16x32xbf16>
    %3 = vector.shape_cast %2 : vector<1x2x16x32xbf16> to vector<2x16x32xbf16>
    %c0_6 = arith.constant 0 : index
    %c4 = arith.constant 4 : index
    %c0_7 = arith.constant 0 : index
    %c0_8 = arith.constant 0 : index
    %4 = vector.load %arg2[%c0_6, %c4, %c0_7, %c0_8] : memref<1x6x16x32xbf16, #tpu.memory_space<vmem>>, vector<1x2x16x32xbf16>
    %5 = vector.shape_cast %4 : vector<1x2x16x32xbf16> to vector<2x16x32xbf16>
    %6 = tpu.concatenate %1, %3, %5 in 2 : vector<2x16x32xbf16>, vector<2x16x32xbf16>, vector<2x16x32xbf16> -> vector<2x16x96xbf16>
    %7 = vector.shape_cast %6 : vector<2x16x96xbf16> to vector<32x96xbf16>
    %c0_9 = arith.constant 0 : index
    %c0_10 = arith.constant 0 : index
    %8 = vector.load %arg3[%c0_9, %c0_10] : memref<96x32xbf16, #tpu.memory_space<vmem>>, vector<96x32xbf16>
    %cst = arith.constant dense<0.000000e+00> : vector<32x32xf32>
    %9 = tpu.matmul %7, %8, %cst {dimension_numbers = #tpu.dot_dimension_numbers<[1], [0], [0], [1], [0, 0, 1, 1], [], []>} : vector<32x96xbf16>, vector<96x32xbf16>, vector<32x32xf32> -> vector<32x32xf32>
    %c0_11 = arith.constant 0 : index
    %c0_12 = arith.constant 0 : index
    %10 = vector.load %arg5[%c0_11, %c0_12] : memref<1x32xf32, #tpu.memory_space<vmem>>, vector<1x32xf32>
    %11 = vector.broadcast %10 : vector<1x32xf32> to vector<32x32xf32>
    %12 = arith.addf %9, %11 : vector<32x32xf32>
    %c0_13 = arith.constant 0 : index
    %c0_14 = arith.constant 0 : index
    %13 = vector.load %arg4[%c0_13, %c0_14] : memref<96x32xbf16, #tpu.memory_space<vmem>>, vector<96x32xbf16>
    %cst_15 = arith.constant dense<0.000000e+00> : vector<32x32xf32>
    %14 = tpu.matmul %7, %13, %cst_15 {dimension_numbers = #tpu.dot_dimension_numbers<[1], [0], [0], [1], [0, 0, 1, 1], [], []>} : vector<32x96xbf16>, vector<96x32xbf16>, vector<32x32xf32> -> vector<32x32xf32>
    %c0_16 = arith.constant 0 : index
    %c0_17 = arith.constant 0 : index
    %15 = vector.load %arg6[%c0_16, %c0_17] : memref<1x32xf32, #tpu.memory_space<vmem>>, vector<1x32xf32>
    %16 = vector.broadcast %15 : vector<1x32xf32> to vector<32x32xf32>
    %17 = arith.addf %14, %16 : vector<32x32xf32>
    %18 = math.tanh %12 : vector<32x32xf32>
    %19 = arith.negf %17 : vector<32x32xf32>
    %20 = math.exp %19 : vector<32x32xf32>
    %cst_18 = arith.constant 1.000000e+00 : f32
    %21 = vector.broadcast %cst_18 : f32 to vector<32x32xf32>
    %22 = arith.addf %21, %20 : vector<32x32xf32>
    %23 = arith.divf %21, %22 : vector<32x32xf32>
    %24 = arith.mulf %18, %23 : vector<32x32xf32>
    %25 = vector.shape_cast %24 : vector<32x32xf32> to vector<2x16x32xf32>
    %c0_19 = arith.constant 0 : index
    %c0_20 = arith.constant 0 : index
    %c0_21 = arith.constant 0 : index
    %c0_22 = arith.constant 0 : index
    %26 = vector.load %arg7[%c0_19, %c0_20, %c0_21, %c0_22] : memref<1x2x16x32xf32, #tpu.memory_space<vmem>>, vector<1x2x16x32xf32>
    %27 = vector.shape_cast %26 : vector<1x2x16x32xf32> to vector<2x16x32xf32>
    %28 = vector.shape_cast %25 : vector<2x16x32xf32> to vector<1x2x16x32xf32>
    tpu.vector_store %arg7[%c0_19, %c0_20, %c0_21, %c0_22], %28 {strides = array<i32>} : memref<1x2x16x32xf32, #tpu.memory_space<vmem>>, vector<1x2x16x32xf32>,
    return
  }
  func.func @transform_0(%arg0: i32, %arg1: i32) -> (i32, i32, i32, i32) {
    %c0_i32 = arith.constant 0 : i32
    %c0_i32_0 = arith.constant 0 : i32
    %c0_i32_1 = arith.constant 0 : i32
    return %arg0, %c0_i32, %arg1, %c0_i32_0 : i32, i32, i32, i32
  }
  func.func @transform_1(%arg0: i32, %arg1: i32) -> (i32, i32) {
    %c0_i32 = arith.constant 0 : i32
    %c0_i32_0 = arith.constant 0 : i32
    %c0_i32_1 = arith.constant 0 : i32
    return %c0_i32, %c0_i32_0 : i32, i32
  }
  func.func @transform_2(%arg0: i32, %arg1: i32) -> (i32, i32) {
    %c0_i32 = arith.constant 0 : i32
    %c0_i32_0 = arith.constant 0 : i32
    %c0_i32_1 = arith.constant 0 : i32
    return %c0_i32, %c0_i32_0 : i32, i32
  }
  func.func @transform_3(%arg0: i32, %arg1: i32) -> (i32, i32) {
    %c0_i32 = arith.constant 0 : i32
    %c0_i32_0 = arith.constant 0 : i32
    %c0_i32_1 = arith.constant 0 : i32
    return %c0_i32, %c0_i32_0 : i32, i32
  }
  func.func @transform_4(%arg0: i32, %arg1: i32) -> (i32, i32) {
    %c0_i32 = arith.constant 0 : i32
    %c0_i32_0 = arith.constant 0 : i32
    %c0_i32_1 = arith.constant 0 : i32
    return %c0_i32, %c0_i32_0 : i32, i32
  }
  func.func @transform_5(%arg0: i32, %arg1: i32) -> (i32, i32, i32, i32) {
    %c0_i32 = arith.constant 0 : i32
    %c0_i32_0 = arith.constant 0 : i32
    %c0_i32_1 = arith.constant 0 : i32
    return %arg0, %c0_i32, %arg1, %c0_i32_0 : i32, i32, i32, i32
  }
}

module attributes {stable_mosaic.version = 11 : i64} {
  func.func @_film_conv_kernel(%arg0: i32, %arg1: memref<1x16x32xbf16, #tpu.memory_space<vmem>>, %arg2: memref<1x16x32xf32, #tpu.memory_space<vmem>>, %arg3: memref<16x16xbf16, #tpu.memory_space<vmem>>, %arg4: memref<32x32xbf16, #tpu.memory_space<vmem>>, %arg5: memref<32x32xbf16, #tpu.memory_space<vmem>>, %arg6: memref<32x32xbf16, #tpu.memory_space<vmem>>, %arg7: memref<16x32xf32, #tpu.memory_space<vmem>>, %arg8: memref<16x32xf32, #tpu.memory_space<vmem>>, %arg9: memref<16x32xf32, #tpu.memory_space<vmem>>, %arg10: memref<1x16x32xf32, #tpu.memory_space<vmem>>) attributes {dimension_semantics = [#tpu.dimension_semantics<parallel>], iteration_bounds = array<i64: 4>, scalar_prefetch = 0 : i64, scratch_operands = 0 : i64, tpu.core_type = #tpu.core_type<tc>, window_params = [{transform_indices = @transform_0, window_bounds = array<i64: 1, 16, 32>}, {transform_indices = @transform_1, window_bounds = array<i64: 1, 16, 32>}, {pipeline_mode = #tpu.pipeline_mode<synchronous>, transform_indices = @transform_2, window_bounds = array<i64: 16, 16>}, {pipeline_mode = #tpu.pipeline_mode<synchronous>, transform_indices = @transform_3, window_bounds = array<i64: 32, 32>}, {pipeline_mode = #tpu.pipeline_mode<synchronous>, transform_indices = @transform_4, window_bounds = array<i64: 32, 32>}, {pipeline_mode = #tpu.pipeline_mode<synchronous>, transform_indices = @transform_5, window_bounds = array<i64: 32, 32>}, {pipeline_mode = #tpu.pipeline_mode<synchronous>, transform_indices = @transform_6, window_bounds = array<i64: 16, 32>}, {pipeline_mode = #tpu.pipeline_mode<synchronous>, transform_indices = @transform_7, window_bounds = array<i64: 16, 32>}, {pipeline_mode = #tpu.pipeline_mode<synchronous>, transform_indices = @transform_8, window_bounds = array<i64: 16, 32>}, {transform_indices = @transform_9, window_bounds = array<i64: 1, 16, 32>}]} {
    %c0 = arith.constant 0 : index
    %c0_0 = arith.constant 0 : index
    %c0_1 = arith.constant 0 : index
    %0 = vector.load %arg1[%c0, %c0_0, %c0_1] : memref<1x16x32xbf16, #tpu.memory_space<vmem>>, vector<1x16x32xbf16>
    %1 = vector.shape_cast %0 : vector<1x16x32xbf16> to vector<16x32xbf16>
    %c0_2 = arith.constant 0 : index
    %c0_3 = arith.constant 0 : index
    %2 = vector.load %arg4[%c0_2, %c0_3] : memref<32x32xbf16, #tpu.memory_space<vmem>>, vector<32x32xbf16>
    %cst = arith.constant dense<0.000000e+00> : vector<16x32xf32>
    %3 = tpu.matmul %1, %2, %cst {dimension_numbers = #tpu.dot_dimension_numbers<[1], [0], [0], [1], [0, 0, 1, 1], [], []>} : vector<16x32xbf16>, vector<32x32xbf16>, vector<16x32xf32> -> vector<16x32xf32>
    %c0_4 = arith.constant 0 : index
    %c0_5 = arith.constant 0 : index
    %4 = vector.load %arg7[%c0_4, %c0_5] : memref<16x32xf32, #tpu.memory_space<vmem>>, vector<16x32xf32>
    %5 = arith.addf %3, %4 : vector<16x32xf32>
    %c0_6 = arith.constant 0 : index
    %c0_7 = arith.constant 0 : index
    %6 = vector.load %arg5[%c0_6, %c0_7] : memref<32x32xbf16, #tpu.memory_space<vmem>>, vector<32x32xbf16>
    %cst_8 = arith.constant dense<0.000000e+00> : vector<16x32xf32>
    %7 = tpu.matmul %1, %6, %cst_8 {dimension_numbers = #tpu.dot_dimension_numbers<[1], [0], [0], [1], [0, 0, 1, 1], [], []>} : vector<16x32xbf16>, vector<32x32xbf16>, vector<16x32xf32> -> vector<16x32xf32>
    %c0_9 = arith.constant 0 : index
    %c0_10 = arith.constant 0 : index
    %8 = vector.load %arg8[%c0_9, %c0_10] : memref<16x32xf32, #tpu.memory_space<vmem>>, vector<16x32xf32>
    %9 = arith.addf %7, %8 : vector<16x32xf32>
    %c0_11 = arith.constant 0 : index
    %c0_12 = arith.constant 0 : index
    %10 = vector.load %arg6[%c0_11, %c0_12] : memref<32x32xbf16, #tpu.memory_space<vmem>>, vector<32x32xbf16>
    %cst_13 = arith.constant dense<0.000000e+00> : vector<16x32xf32>
    %11 = tpu.matmul %1, %10, %cst_13 {dimension_numbers = #tpu.dot_dimension_numbers<[1], [0], [0], [1], [0, 0, 1, 1], [], []>} : vector<16x32xbf16>, vector<32x32xbf16>, vector<16x32xf32> -> vector<16x32xf32>
    %c0_14 = arith.constant 0 : index
    %c0_15 = arith.constant 0 : index
    %12 = vector.load %arg9[%c0_14, %c0_15] : memref<16x32xf32, #tpu.memory_space<vmem>>, vector<16x32xf32>
    %13 = arith.addf %11, %12 : vector<16x32xf32>
    %c0_16 = arith.constant 0 : index
    %c0_17 = arith.constant 0 : index
    %14 = vector.load %arg3[%c0_16, %c0_17] : memref<16x16xbf16, #tpu.memory_space<vmem>>, vector<16x16xbf16>
    %15 = arith.truncf %5 : vector<16x32xf32> to vector<16x32xbf16>
    %cst_18 = arith.constant dense<0.000000e+00> : vector<16x32xf32>
    %16 = tpu.matmul %14, %15, %cst_18 {dimension_numbers = #tpu.dot_dimension_numbers<[1], [0], [0], [1], [0, 0, 1, 1], [], []>} : vector<16x16xbf16>, vector<16x32xbf16>, vector<16x32xf32> -> vector<16x32xf32>
    %17 = arith.mulf %9, %16 : vector<16x32xf32>
    %18 = arith.addf %17, %13 : vector<16x32xf32>
    %cst_19 = arith.constant 0.000000e+00 : f32
    %19 = vector.broadcast %cst_19 : f32 to vector<16x32xf32>
    %20 = arith.cmpf ogt, %18, %19 : vector<16x32xf32>
    %cst_20 = arith.constant 0.000000e+00 : f32
    %21 = vector.broadcast %cst_20 : f32 to vector<16x32xf32>
    %22 = arith.minimumf %18, %21 : vector<16x32xf32>
    %23 = math.exp %22 : vector<16x32xf32>
    %cst_21 = arith.constant 1.000000e+00 : f32
    %24 = vector.broadcast %cst_21 : f32 to vector<16x32xf32>
    %25 = arith.subf %23, %24 : vector<16x32xf32>
    %26 = arith.select %20, %18, %25 : vector<16x32xi1>, vector<16x32xf32>
    %c0_22 = arith.constant 0 : index
    %c0_23 = arith.constant 0 : index
    %c0_24 = arith.constant 0 : index
    %27 = vector.load %arg2[%c0_22, %c0_23, %c0_24] : memref<1x16x32xf32, #tpu.memory_space<vmem>>, vector<1x16x32xf32>
    %28 = vector.shape_cast %27 : vector<1x16x32xf32> to vector<16x32xf32>
    %29 = arith.addf %26, %28 : vector<16x32xf32>
    %c0_25 = arith.constant 0 : index
    %c0_26 = arith.constant 0 : index
    %c0_27 = arith.constant 0 : index
    %30 = vector.load %arg10[%c0_25, %c0_26, %c0_27] : memref<1x16x32xf32, #tpu.memory_space<vmem>>, vector<1x16x32xf32>
    %31 = vector.shape_cast %30 : vector<1x16x32xf32> to vector<16x32xf32>
    %32 = vector.shape_cast %29 : vector<16x32xf32> to vector<1x16x32xf32>
    tpu.vector_store %arg10[%c0_25, %c0_26, %c0_27], %32 {strides = array<i32>} : memref<1x16x32xf32, #tpu.memory_space<vmem>>, vector<1x16x32xf32>,
    return
  }
  func.func @transform_0(%arg0: i32) -> (i32, i32, i32) {
    %c0_i32 = arith.constant 0 : i32
    %c0_i32_0 = arith.constant 0 : i32
    %c0_i32_1 = arith.constant 0 : i32
    return %arg0, %c0_i32, %c0_i32_0 : i32, i32, i32
  }
  func.func @transform_1(%arg0: i32) -> (i32, i32, i32) {
    %c0_i32 = arith.constant 0 : i32
    %c0_i32_0 = arith.constant 0 : i32
    %c0_i32_1 = arith.constant 0 : i32
    return %arg0, %c0_i32, %c0_i32_0 : i32, i32, i32
  }
  func.func @transform_2(%arg0: i32) -> (i32, i32) {
    %c0_i32 = arith.constant 0 : i32
    %c0_i32_0 = arith.constant 0 : i32
    %c0_i32_1 = arith.constant 0 : i32
    return %c0_i32, %c0_i32_0 : i32, i32
  }
  func.func @transform_3(%arg0: i32) -> (i32, i32) {
    %c0_i32 = arith.constant 0 : i32
    %c0_i32_0 = arith.constant 0 : i32
    %c0_i32_1 = arith.constant 0 : i32
    return %c0_i32, %c0_i32_0 : i32, i32
  }
  func.func @transform_4(%arg0: i32) -> (i32, i32) {
    %c0_i32 = arith.constant 0 : i32
    %c0_i32_0 = arith.constant 0 : i32
    %c0_i32_1 = arith.constant 0 : i32
    return %c0_i32, %c0_i32_0 : i32, i32
  }
  func.func @transform_5(%arg0: i32) -> (i32, i32) {
    %c0_i32 = arith.constant 0 : i32
    %c0_i32_0 = arith.constant 0 : i32
    %c0_i32_1 = arith.constant 0 : i32
    return %c0_i32, %c0_i32_0 : i32, i32
  }
  func.func @transform_6(%arg0: i32) -> (i32, i32) {
    %c0_i32 = arith.constant 0 : i32
    %c0_i32_0 = arith.constant 0 : i32
    %c0_i32_1 = arith.constant 0 : i32
    return %c0_i32, %c0_i32_0 : i32, i32
  }
  func.func @transform_7(%arg0: i32) -> (i32, i32) {
    %c0_i32 = arith.constant 0 : i32
    %c0_i32_0 = arith.constant 0 : i32
    %c0_i32_1 = arith.constant 0 : i32
    return %c0_i32, %c0_i32_0 : i32, i32
  }
  func.func @transform_8(%arg0: i32) -> (i32, i32) {
    %c0_i32 = arith.constant 0 : i32
    %c0_i32_0 = arith.constant 0 : i32
    %c0_i32_1 = arith.constant 0 : i32
    return %c0_i32, %c0_i32_0 : i32, i32
  }
  func.func @transform_9(%arg0: i32) -> (i32, i32, i32) {
    %c0_i32 = arith.constant 0 : i32
    %c0_i32_0 = arith.constant 0 : i32
    %c0_i32_1 = arith.constant 0 : i32
    return %arg0, %c0_i32, %c0_i32_0 : i32, i32, i32
  }
}

module attributes {stable_mosaic.version = 11 : i64} {
  func.func @_decoder_kernel(%arg0: i32, %arg1: memref<32x32xbf16, #tpu.memory_space<vmem>>, %arg2: memref<32x64xbf16, #tpu.memory_space<vmem>>, %arg3: memref<64x64xbf16, #tpu.memory_space<vmem>>, %arg4: memref<64x64xbf16, #tpu.memory_space<vmem>>, %arg5: memref<64x64xbf16, #tpu.memory_space<vmem>>, %arg6: memref<64x12xbf16, #tpu.memory_space<vmem>>, %arg7: memref<4x64xf32, #tpu.memory_space<vmem>>, %arg8: memref<1x12xf32, #tpu.memory_space<vmem>>, %arg9: memref<32x12xf32, #tpu.memory_space<vmem>>) attributes {dimension_semantics = [#tpu.dimension_semantics<parallel>], iteration_bounds = array<i64: 1>, scalar_prefetch = 0 : i64, scratch_operands = 0 : i64, tpu.core_type = #tpu.core_type<tc>, window_params = [{transform_indices = @transform_0, window_bounds = array<i64: 32, 32>}, {pipeline_mode = #tpu.pipeline_mode<synchronous>, transform_indices = @transform_1, window_bounds = array<i64: 32, 64>}, {pipeline_mode = #tpu.pipeline_mode<synchronous>, transform_indices = @transform_2, window_bounds = array<i64: 64, 64>}, {pipeline_mode = #tpu.pipeline_mode<synchronous>, transform_indices = @transform_3, window_bounds = array<i64: 64, 64>}, {pipeline_mode = #tpu.pipeline_mode<synchronous>, transform_indices = @transform_4, window_bounds = array<i64: 64, 64>}, {pipeline_mode = #tpu.pipeline_mode<synchronous>, transform_indices = @transform_5, window_bounds = array<i64: 64, 12>}, {pipeline_mode = #tpu.pipeline_mode<synchronous>, transform_indices = @transform_6, window_bounds = array<i64: 4, 64>}, {pipeline_mode = #tpu.pipeline_mode<synchronous>, transform_indices = @transform_7, window_bounds = array<i64: 1, 12>}, {transform_indices = @transform_8, window_bounds = array<i64: 32, 12>}]} {
    %c0 = arith.constant 0 : index
    %c0_0 = arith.constant 0 : index
    %0 = vector.load %arg7[%c0, %c0_0] : memref<4x64xf32, #tpu.memory_space<vmem>>, vector<4x64xf32>
    %c0_1 = arith.constant 0 : index
    %c0_2 = arith.constant 0 : index
    %1 = vector.load %arg1[%c0_1, %c0_2] : memref<32x32xbf16, #tpu.memory_space<vmem>>, vector<32x32xbf16>
    %c0_3 = arith.constant 0 : index
    %c0_4 = arith.constant 0 : index
    %2 = vector.load %arg2[%c0_3, %c0_4] : memref<32x64xbf16, #tpu.memory_space<vmem>>, vector<32x64xbf16>
    %cst = arith.constant dense<0.000000e+00> : vector<32x64xf32>
    %3 = tpu.matmul %1, %2, %cst {dimension_numbers = #tpu.dot_dimension_numbers<[1], [0], [0], [1], [0, 0, 1, 1], [], []>} : vector<32x32xbf16>, vector<32x64xbf16>, vector<32x64xf32> -> vector<32x64xf32>
    %4 = vector.extract_strided_slice %0 {offsets = [0, 0], sizes = [1, 64], strides = [1, 1]} : vector<4x64xf32> to vector<1x64xf32>
    %5 = vector.broadcast %4 : vector<1x64xf32> to vector<32x64xf32>
    %6 = arith.addf %3, %5 : vector<32x64xf32>
    %cst_5 = arith.constant 0.000000e+00 : f32
    %7 = vector.broadcast %cst_5 : f32 to vector<32x64xf32>
    %8 = arith.maximumf %6, %7 : vector<32x64xf32>
    %9 = arith.truncf %8 : vector<32x64xf32> to vector<32x64xbf16>
    %c0_6 = arith.constant 0 : index
    %c0_7 = arith.constant 0 : index
    %10 = vector.load %arg3[%c0_6, %c0_7] : memref<64x64xbf16, #tpu.memory_space<vmem>>, vector<64x64xbf16>
    %cst_8 = arith.constant dense<0.000000e+00> : vector<32x64xf32>
    %11 = tpu.matmul %9, %10, %cst_8 {dimension_numbers = #tpu.dot_dimension_numbers<[1], [0], [0], [1], [0, 0, 1, 1], [], []>} : vector<32x64xbf16>, vector<64x64xbf16>, vector<32x64xf32> -> vector<32x64xf32>
    %12 = vector.extract_strided_slice %0 {offsets = [1, 0], sizes = [1, 64], strides = [1, 1]} : vector<4x64xf32> to vector<1x64xf32>
    %13 = vector.broadcast %12 : vector<1x64xf32> to vector<32x64xf32>
    %14 = arith.addf %11, %13 : vector<32x64xf32>
    %cst_9 = arith.constant 0.000000e+00 : f32
    %15 = vector.broadcast %cst_9 : f32 to vector<32x64xf32>
    %16 = arith.maximumf %14, %15 : vector<32x64xf32>
    %17 = arith.truncf %16 : vector<32x64xf32> to vector<32x64xbf16>
    %c0_10 = arith.constant 0 : index
    %c0_11 = arith.constant 0 : index
    %18 = vector.load %arg4[%c0_10, %c0_11] : memref<64x64xbf16, #tpu.memory_space<vmem>>, vector<64x64xbf16>
    %cst_12 = arith.constant dense<0.000000e+00> : vector<32x64xf32>
    %19 = tpu.matmul %17, %18, %cst_12 {dimension_numbers = #tpu.dot_dimension_numbers<[1], [0], [0], [1], [0, 0, 1, 1], [], []>} : vector<32x64xbf16>, vector<64x64xbf16>, vector<32x64xf32> -> vector<32x64xf32>
    %20 = vector.extract_strided_slice %0 {offsets = [2, 0], sizes = [1, 64], strides = [1, 1]} : vector<4x64xf32> to vector<1x64xf32>
    %21 = vector.broadcast %20 : vector<1x64xf32> to vector<32x64xf32>
    %22 = arith.addf %19, %21 : vector<32x64xf32>
    %cst_13 = arith.constant 0.000000e+00 : f32
    %23 = vector.broadcast %cst_13 : f32 to vector<32x64xf32>
    %24 = arith.maximumf %22, %23 : vector<32x64xf32>
    %25 = arith.truncf %24 : vector<32x64xf32> to vector<32x64xbf16>
    %c0_14 = arith.constant 0 : index
    %c0_15 = arith.constant 0 : index
    %26 = vector.load %arg5[%c0_14, %c0_15] : memref<64x64xbf16, #tpu.memory_space<vmem>>, vector<64x64xbf16>
    %cst_16 = arith.constant dense<0.000000e+00> : vector<32x64xf32>
    %27 = tpu.matmul %25, %26, %cst_16 {dimension_numbers = #tpu.dot_dimension_numbers<[1], [0], [0], [1], [0, 0, 1, 1], [], []>} : vector<32x64xbf16>, vector<64x64xbf16>, vector<32x64xf32> -> vector<32x64xf32>
    %28 = vector.extract_strided_slice %0 {offsets = [3, 0], sizes = [1, 64], strides = [1, 1]} : vector<4x64xf32> to vector<1x64xf32>
    %29 = vector.broadcast %28 : vector<1x64xf32> to vector<32x64xf32>
    %30 = arith.addf %27, %29 : vector<32x64xf32>
    %cst_17 = arith.constant 0.000000e+00 : f32
    %31 = vector.broadcast %cst_17 : f32 to vector<32x64xf32>
    %32 = arith.maximumf %30, %31 : vector<32x64xf32>
    %33 = arith.truncf %32 : vector<32x64xf32> to vector<32x64xbf16>
    %c0_18 = arith.constant 0 : index
    %c0_19 = arith.constant 0 : index
    %34 = vector.load %arg6[%c0_18, %c0_19] : memref<64x12xbf16, #tpu.memory_space<vmem>>, vector<64x12xbf16>
    %cst_20 = arith.constant dense<0.000000e+00> : vector<32x12xf32>
    %35 = tpu.matmul %33, %34, %cst_20 {dimension_numbers = #tpu.dot_dimension_numbers<[1], [0], [0], [1], [0, 0, 1, 1], [], []>} : vector<32x64xbf16>, vector<64x12xbf16>, vector<32x12xf32> -> vector<32x12xf32>
    %c0_21 = arith.constant 0 : index
    %c0_22 = arith.constant 0 : index
    %36 = vector.load %arg8[%c0_21, %c0_22] : memref<1x12xf32, #tpu.memory_space<vmem>>, vector<1x12xf32>
    %37 = vector.broadcast %36 : vector<1x12xf32> to vector<32x12xf32>
    %38 = arith.addf %35, %37 : vector<32x12xf32>
    %c0_23 = arith.constant 0 : index
    %c0_24 = arith.constant 0 : index
    %39 = vector.load %arg9[%c0_23, %c0_24] : memref<32x12xf32, #tpu.memory_space<vmem>>, vector<32x12xf32>
    tpu.vector_store %arg9[%c0_23, %c0_24], %38 {strides = array<i32>} : memref<32x12xf32, #tpu.memory_space<vmem>>, vector<32x12xf32>,
    return
  }
  func.func @transform_0(%arg0: i32) -> (i32, i32) {
    %c0_i32 = arith.constant 0 : i32
    %c0_i32_0 = arith.constant 0 : i32
    return %arg0, %c0_i32 : i32, i32
  }
  func.func @transform_1(%arg0: i32) -> (i32, i32) {
    %c0_i32 = arith.constant 0 : i32
    %c0_i32_0 = arith.constant 0 : i32
    %c0_i32_1 = arith.constant 0 : i32
    return %c0_i32, %c0_i32_0 : i32, i32
  }
  func.func @transform_2(%arg0: i32) -> (i32, i32) {
    %c0_i32 = arith.constant 0 : i32
    %c0_i32_0 = arith.constant 0 : i32
    %c0_i32_1 = arith.constant 0 : i32
    return %c0_i32, %c0_i32_0 : i32, i32
  }
  func.func @transform_3(%arg0: i32) -> (i32, i32) {
    %c0_i32 = arith.constant 0 : i32
    %c0_i32_0 = arith.constant 0 : i32
    %c0_i32_1 = arith.constant 0 : i32
    return %c0_i32, %c0_i32_0 : i32, i32
  }
  func.func @transform_4(%arg0: i32) -> (i32, i32) {
    %c0_i32 = arith.constant 0 : i32
    %c0_i32_0 = arith.constant 0 : i32
    %c0_i32_1 = arith.constant 0 : i32
    return %c0_i32, %c0_i32_0 : i32, i32
  }
  func.func @transform_5(%arg0: i32) -> (i32, i32) {
    %c0_i32 = arith.constant 0 : i32
    %c0_i32_0 = arith.constant 0 : i32
    %c0_i32_1 = arith.constant 0 : i32
    return %c0_i32, %c0_i32_0 : i32, i32
  }
  func.func @transform_6(%arg0: i32) -> (i32, i32) {
    %c0_i32 = arith.constant 0 : i32
    %c0_i32_0 = arith.constant 0 : i32
    %c0_i32_1 = arith.constant 0 : i32
    return %c0_i32, %c0_i32_0 : i32, i32
  }
  func.func @transform_7(%arg0: i32) -> (i32, i32) {
    %c0_i32 = arith.constant 0 : i32
    %c0_i32_0 = arith.constant 0 : i32
    %c0_i32_1 = arith.constant 0 : i32
    return %c0_i32, %c0_i32_0 : i32, i32
  }
  func.func @transform_8(%arg0: i32) -> (i32, i32) {
    %c0_i32 = arith.constant 0 : i32
    %c0_i32_0 = arith.constant 0 : i32
    return %arg0, %c0_i32 : i32, i32
  }
}

</mosaic_0001>

<llo_original>
// kernel: _lambda_.12
$region0: #{_lambda_.12}
  #allocation0 [shape = 'u32[]', space=smem, size = 0x4, offset = 0x4, fixed_abs, tag = 'smem constant byte address 0x4 - core index']
  #allocation1 [shape = 'u32[144,128]{1,0:T(1,128)}', space=vmem, size = 0x12000, scoped, tag = 'internal scratch']
  %s0 = inlined_call_operand.vmem [shape: bf16[16,8], index: 0, kind: input, shape index: {}]
  %s1 = inlined_call_operand.vmem [shape: bf16[8,96], index: 1, kind: input, shape index: {}]
  %s2 = inlined_call_operand.vmem [shape: f32[1,96], index: 2, kind: input, shape index: {}]
  %s3 = inlined_call_operand.vmem [shape: f32[16,96], index: 3, kind: output, shape index: {}]
  %s4 = sld [smem:[#allocation0]]
  $region22: #{_lambda_.12} parent=0
    _
  %s6 = ssub.s32 1, %s4
  %s7 = scalar_select 0, %s6, %s4
  // Predicated region
  $region2: #{_lambda_.12} parent=0 // pred_check
    _
  $region3: #{_lambda_.12} parent=0 // pred_check_branch
    %9 = sbr.rel (0) target = $region5
  $region4: #{_lambda_.12} parent=0 // pred_region
    _
  $region5: #{_lambda_.12} parent=0 // pred_fallthru
    _
  // Predicated region
  $region6: #{_lambda_.12} parent=0 // pred_check
    _
  $region7: #{_lambda_.12} parent=0 // pred_check_branch
    %11 = sbr.rel (0) target = $region9
  $region8: #{_lambda_.12} parent=0 // pred_region
    _
  $region9: #{_lambda_.12} parent=0 // pred_fallthru
    _
  // Predicated region
  $region10: #{_lambda_.12} parent=0 // pred_check
    _
  $region11: #{_lambda_.12} parent=0 // pred_check_branch
    %13 = sbr.rel (0) target = $region13
  $region12: #{_lambda_.12} parent=0 // pred_region
    _
  $region13: #{_lambda_.12} parent=0 // pred_fallthru
    _
  %v15 = vld [vmem:[%s0] sm:$0xf]
  %v16 = vld [vmem:[%s0 + $0x4] sm:$0xf]
  %v17 = vld [vmem:[%s1] sm:$0xf]
  %v18 = vld [vmem:[%s2] sm:$0x1]
  %v20 = vlaneseq
  %v21 = vshrl.u32 %v20, 7
  %v22 = vsub.s32 0, %v21
  %v23 = vrot.slane %v18, %v22
  %v27 = vunpack.c.l.b16 %v15
  %v28 = vunpack.c.l.b16 %v16
  %v29 = vpack.c.b16 %v28, %v27
  %vm30 = vcmask 64512
  %v32 = vsel %vm30, %v29, 0
  %vm34 = vcmask 1043456
  %v36 = vsel %vm34, %v17, 0
  %38 = vmatprep.subr.bf16.mxu0 0
  %39 = vmatpush1.bf16.msra.mxu0 %v36
  %40 = vmatprep.subr.bf16.mxu0 0
  %41 = vmatpush1.bf16.msra.mxu0 0
  %42 = vmatprep.subr.bf16.mxu0 0
  %43 = vmatpush1.bf16.msra.mxu0 0
  %44 = vmatprep.subr.bf16.mxu0 0
  %45 = vmatpush1.bf16.msra.mxu0 0
  %46 = vmatprep.subr.bf16.mxu0 0
  %47 = vmatpush1.bf16.msra.mxu0 0
  %48 = vmatprep.subr.bf16.mxu0 0
  %49 = vmatpush1.bf16.msra.mxu0 0
  %50 = vmatprep.subr.bf16.mxu0 0
  %51 = vmatpush1.bf16.msra.mxu0 0
  %52 = vmatprep.subr.bf16.mxu0 0
  %53 = vmatpush1.bf16.msra.mxu0 0
  %54 = vmatprep.subr.bf16.mxu0 0
  %55 = vmatpush1.bf16.msra.mxu0 0
  %56 = vmatprep.subr.bf16.mxu0 0
  %57 = vmatpush1.bf16.msra.mxu0 0
  %58 = vmatprep.subr.bf16.mxu0 0
  %59 = vmatpush1.bf16.msra.mxu0 0
  %60 = vmatprep.subr.bf16.mxu0 0
  %61 = vmatpush1.bf16.msra.mxu0 0
  %62 = vmatprep.subr.bf16.mxu0 0
  %63 = vmatpush1.bf16.msra.mxu0 0
  %64 = vmatprep.subr.bf16.mxu0 0
  %65 = vmatpush1.bf16.msra.mxu0 0
  %66 = vmatprep.subr.bf16.mxu0 0
  %67 = vmatpush1.bf16.msra.mxu0 0
  %68 = vmatprep.subr.bf16.mxu0 0
  %69 = vmatpush1.bf16.msra.mxu0 0
  %70 = vmatprep.mubr.bf16.mxu0 0
  %71 = vmatmul.mubr.bf16.gmra.mrb[0].mxu0 %v32
  %v72 = vpop.f32.mrb[0].mxu0
  %v73 = vadd.f32 %v23, %v72
  %v74 = vpop.f32.mrb[0].mxu0
  %v75 = vpop.f32.mrb[0].mxu0
  %v76 = vadd.f32 %v23, %v75
  %v77 = vpop.f32.mrb[0].mxu0
  %78 = vdwg.mxu0
  %vm79 = vcmask 785408
  %80 = vst.msk [vmem:[%s3] sm:$0xff] %vm79, %v73
  %81 = vst.msk [vmem:[%s3 + $0x8] sm:$0xff] %vm79, %v76
  // Predicated region
  $region14: #{_lambda_.12} parent=0 // pred_check
    _
  $region15: #{_lambda_.12} parent=0 // pred_check_branch
    %83 = sbr.rel (0) target = $region17
  $region16: #{_lambda_.12} parent=0 // pred_region
    _
  $region17: #{_lambda_.12} parent=0 // pred_fallthru
    _
  // Predicated region
  $region18: #{_lambda_.12} parent=0 // pred_check
    _
  $region19: #{_lambda_.12} parent=0 // pred_check_branch
    %85 = sbr.rel (0) target = $region21
  $region20: #{_lambda_.12} parent=0 // pred_region
    _
  $region21: #{_lambda_.12} parent=0 // pred_fallthru
    _

// kernel: _lambda_.11
$region0: #{_lambda_.11}
  #allocation0 [shape = 'u32[]', space=smem, size = 0x4, offset = 0x4, fixed_abs, tag = 'smem constant byte address 0x4 - core index']
  #allocation1 [shape = 'u32[144,128]{1,0:T(1,128)}', space=vmem, size = 0x12000, scoped, tag = 'internal scratch']
  %s0 = inlined_call_operand.vmem [shape: bf16[2,8,16,32], index: 0, kind: input, shape index: {}]
  %s1 = inlined_call_operand.vmem [shape: bf16[96,32], index: 1, kind: input, shape index: {}]
  %s2 = inlined_call_operand.vmem [shape: bf16[96,32], index: 2, kind: input, shape index: {}]
  %s3 = inlined_call_operand.vmem [shape: f32[1,32], index: 3, kind: input, shape index: {}]
  %s4 = inlined_call_operand.vmem [shape: f32[1,32], index: 4, kind: input, shape index: {}]
  %s5 = inlined_call_operand.vmem [shape: f32[2,6,16,32], index: 5, kind: output, shape index: {}]
  %s6 = sld [smem:[#allocation0]]
  $region53: #{_lambda_.11} parent=0
    _
  %s8 = ssub.s32 1, %s6
  %s9 = scalar_select 0, %s8, %s6
  loop: start=0, step=1, limit=4
  $region2: #{_lambda_.11} parent=0 // loop_pre_header
    _
  $region3: #{_lambda_.11} parent=0 // loop_header
    %s11 = sphi 0, %s15
    %p12 = scmp.ge.s32.totalorder %s11, 4
    %s18 = sphi 0, %s30
    %s19 = sphi 0, %s26
    %s20 = sphi 0, %s18
    %s21 = sphi 0, %s19
    %s22 = sphi 0, %s20
    %s23 = sphi 0, %s21
    %s35 = sphi 0, %s37
    %s38 = sphi 0, %s35
    %s39 = sphi 0, %s38
    %s55 = sphi 0, %s39
    %s59 = sphi 0, %s59
    %s61 = sphi 0, %s59
    %s62 = sphi 0, %s61
    %s76 = sphi 0, %s62
    %s80 = sphi 0, %s80
    %s82 = sphi 0, %s80
    %s83 = sphi 0, %s82
    %s97 = sphi 0, %s83
    %s101 = sphi 0, %s101
    %s103 = sphi 0, %s101
    %s104 = sphi 0, %s103
    %s118 = sphi 0, %s104
    %s122 = sphi 0, %s122
    %s124 = sphi 0, %s122
    %s125 = sphi 0, %s124
    %s139 = sphi 0, %s125
    %s147 = sphi 0, %s149
    %s150 = sphi 0, %s147
    %s151 = sphi 0, %s150
    %s167 = sphi 0, %s151
  $region4: #{_lambda_.11} parent=0 // loop_header_branch
    %14 = sbr.rel (%p12) target = $region8
  $region5: #{_lambda_.11} parent=0 // loop_body
    %s16 = ssub.s32 %s11, 1
    %s17 = ssub.s32 %s11, 2
    %s24 = sadd.s32 1, %s19
    %p25 = scmp.ge.s32.totalorder %s24, 1
    %s26 = scalar_select %p25, 0, %s24
    %s27 = sadd.s32 1, %s18
    %s28 = scalar_select %p25, %s27, %s18
    %p29 = scmp.ge.s32.totalorder %s28, 2
    %s30 = scalar_select %p29, 0, %s28
    %s31 = ssub.s32 %s18, %s30
    %s32 = ssub.s32 %s19, %s26
    %s33 = sor.u32 %s31, %s32
    %p34 = scmp.eq.s32.totalorder %s33, 0
    %s36 = sadd.s32 %s35, 1
    %s37 = scalar_select %p34, %s35, %s36
    %p40 = pneg %p34
    %p41 = scmp.eq.s32.totalorder %s11, 1
    %p42 = por %p40, %p41
    %p43 = scmp.ne.s32.totalorder %s35, %s38
    %p44 = scmp.eq.s32.totalorder %s11, 0
    %p45 = por %p43, %p44
    %p46 = scmp.ne.s32.totalorder %s35, %s38
    %p47 = scmp.eq.s32.totalorder %s16, 1
    %p48 = por %p46, %p47
    %p49 = scmp.ne.s32.totalorder %s38, %s39
    %p50 = scmp.eq.s32.totalorder %s16, 0
    %p51 = por %p49, %p50
    %p52 = scmp.ne.s32.totalorder %s38, %s39
    %p53 = scmp.eq.s32.totalorder %s17, 1
    %p54 = por %p52, %p53
    %p56 = scmp.ne.s32.totalorder %s39, %s55
    %p57 = scmp.eq.s32.totalorder %s17, 0
    %p58 = por %p56, %p57
    %s60 = sadd.s32 %s59, 1
    %p63 = scmp.eq.s32.totalorder %s11, 1
    %p64 = scmp.ne.s32.totalorder %s59, %s61
    %p65 = scmp.eq.s32.totalorder %s11, 0
    %p66 = por %p64, %p65
    %p67 = scmp.ne.s32.totalorder %s59, %s61
    %p68 = scmp.eq.s32.totalorder %s16, 1
    %p69 = por %p67, %p68
    %p70 = scmp.ne.s32.totalorder %s61, %s62
    %p71 = scmp.eq.s32.totalorder %s16, 0
    %p72 = por %p70, %p71
    %p73 = scmp.ne.s32.totalorder %s61, %s62
    %p74 = scmp.eq.s32.totalorder %s17, 1
    %p75 = por %p73, %p74
    %p77 = scmp.ne.s32.totalorder %s62, %s76
    %p78 = scmp.eq.s32.totalorder %s17, 0
    %p79 = por %p77, %p78
    %s81 = sadd.s32 %s80, 1
    %p84 = scmp.eq.s32.totalorder %s11, 1
    %p85 = scmp.ne.s32.totalorder %s80, %s82
    %p86 = scmp.eq.s32.totalorder %s11, 0
    %p87 = por %p85, %p86
    %p88 = scmp.ne.s32.totalorder %s80, %s82
    %p89 = scmp.eq.s32.totalorder %s16, 1
    %p90 = por %p88, %p89
    %p91 = scmp.ne.s32.totalorder %s82, %s83
    %p92 = scmp.eq.s32.totalorder %s16, 0
    %p93 = por %p91, %p92
    %p94 = scmp.ne.s32.totalorder %s82, %s83
    %p95 = scmp.eq.s32.totalorder %s17, 1
    %p96 = por %p94, %p95
    %p98 = scmp.ne.s32.totalorder %s83, %s97
    %p99 = scmp.eq.s32.totalorder %s17, 0
    %p100 = por %p98, %p99
    %s102 = sadd.s32 %s101, 1
    %p105 = scmp.eq.s32.totalorder %s11, 1
    %p106 = scmp.ne.s32.totalorder %s101, %s103
    %p107 = scmp.eq.s32.totalorder %s11, 0
    %p108 = por %p106, %p107
    %p109 = scmp.ne.s32.totalorder %s101, %s103
    %p110 = scmp.eq.s32.totalorder %s16, 1
    %p111 = por %p109, %p110
    %p112 = scmp.ne.s32.totalorder %s103, %s104
    %p113 = scmp.eq.s32.totalorder %s16, 0
    %p114 = por %p112, %p113
    %p115 = scmp.ne.s32.totalorder %s103, %s104
    %p116 = scmp.eq.s32.totalorder %s17, 1
    %p117 = por %p115, %p116
    %p119 = scmp.ne.s32.totalorder %s104, %s118
    %p120 = scmp.eq.s32.totalorder %s17, 0
    %p121 = por %p119, %p120
    %s123 = sadd.s32 %s122, 1
    %p126 = scmp.eq.s32.totalorder %s11, 1
    %p127 = scmp.ne.s32.totalorder %s122, %s124
    %p128 = scmp.eq.s32.totalorder %s11, 0
    %p129 = por %p127, %p128
    %p130 = scmp.ne.s32.totalorder %s122, %s124
    %p131 = scmp.eq.s32.totalorder %s16, 1
    %p132 = por %p130, %p131
    %p133 = scmp.ne.s32.totalorder %s124, %s125
    %p134 = scmp.eq.s32.totalorder %s16, 0
    %p135 = por %p133, %p134
    %p136 = scmp.ne.s32.totalorder %s124, %s125
    %p137 = scmp.eq.s32.totalorder %s17, 1
    %p138 = por %p136, %p137
    %p140 = scmp.ne.s32.totalorder %s125, %s139
    %p141 = scmp.eq.s32.totalorder %s17, 0
    %p142 = por %p140, %p141
    %s143 = ssub.s32 %s18, %s30
    %s144 = ssub.s32 %s19, %s26
    %s145 = sor.u32 %s143, %s144
    %p146 = scmp.eq.s32.totalorder %s145, 0
    %s148 = sadd.s32 %s147, 1
    %s149 = scalar_select %p146, %s147, %s148
    %p152 = pneg %p146
    %p153 = scmp.eq.s32.totalorder %s11, 1
    %p154 = por %p152, %p153
    %p155 = scmp.ne.s32.totalorder %s147, %s150
    %p156 = scmp.eq.s32.totalorder %s11, 0
    %p157 = por %p155, %p156
    %p158 = scmp.ne.s32.totalorder %s147, %s150
    %p159 = scmp.eq.s32.totalorder %s16, 1
    %p160 = por %p158, %p159
    %p161 = scmp.ne.s32.totalorder %s150, %s151
    %p162 = scmp.eq.s32.totalorder %s16, 0
    %p163 = por %p161, %p162
    %p164 = scmp.ne.s32.totalorder %s150, %s151
    %p165 = scmp.eq.s32.totalorder %s17, 1
    %p166 = por %p164, %p165
    %p168 = scmp.ne.s32.totalorder %s151, %s167
    %p169 = scmp.eq.s32.totalorder %s17, 0
    %p170 = por %p168, %p169
    %p171 = scmp.le.s32.totalorder 1, %s11
    %p172 = scmp.lt.s32.totalorder %s11, 3
    %p173 = pnand %p171, %p172
    %p174 = pneg %p173
    // Predicated region
    $region9: #{_lambda_.11} parent=5 // pred_check
      _
    $region10: #{_lambda_.11} parent=5 // pred_check_branch
      %176 = sbr.rel (%p173) target = $region12
    $region11: #{_lambda_.11} parent=5 // pred_region
      %s177 = ssub.s32 %s11, 1
      // Predicated region
      $region13: #{_lambda_.11} parent=11 // pred_check
        %p178 = pneg %p72
      $region14: #{_lambda_.11} parent=11 // pred_check_branch
        %180 = sbr.rel (%p178) target = $region16
      $region15: #{_lambda_.11} parent=11 // pred_region
        _
      $region16: #{_lambda_.11} parent=11 // pred_fallthru
        _
      // Predicated region
      $region17: #{_lambda_.11} parent=11 // pred_check
        %p181 = pneg %p93
      $region18: #{_lambda_.11} parent=11 // pred_check_branch
        %183 = sbr.rel (%p181) target = $region20
      $region19: #{_lambda_.11} parent=11 // pred_region
        _
      $region20: #{_lambda_.11} parent=11 // pred_fallthru
        _
      // Predicated region
      $region21: #{_lambda_.11} parent=11 // pred_check
        %p184 = pneg %p114
      $region22: #{_lambda_.11} parent=11 // pred_check_branch
        %186 = sbr.rel (%p184) target = $region24
      $region23: #{_lambda_.11} parent=11 // pred_region
        _
      $region24: #{_lambda_.11} parent=11 // pred_fallthru
        _
      // Predicated region
      $region25: #{_lambda_.11} parent=11 // pred_check
        %p187 = pneg %p135
      $region26: #{_lambda_.11} parent=11 // pred_check_branch
        %189 = sbr.rel (%p187) target = $region28
      $region27: #{_lambda_.11} parent=11 // pred_region
        _
      $region28: #{_lambda_.11} parent=11 // pred_fallthru
        _
    $region12: #{_lambda_.11} parent=5 // pred_fallthru
      _
    %p190 = scmp.lt.s32.totalorder %s11, 2
    // Predicated region
    $region29: #{_lambda_.11} parent=5 // pred_check
      %p191 = pneg %p190
    $region30: #{_lambda_.11} parent=5 // pred_check_branch
      %193 = sbr.rel (%p191) target = $region32
    $region31: #{_lambda_.11} parent=5 // pred_region
      // Predicated region
      $region33: #{_lambda_.11} parent=31 // pred_check
        %p194 = pneg %p45
      $region34: #{_lambda_.11} parent=31 // pred_check_branch
        %196 = sbr.rel (%p194) target = $region36
      $region35: #{_lambda_.11} parent=31 // pred_region
        %s197 = smul.u32 2, %s19
        %p198 = scmp.lt.s32.totalorder %s18, 1
        %s199 = scalar_select %p198, %s18, 1
        %p200 = scmp.lt.s32.totalorder %s197, 1
        %s201 = scalar_select %p200, %s197, 1
        %s202 = smul.addr %s199, 16
        %s203 = sadd.s32 %s201, %s202
        %s204 = smul.addr %s203, 4
        %s205 = scalar_lea.vmem %s0, %s204
        %s206 = smul.u32 2, %s19
      $region36: #{_lambda_.11} parent=31 // pred_fallthru
        _
    $region32: #{_lambda_.11} parent=5 // pred_fallthru
      _
    %p207 = scmp.le.s32.totalorder 1, %s11
    %p208 = scmp.lt.s32.totalorder %s11, 3
    %p209 = pnand %p207, %p208
    %p210 = pneg %p209
    // Predicated region
    $region37: #{_lambda_.11} parent=5 // pred_check
      _
    $region38: #{_lambda_.11} parent=5 // pred_check_branch
      %212 = sbr.rel (%p209) target = $region40
    $region39: #{_lambda_.11} parent=5 // pred_region
      %s213 = ssub.s32 %s11, 1
      %s214 = smul.u32 2, %s21
      %p215 = scmp.lt.s32.totalorder %s20, 1
      %s216 = scalar_select %p215, %s20, 1
      %p217 = scmp.lt.s32.totalorder %s214, 1
      %s218 = scalar_select %p217, %s214, 1
      %s219 = smul.addr %s216, 16
      %s220 = sadd.s32 %s218, %s219
      %s221 = smul.addr %s220, 4
      %s222 = scalar_lea.vmem %s0, %s221
      %p223 = pneg %p51
      %p224 = pneg %p48
      %p225 = pneg %p72
      %p226 = pneg %p69
      %p227 = pneg %p93
      %p228 = pneg %p90
      %p229 = pneg %p114
      %p230 = pneg %p111
      %p231 = pneg %p135
      %p232 = pneg %p132
      %p233 = pneg %p163
      %p234 = pneg %p160
      %s235 = smul.u32 2, %s21
      %p236 = scmp.lt.s32.totalorder %s20, 1
      %s237 = scalar_select %p236, %s20, 1
      %p238 = scmp.lt.s32.totalorder %s235, 1
      %s239 = scalar_select %p238, %s235, 1
      %s240 = smul.addr %s237, 12
      %s241 = sadd.s32 %s239, %s240
      %s242 = smul.addr %s241, 8
      %s243 = scalar_lea.vmem %s5, %s242
      %s244 = smul.u32 2, %s21
      %p245 = scmp.lt.s32.totalorder %s20, 1
      %s246 = scalar_select %p245, %s20, 1
      %p247 = scmp.lt.s32.totalorder %s244, 1
      %s248 = scalar_select %p247, %s244, 1
      %s249 = smul.addr %s246, 16
      %s250 = sadd.s32 %s248, %s249
      %s251 = smul.addr %s250, 4
      %s252 = scalar_lea.vmem %s0, %s251
      %s253 = smul.u32 2, %s21
      %s254 = smul.u32 2, %s21
      %p255 = scmp.lt.s32.totalorder %s20, 1
      %s256 = scalar_select %p255, %s20, 1
      %p257 = scmp.lt.s32.totalorder %s254, 1
      %s258 = scalar_select %p257, %s254, 1
      %s259 = smul.addr %s256, 12
      %s260 = sadd.s32 %s258, %s259
      %s261 = smul.addr %s260, 8
      %s262 = scalar_lea.vmem %s5, %s261
      %s263 = smul.u32 2, %s21
      %v265 = vld [vmem:[%s252] sm:$0xf]
      %v266 = vld [vmem:[%s252 + $0x4] sm:$0xf]
      %v267 = vld [vmem:[%s252 + $0x8] sm:$0xf]
      %v268 = vld [vmem:[%s252 + $0xc] sm:$0xf]
      %v269 = vld [vmem:[%s252 + $0x10] sm:$0xf]
      %v270 = vld [vmem:[%s252 + $0x14] sm:$0xf]
      %v271 = vld [vmem:[%s252 + $0x18] sm:$0xf]
      %v272 = vld [vmem:[%s252 + $0x1c] sm:$0xf]
      %v273 = vld [vmem:[%s252 + $0x20] sm:$0xf]
      %v274 = vld [vmem:[%s252 + $0x24] sm:$0xf]
      %v275 = vld [vmem:[%s252 + $0x28] sm:$0xf]
      %v276 = vld [vmem:[%s252 + $0x2c] sm:$0xf]
      %s277 = scalar_lea.vmem %s252, 8
      %v278 = vld [vmem:[%s277] sm:$0xf]
      %v279 = vld [vmem:[%s277 + $0x4] sm:$0xf]
      %v280 = vld [vmem:[%s277 + $0x8] sm:$0xf]
      %v281 = vld [vmem:[%s277 + $0xc] sm:$0xf]
      %v282 = vld [vmem:[%s277 + $0x10] sm:$0xf]
      %v283 = vld [vmem:[%s277 + $0x14] sm:$0xf]
      %v284 = vld [vmem:[%s277 + $0x18] sm:$0xf]
      %v285 = vld [vmem:[%s277 + $0x1c] sm:$0xf]
      %v286 = vld [vmem:[%s277 + $0x20] sm:$0xf]
      %v287 = vld [vmem:[%s277 + $0x24] sm:$0xf]
      %v288 = vld [vmem:[%s277 + $0x28] sm:$0xf]
      %v289 = vld [vmem:[%s277 + $0x2c] sm:$0xf]
      %s290 = scalar_lea.vmem %s252, 16
      %v291 = vld [vmem:[%s290] sm:$0xf]
      %v292 = vld [vmem:[%s290 + $0x4] sm:$0xf]
      %v293 = vld [vmem:[%s290 + $0x8] sm:$0xf]
      %v294 = vld [vmem:[%s290 + $0xc] sm:$0xf]
      %v295 = vld [vmem:[%s290 + $0x10] sm:$0xf]
      %v296 = vld [vmem:[%s290 + $0x14] sm:$0xf]
      %v297 = vld [vmem:[%s290 + $0x18] sm:$0xf]
      %v298 = vld [vmem:[%s290 + $0x1c] sm:$0xf]
      %v299 = vld [vmem:[%s290 + $0x20] sm:$0xf]
      %v300 = vld [vmem:[%s290 + $0x24] sm:$0xf]
      %v301 = vld [vmem:[%s290 + $0x28] sm:$0xf]
      %v302 = vld [vmem:[%s290 + $0x2c] sm:$0xf]
      %v315 = vunpack.c.l.b16 %v265
      %v316 = vunpack.c.l.b16 %v266
      %v317 = vunpack.c.l.b16 %v267
      %v318 = vunpack.c.l.b16 %v268
      %v319 = vunpack.c.l.b16 %v269
      %v320 = vunpack.c.l.b16 %v270
      %v321 = vunpack.c.l.b16 %v271
      %v322 = vunpack.c.l.b16 %v272
      %v323 = vunpack.c.l.b16 %v273
      %v324 = vunpack.c.l.b16 %v274
      %v325 = vunpack.c.l.b16 %v275
      %v326 = vunpack.c.l.b16 %v276
      %v327 = vpack.c.b16 %v316, %v315
      %v328 = vpack.c.b16 %v318, %v317
      %v329 = vpack.c.b16 %v320, %v319
      %v330 = vpack.c.b16 %v322, %v321
      %v331 = vpack.c.b16 %v324, %v323
      %v332 = vpack.c.b16 %v326, %v325
      %v345 = vunpack.c.l.b16 %v278
      %v346 = vunpack.c.l.b16 %v279
      %v347 = vunpack.c.l.b16 %v280
      %v348 = vunpack.c.l.b16 %v281
      %v349 = vunpack.c.l.b16 %v282
      %v350 = vunpack.c.l.b16 %v283
      %v351 = vunpack.c.l.b16 %v284
      %v352 = vunpack.c.l.b16 %v285
      %v353 = vunpack.c.l.b16 %v286
      %v354 = vunpack.c.l.b16 %v287
      %v355 = vunpack.c.l.b16 %v288
      %v356 = vunpack.c.l.b16 %v289
      %v357 = vpack.c.b16 %v346, %v345
      %v358 = vpack.c.b16 %v348, %v347
      %v359 = vpack.c.b16 %v350, %v349
      %v360 = vpack.c.b16 %v352, %v351
      %v361 = vpack.c.b16 %v354, %v353
      %v362 = vpack.c.b16 %v356, %v355
      %363 = vrot.lane.b32.xlu0 %v357, 32
      %v364 = vpop.permute.xlu0 %363
      %365 = vrot.lane.b32.xlu0 %v358, 32
      %v366 = vpop.permute.xlu0 %365
      %367 = vrot.lane.b32.xlu0 %v359, 32
      %v368 = vpop.permute.xlu0 %367
      %369 = vrot.lane.b32.xlu0 %v360, 32
      %v370 = vpop.permute.xlu0 %369
      %371 = vrot.lane.b32.xlu0 %v361, 32
      %v372 = vpop.permute.xlu0 %371
      %373 = vrot.lane.b32.xlu0 %v362, 32
      %v374 = vpop.permute.xlu0 %373
      %v387 = vunpack.c.l.b16 %v291
      %v388 = vunpack.c.l.b16 %v292
      %v389 = vunpack.c.l.b16 %v293
      %v390 = vunpack.c.l.b16 %v294
      %v391 = vunpack.c.l.b16 %v295
      %v392 = vunpack.c.l.b16 %v296
      %v393 = vunpack.c.l.b16 %v297
      %v394 = vunpack.c.l.b16 %v298
      %v395 = vunpack.c.l.b16 %v299
      %v396 = vunpack.c.l.b16 %v300
      %v397 = vunpack.c.l.b16 %v301
      %v398 = vunpack.c.l.b16 %v302
      %v399 = vpack.c.b16 %v388, %v387
      %v400 = vpack.c.b16 %v390, %v389
      %v401 = vpack.c.b16 %v392, %v391
      %v402 = vpack.c.b16 %v394, %v393
      %v403 = vpack.c.b16 %v396, %v395
      %v404 = vpack.c.b16 %v398, %v397
      %405 = vrot.lane.b32.xlu0 %v399, 64
      %v406 = vpop.permute.xlu0 %405
      %407 = vrot.lane.b32.xlu0 %v400, 64
      %v408 = vpop.permute.xlu0 %407
      %409 = vrot.lane.b32.xlu0 %v401, 64
      %v410 = vpop.permute.xlu0 %409
      %411 = vrot.lane.b32.xlu0 %v402, 64
      %v412 = vpop.permute.xlu0 %411
      %413 = vrot.lane.b32.xlu0 %v403, 64
      %v414 = vpop.permute.xlu0 %413
      %415 = vrot.lane.b32.xlu0 %v404, 64
      %v416 = vpop.permute.xlu0 %415
      %vm417 = vcmask 261120
      %v420 = vsel %vm417, %v327, %v364
      %v423 = vsel %vm417, %v328, %v366
      %v426 = vsel %vm417, %v329, %v368
      %v429 = vsel %vm417, %v330, %v370
      %v432 = vsel %vm417, %v331, %v372
      %v435 = vsel %vm417, %v332, %v374
      %vm436 = vcmask 523264
      %v438 = vsel %vm436, %v420, %v406
      %v440 = vsel %vm436, %v423, %v408
      %v442 = vsel %vm436, %v426, %v410
      %v444 = vsel %vm436, %v429, %v412
      %v446 = vsel %vm436, %v432, %v414
      %v448 = vsel %vm436, %v435, %v416
      %v449 = vld [vmem:[%s1] sm:$0xf]
      %v450 = vld [vmem:[%s1 + $0x4] sm:$0xf]
      %v451 = vld [vmem:[%s1 + $0x8] sm:$0xf]
      %v452 = vld [vmem:[%s1 + $0xc] sm:$0xf]
      %v453 = vld [vmem:[%s1 + $0x10] sm:$0xf]
      %v454 = vld [vmem:[%s1 + $0x14] sm:$0xf]
      %v455 = vld [vmem:[%s1 + $0x18] sm:$0xf]
      %v456 = vld [vmem:[%s1 + $0x1c] sm:$0xf]
      %v457 = vld [vmem:[%s1 + $0x20] sm:$0xf]
      %v458 = vld [vmem:[%s1 + $0x24] sm:$0xf]
      %v459 = vld [vmem:[%s1 + $0x28] sm:$0xf]
      %v460 = vld [vmem:[%s1 + $0x2c] sm:$0xf]
      %v461 = vld [vmem:[%s3] sm:$0x1]
      %v463 = vlaneseq
      %v464 = vshrl.u32 %v463, 7
      %v465 = vsub.s32 0, %v464
      %v466 = vrot.slane %v461, %v465
      %v480 = vunpack.c.l.b16 %v449
      %v481 = vunpack.c.l.b16 %v450
      %v482 = vunpack.c.l.b16 %v451
      %v483 = vunpack.c.l.b16 %v452
      %v484 = vunpack.c.l.b16 %v453
      %v485 = vunpack.c.l.b16 %v454
      %v486 = vunpack.c.l.b16 %v455
      %v487 = vunpack.c.l.b16 %v456
      %v488 = vunpack.c.l.b16 %v457
      %v489 = vunpack.c.l.b16 %v458
      %v490 = vunpack.c.l.b16 %v459
      %v491 = vunpack.c.l.b16 %v460
      %v492 = vpack.c.b16 %v481, %v480
      %v493 = vpack.c.b16 %v483, %v482
      %v494 = vpack.c.b16 %v485, %v484
      %v495 = vpack.c.b16 %v487, %v486
      %v496 = vpack.c.b16 %v489, %v488
      %v497 = vpack.c.b16 %v491, %v490
      %vm504 = vcmask 785408
      %v505 = vsel %vm504, %v438, 0
      %v507 = vsel %vm504, %v440, 0
      %v509 = vsel %vm504, %v442, 0
      %v511 = vsel %vm504, %v444, 0
      %v513 = vsel %vm504, %v446, 0
      %v515 = vsel %vm504, %v448, 0
      %517 = vmatprep.subr.bf16.mxu0 0
      %518 = vmatpush1.bf16.msra.mxu0 %v492
      %519 = vmatprep.subr.bf16.mxu0 0
      %520 = vmatpush1.bf16.msra.mxu0 %v493
      %521 = vmatprep.subr.bf16.mxu0 0
      %522 = vmatpush1.bf16.msra.mxu0 %v494
      %523 = vmatprep.subr.bf16.mxu0 0
      %524 = vmatpush1.bf16.msra.mxu0 %v495
      %525 = vmatprep.subr.bf16.mxu0 0
      %526 = vmatpush1.bf16.msra.mxu0 %v496
      %527 = vmatprep.subr.bf16.mxu0 0
      %528 = vmatpush1.bf16.msra.mxu0 %v497
      %529 = vmatprep.subr.bf16.mxu0 0
      %530 = vmatpush1.bf16.msra.mxu0 0
      %531 = vmatprep.subr.bf16.mxu0 0
      %532 = vmatpush1.bf16.msra.mxu0 0
      %533 = vmatprep.subr.bf16.mxu0 0
      %534 = vmatpush1.bf16.msra.mxu0 0
      %535 = vmatprep.subr.bf16.mxu0 0
      %536 = vmatpush1.bf16.msra.mxu0 0
      %537 = vmatprep.subr.bf16.mxu0 0
      %538 = vmatpush1.bf16.msra.mxu0 0
      %539 = vmatprep.subr.bf16.mxu0 0
      %540 = vmatpush1.bf16.msra.mxu0 0
      %541 = vmatprep.subr.bf16.mxu0 0
      %542 = vmatpush1.bf16.msra.mxu0 0
      %543 = vmatprep.subr.bf16.mxu0 0
      %544 = vmatpush1.bf16.msra.mxu0 0
      %545 = vmatprep.subr.bf16.mxu0 0
      %546 = vmatpush1.bf16.msra.mxu0 0
      %547 = vmatprep.subr.bf16.mxu0 0
      %548 = vmatpush1.bf16.msra.mxu0 0
      %549 = vmatprep.mubr.bf16.mxu0 0
      %550 = vmatmul.mubr.bf16.gmra.mrb[0].mxu0 %v505
      %v551 = vpop.f32.mrb[0].mxu0
      %v552 = vadd.f32 %v466, %v551
      %v553 = vpop.f32.mrb[0].mxu0
      %v554 = vpop.f32.mrb[0].mxu0
      %v555 = vadd.f32 %v466, %v554
      %v556 = vpop.f32.mrb[0].mxu0
      %557 = vmatprep.mubr.bf16.mxu0 0
      %558 = vmatmul.mubr.bf16.gmra.mrb[0].mxu0 %v507
      %v559 = vpop.f32.mrb[0].mxu0
      %v560 = vadd.f32 %v466, %v559
      %v561 = vpop.f32.mrb[0].mxu0
      %v562 = vpop.f32.mrb[0].mxu0
      %v563 = vadd.f32 %v466, %v562
      %v564 = vpop.f32.mrb[0].mxu0
      %565 = vmatprep.mubr.bf16.mxu0 0
      %566 = vmatmul.mubr.bf16.gmra.mrb[0].mxu0 %v509
      %v567 = vpop.f32.mrb[0].mxu0
      %v568 = vadd.f32 %v466, %v567
      %v569 = vpop.f32.mrb[0].mxu0
      %v570 = vpop.f32.mrb[0].mxu0
      %v571 = vadd.f32 %v466, %v570
      %v572 = vpop.f32.mrb[0].mxu0
      %573 = vmatprep.mubr.bf16.mxu0 0
      %574 = vmatmul.mubr.bf16.gmra.mrb[0].mxu0 %v511
      %v575 = vpop.f32.mrb[0].mxu0
      %v576 = vadd.f32 %v466, %v575
      %v577 = vpop.f32.mrb[0].mxu0
      %v578 = vpop.f32.mrb[0].mxu0
      %v579 = vadd.f32 %v466, %v578
      %v580 = vpop.f32.mrb[0].mxu0
      %581 = vmatprep.mubr.bf16.mxu0 0
      %582 = vmatmul.mubr.bf16.gmra.mrb[0].mxu0 %v513
      %v583 = vpop.f32.mrb[0].mxu0
      %v584 = vadd.f32 %v466, %v583
      %v585 = vpop.f32.mrb[0].mxu0
      %v586 = vpop.f32.mrb[0].mxu0
      %v587 = vadd.f32 %v466, %v586
      %v588 = vpop.f32.mrb[0].mxu0
      %589 = vmatprep.mubr.bf16.mxu0 0
      %590 = vmatmul.mubr.bf16.gmra.mrb[0].mxu0 %v515
      %v591 = vpop.f32.mrb[0].mxu0
      %v592 = vadd.f32 %v466, %v591
      %v593 = vpop.f32.mrb[0].mxu0
      %v594 = vpop.f32.mrb[0].mxu0
      %v595 = vadd.f32 %v466, %v594
      %v596 = vpop.f32.mrb[0].mxu0
      %597 = vdwg.mxu0
      %v598 = vld [vmem:[%s2] sm:$0xf]
      %v599 = vld [vmem:[%s2 + $0x4] sm:$0xf]
      %v600 = vld [vmem:[%s2 + $0x8] sm:$0xf]
      %v601 = vld [vmem:[%s2 + $0xc] sm:$0xf]
      %v602 = vld [vmem:[%s2 + $0x10] sm:$0xf]
      %v603 = vld [vmem:[%s2 + $0x14] sm:$0xf]
      %v604 = vld [vmem:[%s2 + $0x18] sm:$0xf]
      %v605 = vld [vmem:[%s2 + $0x1c] sm:$0xf]
      %v606 = vld [vmem:[%s2 + $0x20] sm:$0xf]
      %v607 = vld [vmem:[%s2 + $0x24] sm:$0xf]
      %v608 = vld [vmem:[%s2 + $0x28] sm:$0xf]
      %v609 = vld [vmem:[%s2 + $0x2c] sm:$0xf]
      %v610 = vld [vmem:[%s4] sm:$0x1]
      %v612 = vlaneseq
      %v613 = vshrl.u32 %v612, 7
      %v614 = vsub.s32 0, %v613
      %v615 = vrot.slane %v610, %v614
      %v629 = vunpack.c.l.b16 %v598
      %v630 = vunpack.c.l.b16 %v599
      %v631 = vunpack.c.l.b16 %v600
      %v632 = vunpack.c.l.b16 %v601
      %v633 = vunpack.c.l.b16 %v602
      %v634 = vunpack.c.l.b16 %v603
      %v635 = vunpack.c.l.b16 %v604
      %v636 = vunpack.c.l.b16 %v605
      %v637 = vunpack.c.l.b16 %v606
      %v638 = vunpack.c.l.b16 %v607
      %v639 = vunpack.c.l.b16 %v608
      %v640 = vunpack.c.l.b16 %v609
      %v641 = vpack.c.b16 %v630, %v629
      %v642 = vpack.c.b16 %v632, %v631
      %v643 = vpack.c.b16 %v634, %v633
      %v644 = vpack.c.b16 %v636, %v635
      %v645 = vpack.c.b16 %v638, %v637
      %v646 = vpack.c.b16 %v640, %v639
      %653 = vmatprep.subr.bf16.mxu0 0
      %654 = vmatpush1.bf16.msra.mxu0 %v641
      %655 = vmatprep.subr.bf16.mxu0 0
      %656 = vmatpush1.bf16.msra.mxu0 %v642
      %657 = vmatprep.subr.bf16.mxu0 0
      %658 = vmatpush1.bf16.msra.mxu0 %v643
      %659 = vmatprep.subr.bf16.mxu0 0
      %660 = vmatpush1.bf16.msra.mxu0 %v644
      %661 = vmatprep.subr.bf16.mxu0 0
      %662 = vmatpush1.bf16.msra.mxu0 %v645
      %663 = vmatprep.subr.bf16.mxu0 0
      %664 = vmatpush1.bf16.msra.mxu0 %v646
      %665 = vmatprep.subr.bf16.mxu0 0
      %666 = vmatpush1.bf16.msra.mxu0 0
      %667 = vmatprep.subr.bf16.mxu0 0
      %668 = vmatpush1.bf16.msra.mxu0 0
      %669 = vmatprep.subr.bf16.mxu0 0
      %670 = vmatpush1.bf16.msra.mxu0 0
      %671 = vmatprep.subr.bf16.mxu0 0
      %672 = vmatpush1.bf16.msra.mxu0 0
      %673 = vmatprep.subr.bf16.mxu0 0
      %674 = vmatpush1.bf16.msra.mxu0 0
      %675 = vmatprep.subr.bf16.mxu0 0
      %676 = vmatpush1.bf16.msra.mxu0 0
      %677 = vmatprep.subr.bf16.mxu0 0
      %678 = vmatpush1.bf16.msra.mxu0 0
      %679 = vmatprep.subr.bf16.mxu0 0
      %680 = vmatpush1.bf16.msra.mxu0 0
      %681 = vmatprep.subr.bf16.mxu0 0
      %682 = vmatpush1.bf16.msra.mxu0 0
      %683 = vmatprep.subr.bf16.mxu0 0
      %684 = vmatpush1.bf16.msra.mxu0 0
      %685 = vmatprep.mubr.bf16.mxu0 0
      %686 = vmatmul.mubr.bf16.gmra.mrb[0].mxu0 %v505
      %v687 = vpop.f32.mrb[0].mxu0
      %v688 = vadd.f32 %v615, %v687
      %v689 = vpop.f32.mrb[0].mxu0
      %v690 = vpop.f32.mrb[0].mxu0
      %v691 = vadd.f32 %v615, %v690
      %v692 = vpop.f32.mrb[0].mxu0
      %693 = vmatprep.mubr.bf16.mxu0 0
      %694 = vmatmul.mubr.bf16.gmra.mrb[0].mxu0 %v507
      %v695 = vpop.f32.mrb[0].mxu0
      %v696 = vadd.f32 %v615, %v695
      %v697 = vpop.f32.mrb[0].mxu0
      %v698 = vpop.f32.mrb[0].mxu0
      %v699 = vadd.f32 %v615, %v698
      %v700 = vpop.f32.mrb[0].mxu0
      %701 = vmatprep.mubr.bf16.mxu0 0
      %702 = vmatmul.mubr.bf16.gmra.mrb[0].mxu0 %v509
      %v703 = vpop.f32.mrb[0].mxu0
      %v704 = vadd.f32 %v615, %v703
      %v705 = vpop.f32.mrb[0].mxu0
      %v706 = vpop.f32.mrb[0].mxu0
      %v707 = vadd.f32 %v615, %v706
      %v708 = vpop.f32.mrb[0].mxu0
      %709 = vmatprep.mubr.bf16.mxu0 0
      %710 = vmatmul.mubr.bf16.gmra.mrb[0].mxu0 %v511
      %v711 = vpop.f32.mrb[0].mxu0
      %v712 = vadd.f32 %v615, %v711
      %v713 = vpop.f32.mrb[0].mxu0
      %v714 = vpop.f32.mrb[0].mxu0
      %v715 = vadd.f32 %v615, %v714
      %v716 = vpop.f32.mrb[0].mxu0
      %717 = vmatprep.mubr.bf16.mxu0 0
      %718 = vmatmul.mubr.bf16.gmra.mrb[0].mxu0 %v513
      %v719 = vpop.f32.mrb[0].mxu0
      %v720 = vadd.f32 %v615, %v719
      %v721 = vpop.f32.mrb[0].mxu0
      %v722 = vpop.f32.mrb[0].mxu0
      %v723 = vadd.f32 %v615, %v722
      %v724 = vpop.f32.mrb[0].mxu0
      %725 = vmatprep.mubr.bf16.mxu0 0
      %726 = vmatmul.mubr.bf16.gmra.mrb[0].mxu0 %v515
      %v727 = vpop.f32.mrb[0].mxu0
      %v728 = vadd.f32 %v615, %v727
      %v729 = vpop.f32.mrb[0].mxu0
      %v730 = vpop.f32.mrb[0].mxu0
      %v731 = vadd.f32 %v615, %v730
      %v732 = vpop.f32.mrb[0].mxu0
      %733 = vdwg.mxu0
      %v734 = vtanh.pop %v552
      %v735 = vtanh.pop %v555
      %v736 = vtanh.pop %v560
      %v737 = vtanh.pop %v563
      %v738 = vtanh.pop %v568
      %v739 = vtanh.pop %v571
      %v740 = vtanh.pop %v576
      %v741 = vtanh.pop %v579
      %v742 = vtanh.pop %v584
      %v743 = vtanh.pop %v587
      %v744 = vtanh.pop %v592
      %v745 = vtanh.pop %v595
      %v746 = vxor.u32 %v688, 2147483648
      %v747 = vxor.u32 %v691, 2147483648
      %v748 = vxor.u32 %v696, 2147483648
      %v749 = vxor.u32 %v699, 2147483648
      %v750 = vxor.u32 %v704, 2147483648
      %v751 = vxor.u32 %v707, 2147483648
      %v752 = vxor.u32 %v712, 2147483648
      %v753 = vxor.u32 %v715, 2147483648
      %v754 = vxor.u32 %v720, 2147483648
      %v755 = vxor.u32 %v723, 2147483648
      %v756 = vxor.u32 %v728, 2147483648
      %v757 = vxor.u32 %v731, 2147483648
      %v758 = vmul.f32 %v746, 1.442695
      %v759 = vpow.pop %v758
      %v760 = vmul.f32 %v747, 1.442695
      %v761 = vpow.pop %v760
      %v762 = vmul.f32 %v748, 1.442695
      %v763 = vpow.pop %v762
      %v764 = vmul.f32 %v749, 1.442695
      %v765 = vpow.pop %v764
      %v766 = vmul.f32 %v750, 1.442695
      %v767 = vpow.pop %v766
      %v768 = vmul.f32 %v751, 1.442695
      %v769 = vpow.pop %v768
      %v770 = vmul.f32 %v752, 1.442695
      %v771 = vpow.pop %v770
      %v772 = vmul.f32 %v753, 1.442695
      %v773 = vpow.pop %v772
      %v774 = vmul.f32 %v754, 1.442695
      %v775 = vpow.pop %v774
      %v776 = vmul.f32 %v755, 1.442695
      %v777 = vpow.pop %v776
      %v778 = vmul.f32 %v756, 1.442695
      %v779 = vpow.pop %v778
      %v780 = vmul.f32 %v757, 1.442695
      %v781 = vpow.pop %v780
      %v782 = vadd.f32 %v759, 1.0
      %v783 = vadd.f32 %v761, 1.0
      %v784 = vadd.f32 %v763, 1.0
      %v785 = vadd.f32 %v765, 1.0
      %v786 = vadd.f32 %v767, 1.0
      %v787 = vadd.f32 %v769, 1.0
      %v788 = vadd.f32 %v771, 1.0
      %v789 = vadd.f32 %v773, 1.0
      %v790 = vadd.f32 %v775, 1.0
      %v791 = vadd.f32 %v777, 1.0
      %v792 = vadd.f32 %v779, 1.0
      %v793 = vadd.f32 %v781, 1.0
      %v794 = vrcp.pop %v782
      %v795 = vmul.f32 1.0, %v794
      %v796 = vrcp.pop %v783
      %v797 = vmul.f32 1.0, %v796
      %v798 = vrcp.pop %v784
      %v799 = vmul.f32 1.0, %v798
      %v800 = vrcp.pop %v785
      %v801 = vmul.f32 1.0, %v800
      %v802 = vrcp.pop %v786
      %v803 = vmul.f32 1.0, %v802
      %v804 = vrcp.pop %v787
      %v805 = vmul.f32 1.0, %v804
      %v806 = vrcp.pop %v788
      %v807 = vmul.f32 1.0, %v806
      %v808 = vrcp.pop %v789
      %v809 = vmul.f32 1.0, %v808
      %v810 = vrcp.pop %v790
      %v811 = vmul.f32 1.0, %v810
      %v812 = vrcp.pop %v791
      %v813 = vmul.f32 1.0, %v812
      %v814 = vrcp.pop %v792
      %v815 = vmul.f32 1.0, %v814
      %v816 = vrcp.pop %v793
      %v817 = vmul.f32 1.0, %v816
      %v818 = vmul.f32 %v734, %v795
      %v819 = vmul.f32 %v735, %v797
      %v820 = vmul.f32 %v736, %v799
      %v821 = vmul.f32 %v737, %v801
      %v822 = vmul.f32 %v738, %v803
      %v823 = vmul.f32 %v739, %v805
      %v824 = vmul.f32 %v740, %v807
      %v825 = vmul.f32 %v741, %v809
      %v826 = vmul.f32 %v742, %v811
      %v827 = vmul.f32 %v743, %v813
      %v828 = vmul.f32 %v744, %v815
      %v829 = vmul.f32 %v745, %v817
      %830 = vst.msk [vmem:[%s262] sm:$0xff] %vm417, %v818
      %831 = vst.msk [vmem:[%s262 + $0x8] sm:$0xff] %vm417, %v819
      %832 = vst.msk [vmem:[%s262 + $0x10] sm:$0xff] %vm417, %v820
      %833 = vst.msk [vmem:[%s262 + $0x18] sm:$0xff] %vm417, %v821
      %834 = vst.msk [vmem:[%s262 + $0x20] sm:$0xff] %vm417, %v822
      %835 = vst.msk [vmem:[%s262 + $0x28] sm:$0xff] %vm417, %v823
      %836 = vst.msk [vmem:[%s262 + $0x30] sm:$0xff] %vm417, %v824
      %837 = vst.msk [vmem:[%s262 + $0x38] sm:$0xff] %vm417, %v825
      %838 = vst.msk [vmem:[%s262 + $0x40] sm:$0xff] %vm417, %v826
      %839 = vst.msk [vmem:[%s262 + $0x48] sm:$0xff] %vm417, %v827
      %840 = vst.msk [vmem:[%s262 + $0x50] sm:$0xff] %vm417, %v828
      %841 = vst.msk [vmem:[%s262 + $0x58] sm:$0xff] %vm417, %v829
      %s842 = smul.u32 2, %s21
      %p843 = scmp.lt.s32.totalorder %s20, 1
      %s844 = scalar_select %p843, %s20, 1
      %p845 = scmp.lt.s32.totalorder %s842, 1
      %s846 = scalar_select %p845, %s842, 1
      %s847 = smul.addr %s844, 12
      %s848 = sadd.s32 %s846, %s847
      %s849 = smul.addr %s848, 8
      %s850 = scalar_lea.vmem %s5, %s849
      // Predicated region
      $region41: #{_lambda_.11} parent=39 // pred_check
        %p851 = pneg %p160
      $region42: #{_lambda_.11} parent=39 // pred_check_branch
        %853 = sbr.rel (%p851) target = $region44
      $region43: #{_lambda_.11} parent=39 // pred_region
        %s854 = smul.u32 2, %s21
      $region44: #{_lambda_.11} parent=39 // pred_fallthru
        _
    $region40: #{_lambda_.11} parent=5 // pred_fallthru
      _
    %p855 = scmp.le.s32.totalorder 2, %s11
    // Predicated region
    $region45: #{_lambda_.11} parent=5 // pred_check
      %p856 = pneg %p855
    $region46: #{_lambda_.11} parent=5 // pred_check_branch
      %858 = sbr.rel (%p856) target = $region48
    $region47: #{_lambda_.11} parent=5 // pred_region
      %s859 = ssub.s32 %s11, 2
      // Predicated region
      $region49: #{_lambda_.11} parent=47 // pred_check
        %p860 = pneg %p166
      $region50: #{_lambda_.11} parent=47 // pred_check_branch
        %862 = sbr.rel (%p860) target = $region52
      $region51: #{_lambda_.11} parent=47 // pred_region
        %s863 = smul.u32 2, %s23
        %p864 = scmp.lt.s32.totalorder %s22, 1
        %s865 = scalar_select %p864, %s22, 1
        %p866 = scmp.lt.s32.totalorder %s863, 1
        %s867 = scalar_select %p866, %s863, 1
        %s868 = smul.addr %s865, 12
        %s869 = sadd.s32 %s867, %s868
        %s870 = smul.addr %s869, 8
        %s871 = scalar_lea.vmem %s5, %s870
      $region52: #{_lambda_.11} parent=47 // pred_fallthru
        _
    $region48: #{_lambda_.11} parent=5 // pred_fallthru
      _
  $region6: #{_lambda_.11} parent=0 // loop_footer
    %s15 = sadd.s32 1, %s11
  $region7: #{_lambda_.11} parent=0 // loop_footer_branch
    %10 = sbr.rel target = $region3
  $region8: #{_lambda_.11} parent=0 // loop_exit
    _

// kernel: _lambda_.10
$region0: #{_lambda_.10}
  #allocation0 [shape = 'u32[]', space=smem, size = 0x4, offset = 0x4, fixed_abs, tag = 'smem constant byte address 0x4 - core index']
  #allocation1 [shape = 'u32[144,128]{1,0:T(1,128)}', space=vmem, size = 0x12000, scoped, tag = 'internal scratch']
  %s0 = inlined_call_operand.vmem [shape: bf16[16,32], index: 0, kind: input, shape index: {}]
  %s1 = inlined_call_operand.vmem [shape: f32[16,16], index: 1, kind: output, shape index: {}]
  %s2 = sld [smem:[#allocation0]]
  $region14: #{_lambda_.10} parent=0
    _
  %s4 = ssub.s32 1, %s2
  %s5 = scalar_select 0, %s4, %s2
  // Predicated region
  $region2: #{_lambda_.10} parent=0 // pred_check
    _
  $region3: #{_lambda_.10} parent=0 // pred_check_branch
    %7 = sbr.rel (0) target = $region5
  $region4: #{_lambda_.10} parent=0 // pred_region
    _
  $region5: #{_lambda_.10} parent=0 // pred_fallthru
    _
  %v9 = vld [vmem:[%s0] sm:$0xf]
  %v10 = vld [vmem:[%s0 + $0x4] sm:$0xf]
  %v13 = vunpack.c.l.b16 %v9
  %v14 = vunpack.c.l.b16 %v10
  %v15 = vpack.c.b16 %v14, %v13
  %vm16 = vcmask 261120
  %v18 = vsel %vm16, %v15, 0
  %20 = vmatprep.subr.bf16.mxu0 0
  %21 = vmatpush1.bf16.xpose.msra.mxu0 %v18
  %22 = vmatprep.subr.bf16.mxu0 0
  %23 = vmatpush1.bf16.xpose.msra.mxu0 0
  %24 = vmatprep.subr.bf16.mxu0 0
  %25 = vmatpush1.bf16.xpose.msra.mxu0 0
  %26 = vmatprep.subr.bf16.mxu0 0
  %27 = vmatpush1.bf16.xpose.msra.mxu0 0
  %28 = vmatprep.subr.bf16.mxu0 0
  %29 = vmatpush1.bf16.xpose.msra.mxu0 0
  %30 = vmatprep.subr.bf16.mxu0 0
  %31 = vmatpush1.bf16.xpose.msra.mxu0 0
  %32 = vmatprep.subr.bf16.mxu0 0
  %33 = vmatpush1.bf16.xpose.msra.mxu0 0
  %34 = vmatprep.subr.bf16.mxu0 0
  %35 = vmatpush1.bf16.xpose.msra.mxu0 0
  %36 = vmatprep.subr.bf16.mxu0 0
  %37 = vmatpush1.bf16.xpose.msra.mxu0 0
  %38 = vmatprep.subr.bf16.mxu0 0
  %39 = vmatpush1.bf16.xpose.msra.mxu0 0
  %40 = vmatprep.subr.bf16.mxu0 0
  %41 = vmatpush1.bf16.xpose.msra.mxu0 0
  %42 = vmatprep.subr.bf16.mxu0 0
  %43 = vmatpush1.bf16.xpose.msra.mxu0 0
  %44 = vmatprep.subr.bf16.mxu0 0
  %45 = vmatpush1.bf16.xpose.msra.mxu0 0
  %46 = vmatprep.subr.bf16.mxu0 0
  %47 = vmatpush1.bf16.xpose.msra.mxu0 0
  %48 = vmatprep.subr.bf16.mxu0 0
  %49 = vmatpush1.bf16.xpose.msra.mxu0 0
  %50 = vmatprep.subr.bf16.mxu0 0
  %51 = vmatpush1.bf16.xpose.msra.mxu0 0
  %52 = vmatprep.mubr.bf16.mxu0 0
  %53 = vmatmul.mubr.bf16.gmra.mrb[0].mxu0 %v18
  %v54 = vpop.f32.mrb[0].mxu0
  %v55 = vadd.f32 0.0, %v54
  %v56 = vpop.f32.mrb[0].mxu0
  %v57 = vpop.f32.mrb[0].mxu0
  %v58 = vadd.f32 0.0, %v57
  %v59 = vpop.f32.mrb[0].mxu0
  %60 = vdwg.mxu0
  %v61 = vmax.f32 %v55, 0.0
  %v62 = vmax.f32 %v58, 0.0
  %vm63 = vcmask 130048
  %v64 = vsel %vm63, %v61, -inf
  %65 = vmax.xlane.f32.xlu0 %v64
  %v66 = vpop.xlane.xlu0 %65
  %v67 = vsel %vm63, %v62, -inf
  %68 = vmax.xlane.f32.xlu0 %v67
  %v69 = vpop.xlane.xlu0 %68
  %v70 = vsub.f32 %v61, %v66
  %v71 = vsub.f32 %v62, %v69
  %v72 = vmul.f32 %v70, 1.442695
  %v73 = vpow.pop %v72
  %v74 = vmul.f32 %v71, 1.442695
  %v75 = vpow.pop %v74
  %v76 = vsel %vm63, %v73, 0.0
  %77 = vadd.xlane.f32.xlu0 %v76
  %v78 = vpop.xlane.xlu0 %77
  %v79 = vsel %vm63, %v75, 0.0
  %80 = vadd.xlane.f32.xlu0 %v79
  %v81 = vpop.xlane.xlu0 %80
  %v82 = vrcp.pop %v78
  %v83 = vrcp.pop %v81
  %v84 = vmul.f32 %v73, %v82
  %v85 = vmul.f32 %v75, %v83
  %86 = vst.msk [vmem:[%s1] sm:$0xff] %vm63, %v84
  %87 = vst.msk [vmem:[%s1 + $0x8] sm:$0xff] %vm63, %v85
  // Predicated region
  $region6: #{_lambda_.10} parent=0 // pred_check
    _
  $region7: #{_lambda_.10} parent=0 // pred_check_branch
    %89 = sbr.rel (0) target = $region9
  $region8: #{_lambda_.10} parent=0 // pred_region
    _
  $region9: #{_lambda_.10} parent=0 // pred_fallthru
    _
  // Predicated region
  $region10: #{_lambda_.10} parent=0 // pred_check
    _
  $region11: #{_lambda_.10} parent=0 // pred_check_branch
    %91 = sbr.rel (0) target = $region13
  $region12: #{_lambda_.10} parent=0 // pred_region
    _
  $region13: #{_lambda_.10} parent=0 // pred_fallthru
    _

// kernel: _lambda_.9
$region0: #{_lambda_.9}
  #allocation0 [shape = 'u32[]', space=smem, size = 0x4, offset = 0x4, fixed_abs, tag = 'smem constant byte address 0x4 - core index']
  #allocation1 [shape = 'u32[144,128]{1,0:T(1,128)}', space=vmem, size = 0x12000, scoped, tag = 'internal scratch']
  %s0 = inlined_call_operand.vmem [shape: bf16[256,7], index: 0, kind: input, shape index: {}]
  %s1 = inlined_call_operand.vmem [shape: bf16[256,41], index: 1, kind: input, shape index: {}]
  %s2 = inlined_call_operand.vmem [shape: bf16[7,32], index: 2, kind: input, shape index: {}]
  %s3 = inlined_call_operand.vmem [shape: bf16[41,32], index: 3, kind: input, shape index: {}]
  %s4 = inlined_call_operand.vmem [shape: bf16[32,32], index: 4, kind: input, shape index: {}]
  %s5 = inlined_call_operand.vmem [shape: bf16[32,32], index: 5, kind: input, shape index: {}]
  %s6 = inlined_call_operand.vmem [shape: bf16[7,32], index: 6, kind: input, shape index: {}]
  %s7 = inlined_call_operand.vmem [shape: f32[4,32], index: 7, kind: input, shape index: {}]
  %s8 = inlined_call_operand.vmem [shape: f32[256,32], index: 8, kind: output, shape index: {}]
  %s9 = sld [smem:[#allocation0]]
  $region42: #{_lambda_.9} parent=0
    _
  %s11 = ssub.s32 1, %s9
  %s12 = scalar_select 0, %s11, %s9
  // Predicated region
  $region2: #{_lambda_.9} parent=0 // pred_check
    _
  $region3: #{_lambda_.9} parent=0 // pred_check_branch
    %14 = sbr.rel (0) target = $region5
  $region4: #{_lambda_.9} parent=0 // pred_region
    _
  $region5: #{_lambda_.9} parent=0 // pred_fallthru
    _
  // Predicated region
  $region6: #{_lambda_.9} parent=0 // pred_check
    _
  $region7: #{_lambda_.9} parent=0 // pred_check_branch
    %16 = sbr.rel (0) target = $region9
  $region8: #{_lambda_.9} parent=0 // pred_region
    _
  $region9: #{_lambda_.9} parent=0 // pred_fallthru
    _
  // Predicated region
  $region10: #{_lambda_.9} parent=0 // pred_check
    _
  $region11: #{_lambda_.9} parent=0 // pred_check_branch
    %18 = sbr.rel (0) target = $region13
  $region12: #{_lambda_.9} parent=0 // pred_region
    _
  $region13: #{_lambda_.9} parent=0 // pred_fallthru
    _
  // Predicated region
  $region14: #{_lambda_.9} parent=0 // pred_check
    _
  $region15: #{_lambda_.9} parent=0 // pred_check_branch
    %20 = sbr.rel (0) target = $region17
  $region16: #{_lambda_.9} parent=0 // pred_region
    _
  $region17: #{_lambda_.9} parent=0 // pred_fallthru
    _
  // Predicated region
  $region18: #{_lambda_.9} parent=0 // pred_check
    _
  $region19: #{_lambda_.9} parent=0 // pred_check_branch
    %22 = sbr.rel (0) target = $region21
  $region20: #{_lambda_.9} parent=0 // pred_region
    _
  $region21: #{_lambda_.9} parent=0 // pred_fallthru
    _
  // Predicated region
  $region22: #{_lambda_.9} parent=0 // pred_check
    _
  $region23: #{_lambda_.9} parent=0 // pred_check_branch
    %24 = sbr.rel (0) target = $region25
  $region24: #{_lambda_.9} parent=0 // pred_region
    _
  $region25: #{_lambda_.9} parent=0 // pred_fallthru
    _
  // Predicated region
  $region26: #{_lambda_.9} parent=0 // pred_check
    _
  $region27: #{_lambda_.9} parent=0 // pred_check_branch
    %26 = sbr.rel (0) target = $region29
  $region28: #{_lambda_.9} parent=0 // pred_region
    _
  $region29: #{_lambda_.9} parent=0 // pred_fallthru
    _
  // Predicated region
  $region30: #{_lambda_.9} parent=0 // pred_check
    _
  $region31: #{_lambda_.9} parent=0 // pred_check_branch
    %28 = sbr.rel (0) target = $region33
  $region32: #{_lambda_.9} parent=0 // pred_region
    _
  $region33: #{_lambda_.9} parent=0 // pred_fallthru
    _
  %v30 = vld [vmem:[%s0] sm:$0xf]
  %v31 = vld [vmem:[%s0 + $0x4] sm:$0xf]
  %v32 = vld [vmem:[%s0 + $0x8] sm:$0xf]
  %v33 = vld [vmem:[%s0 + $0xc] sm:$0xf]
  %v34 = vld [vmem:[%s0 + $0x10] sm:$0xf]
  %v35 = vld [vmem:[%s0 + $0x14] sm:$0xf]
  %v36 = vld [vmem:[%s0 + $0x18] sm:$0xf]
  %v37 = vld [vmem:[%s0 + $0x1c] sm:$0xf]
  %v38 = vld [vmem:[%s0 + $0x20] sm:$0xf]
  %v39 = vld [vmem:[%s0 + $0x24] sm:$0xf]
  %v40 = vld [vmem:[%s0 + $0x28] sm:$0xf]
  %v41 = vld [vmem:[%s0 + $0x2c] sm:$0xf]
  %v42 = vld [vmem:[%s0 + $0x30] sm:$0xf]
  %v43 = vld [vmem:[%s0 + $0x34] sm:$0xf]
  %v44 = vld [vmem:[%s0 + $0x38] sm:$0xf]
  %v45 = vld [vmem:[%s0 + $0x3c] sm:$0xf]
  %v46 = vld [vmem:[%s0 + $0x40] sm:$0xf]
  %v47 = vld [vmem:[%s0 + $0x44] sm:$0xf]
  %v48 = vld [vmem:[%s0 + $0x48] sm:$0xf]
  %v49 = vld [vmem:[%s0 + $0x4c] sm:$0xf]
  %v50 = vld [vmem:[%s0 + $0x50] sm:$0xf]
  %v51 = vld [vmem:[%s0 + $0x54] sm:$0xf]
  %v52 = vld [vmem:[%s0 + $0x58] sm:$0xf]
  %v53 = vld [vmem:[%s0 + $0x5c] sm:$0xf]
  %v54 = vld [vmem:[%s0 + $0x60] sm:$0xf]
  %v55 = vld [vmem:[%s0 + $0x64] sm:$0xf]
  %v56 = vld [vmem:[%s0 + $0x68] sm:$0xf]
  %v57 = vld [vmem:[%s0 + $0x6c] sm:$0xf]
  %v58 = vld [vmem:[%s0 + $0x70] sm:$0xf]
  %v59 = vld [vmem:[%s0 + $0x74] sm:$0xf]
  %v60 = vld [vmem:[%s0 + $0x78] sm:$0xf]
  %v61 = vld [vmem:[%s0 + $0x7c] sm:$0xf]
  %v62 = vld [vmem:[%s1] sm:$0xf]
  %v63 = vld [vmem:[%s1 + $0x4] sm:$0xf]
  %v64 = vld [vmem:[%s1 + $0x8] sm:$0xf]
  %v65 = vld [vmem:[%s1 + $0xc] sm:$0xf]
  %v66 = vld [vmem:[%s1 + $0x10] sm:$0xf]
  %v67 = vld [vmem:[%s1 + $0x14] sm:$0xf]
  %v68 = vld [vmem:[%s1 + $0x18] sm:$0xf]
  %v69 = vld [vmem:[%s1 + $0x1c] sm:$0xf]
  %v70 = vld [vmem:[%s1 + $0x20] sm:$0xf]
  %v71 = vld [vmem:[%s1 + $0x24] sm:$0xf]
  %v72 = vld [vmem:[%s1 + $0x28] sm:$0xf]
  %v73 = vld [vmem:[%s1 + $0x2c] sm:$0xf]
  %v74 = vld [vmem:[%s1 + $0x30] sm:$0xf]
  %v75 = vld [vmem:[%s1 + $0x34] sm:$0xf]
  %v76 = vld [vmem:[%s1 + $0x38] sm:$0xf]
  %v77 = vld [vmem:[%s1 + $0x3c] sm:$0xf]
  %v78 = vld [vmem:[%s1 + $0x40] sm:$0xf]
  %v79 = vld [vmem:[%s1 + $0x44] sm:$0xf]
  %v80 = vld [vmem:[%s1 + $0x48] sm:$0xf]
  %v81 = vld [vmem:[%s1 + $0x4c] sm:$0xf]
  %v82 = vld [vmem:[%s1 + $0x50] sm:$0xf]
  %v83 = vld [vmem:[%s1 + $0x54] sm:$0xf]
  %v84 = vld [vmem:[%s1 + $0x58] sm:$0xf]
  %v85 = vld [vmem:[%s1 + $0x5c] sm:$0xf]
  %v86 = vld [vmem:[%s1 + $0x60] sm:$0xf]
  %v87 = vld [vmem:[%s1 + $0x64] sm:$0xf]
  %v88 = vld [vmem:[%s1 + $0x68] sm:$0xf]
  %v89 = vld [vmem:[%s1 + $0x6c] sm:$0xf]
  %v90 = vld [vmem:[%s1 + $0x70] sm:$0xf]
  %v91 = vld [vmem:[%s1 + $0x74] sm:$0xf]
  %v92 = vld [vmem:[%s1 + $0x78] sm:$0xf]
  %v93 = vld [vmem:[%s1 + $0x7c] sm:$0xf]
  %v94 = vld [vmem:[%s7] sm:$0xf]
  %v95 = vld [vmem:[%s2] sm:$0xf]
  %v96 = vlaneseq
  %v97 = vshrl.u32 %v96, 7
  %v98 = vsub.s32 0, %v97
  %v99 = vrot.slane %v94, %v98
  %v132 = vunpack.c.l.b16 %v30
  %v133 = vunpack.c.l.b16 %v31
  %v134 = vunpack.c.l.b16 %v32
  %v135 = vunpack.c.l.b16 %v33
  %v136 = vunpack.c.l.b16 %v34
  %v137 = vunpack.c.l.b16 %v35
  %v138 = vunpack.c.l.b16 %v36
  %v139 = vunpack.c.l.b16 %v37
  %v140 = vunpack.c.l.b16 %v38
  %v141 = vunpack.c.l.b16 %v39
  %v142 = vunpack.c.l.b16 %v40
  %v143 = vunpack.c.l.b16 %v41
  %v144 = vunpack.c.l.b16 %v42
  %v145 = vunpack.c.l.b16 %v43
  %v146 = vunpack.c.l.b16 %v44
  %v147 = vunpack.c.l.b16 %v45
  %v148 = vunpack.c.l.b16 %v46
  %v149 = vunpack.c.l.b16 %v47
  %v150 = vunpack.c.l.b16 %v48
  %v151 = vunpack.c.l.b16 %v49
  %v152 = vunpack.c.l.b16 %v50
  %v153 = vunpack.c.l.b16 %v51
  %v154 = vunpack.c.l.b16 %v52
  %v155 = vunpack.c.l.b16 %v53
  %v156 = vunpack.c.l.b16 %v54
  %v157 = vunpack.c.l.b16 %v55
  %v158 = vunpack.c.l.b16 %v56
  %v159 = vunpack.c.l.b16 %v57
  %v160 = vunpack.c.l.b16 %v58
  %v161 = vunpack.c.l.b16 %v59
  %v162 = vunpack.c.l.b16 %v60
  %v163 = vunpack.c.l.b16 %v61
  %v164 = vpack.c.b16 %v133, %v132
  %v165 = vpack.c.b16 %v135, %v134
  %v166 = vpack.c.b16 %v137, %v136
  %v167 = vpack.c.b16 %v139, %v138
  %v168 = vpack.c.b16 %v141, %v140
  %v169 = vpack.c.b16 %v143, %v142
  %v170 = vpack.c.b16 %v145, %v144
  %v171 = vpack.c.b16 %v147, %v146
  %v172 = vpack.c.b16 %v149, %v148
  %v173 = vpack.c.b16 %v151, %v150
  %v174 = vpack.c.b16 %v153, %v152
  %v175 = vpack.c.b16 %v155, %v154
  %v176 = vpack.c.b16 %v157, %v156
  %v177 = vpack.c.b16 %v159, %v158
  %v178 = vpack.c.b16 %v161, %v160
  %v179 = vpack.c.b16 %v163, %v162
  %vm180 = vcmask 56320
  %v182 = vsel %vm180, %v164, 0
  %v185 = vsel %vm180, %v165, 0
  %v188 = vsel %vm180, %v166, 0
  %v191 = vsel %vm180, %v167, 0
  %v194 = vsel %vm180, %v168, 0
  %v197 = vsel %vm180, %v169, 0
  %v200 = vsel %vm180, %v170, 0
  %v203 = vsel %vm180, %v171, 0
  %v206 = vsel %vm180, %v172, 0
  %v209 = vsel %vm180, %v173, 0
  %v212 = vsel %vm180, %v174, 0
  %v215 = vsel %vm180, %v175, 0
  %v218 = vsel %vm180, %v176, 0
  %v221 = vsel %vm180, %v177, 0
  %v224 = vsel %vm180, %v178, 0
  %v227 = vsel %vm180, %v179, 0
  %vm229 = vcmask 1042432
  %vm230 = vcmask 1043456
  %v231 = vsel %vm229, 4294967295, 65535
  %v232 = vsel %vm230, %v231, 0
  %v234 = vand.u32 %v95, %v232
  %236 = vmatprep.subr.bf16.mxu0 0
  %237 = vmatpush1.bf16.msra.mxu0 %v234
  %238 = vmatprep.subr.bf16.mxu0 0
  %239 = vmatpush1.bf16.msra.mxu0 0
  %240 = vmatprep.subr.bf16.mxu0 0
  %241 = vmatpush1.bf16.msra.mxu0 0
  %242 = vmatprep.subr.bf16.mxu0 0
  %243 = vmatpush1.bf16.msra.mxu0 0
  %244 = vmatprep.subr.bf16.mxu0 0
  %245 = vmatpush1.bf16.msra.mxu0 0
  %246 = vmatprep.subr.bf16.mxu0 0
  %247 = vmatpush1.bf16.msra.mxu0 0
  %248 = vmatprep.subr.bf16.mxu0 0
  %249 = vmatpush1.bf16.msra.mxu0 0
  %250 = vmatprep.subr.bf16.mxu0 0
  %251 = vmatpush1.bf16.msra.mxu0 0
  %252 = vmatprep.subr.bf16.mxu0 0
  %253 = vmatpush1.bf16.msra.mxu0 0
  %254 = vmatprep.subr.bf16.mxu0 0
  %255 = vmatpush1.bf16.msra.mxu0 0
  %256 = vmatprep.subr.bf16.mxu0 0
  %257 = vmatpush1.bf16.msra.mxu0 0
  %258 = vmatprep.subr.bf16.mxu0 0
  %259 = vmatpush1.bf16.msra.mxu0 0
  %260 = vmatprep.subr.bf16.mxu0 0
  %261 = vmatpush1.bf16.msra.mxu0 0
  %262 = vmatprep.subr.bf16.mxu0 0
  %263 = vmatpush1.bf16.msra.mxu0 0
  %264 = vmatprep.subr.bf16.mxu0 0
  %265 = vmatpush1.bf16.msra.mxu0 0
  %266 = vmatprep.subr.bf16.mxu0 0
  %267 = vmatpush1.bf16.msra.mxu0 0
  %268 = vmatprep.mubr.bf16.mxu0 0
  %269 = vmatmul.mubr.bf16.gmra.mrb[0].mxu0 %v182
  %v270 = vpop.f32.mrb[0].mxu0
  %v271 = vadd.f32 %v99, %v270
  %v272 = vpop.f32.mrb[0].mxu0
  %v273 = vpop.f32.mrb[0].mxu0
  %v274 = vadd.f32 %v99, %v273
  %v275 = vpop.f32.mrb[0].mxu0
  %276 = vmatprep.mubr.bf16.mxu0 0
  %277 = vmatmul.mubr.bf16.gmra.mrb[0].mxu0 %v185
  %v278 = vpop.f32.mrb[0].mxu0
  %v279 = vadd.f32 %v99, %v278
  %v280 = vpop.f32.mrb[0].mxu0
  %v281 = vpop.f32.mrb[0].mxu0
  %v282 = vadd.f32 %v99, %v281
  %v283 = vpop.f32.mrb[0].mxu0
  %284 = vmatprep.mubr.bf16.mxu0 0
  %285 = vmatmul.mubr.bf16.gmra.mrb[0].mxu0 %v188
  %v286 = vpop.f32.mrb[0].mxu0
  %v287 = vadd.f32 %v99, %v286
  %v288 = vpop.f32.mrb[0].mxu0
  %v289 = vpop.f32.mrb[0].mxu0
  %v290 = vadd.f32 %v99, %v289
  %v291 = vpop.f32.mrb[0].mxu0
  %292 = vmatprep.mubr.bf16.mxu0 0
  %293 = vmatmul.mubr.bf16.gmra.mrb[0].mxu0 %v191
  %v294 = vpop.f32.mrb[0].mxu0
  %v295 = vadd.f32 %v99, %v294
  %v296 = vpop.f32.mrb[0].mxu0
  %v297 = vpop.f32.mrb[0].mxu0
  %v298 = vadd.f32 %v99, %v297
  %v299 = vpop.f32.mrb[0].mxu0
  %300 = vmatprep.mubr.bf16.mxu0 0
  %301 = vmatmul.mubr.bf16.gmra.mrb[0].mxu0 %v194
  %v302 = vpop.f32.mrb[0].mxu0
  %v303 = vadd.f32 %v99, %v302
  %v304 = vpop.f32.mrb[0].mxu0
  %v305 = vpop.f32.mrb[0].mxu0
  %v306 = vadd.f32 %v99, %v305
  %v307 = vpop.f32.mrb[0].mxu0
  %308 = vmatprep.mubr.bf16.mxu0 0
  %309 = vmatmul.mubr.bf16.gmra.mrb[0].mxu0 %v197
  %v310 = vpop.f32.mrb[0].mxu0
  %v311 = vadd.f32 %v99, %v310
  %v312 = vpop.f32.mrb[0].mxu0
  %v313 = vpop.f32.mrb[0].mxu0
  %v314 = vadd.f32 %v99, %v313
  %v315 = vpop.f32.mrb[0].mxu0
  %316 = vmatprep.mubr.bf16.mxu0 0
  %317 = vmatmul.mubr.bf16.gmra.mrb[0].mxu0 %v200
  %v318 = vpop.f32.mrb[0].mxu0
  %v319 = vadd.f32 %v99, %v318
  %v320 = vpop.f32.mrb[0].mxu0
  %v321 = vpop.f32.mrb[0].mxu0
  %v322 = vadd.f32 %v99, %v321
  %v323 = vpop.f32.mrb[0].mxu0
  %324 = vmatprep.mubr.bf16.mxu0 0
  %325 = vmatmul.mubr.bf16.gmra.mrb[0].mxu0 %v203
  %v326 = vpop.f32.mrb[0].mxu0
  %v327 = vadd.f32 %v99, %v326
  %v328 = vpop.f32.mrb[0].mxu0
  %v329 = vpop.f32.mrb[0].mxu0
  %v330 = vadd.f32 %v99, %v329
  %v331 = vpop.f32.mrb[0].mxu0
  %332 = vmatprep.mubr.bf16.mxu0 0
  %333 = vmatmul.mubr.bf16.gmra.mrb[0].mxu0 %v206
  %v334 = vpop.f32.mrb[0].mxu0
  %v335 = vadd.f32 %v99, %v334
  %v336 = vpop.f32.mrb[0].mxu0
  %v337 = vpop.f32.mrb[0].mxu0
  %v338 = vadd.f32 %v99, %v337
  %v339 = vpop.f32.mrb[0].mxu0
  %340 = vmatprep.mubr.bf16.mxu0 0
  %341 = vmatmul.mubr.bf16.gmra.mrb[0].mxu0 %v209
  %v342 = vpop.f32.mrb[0].mxu0
  %v343 = vadd.f32 %v99, %v342
  %v344 = vpop.f32.mrb[0].mxu0
  %v345 = vpop.f32.mrb[0].mxu0
  %v346 = vadd.f32 %v99, %v345
  %v347 = vpop.f32.mrb[0].mxu0
  %348 = vmatprep.mubr.bf16.mxu0 0
  %349 = vmatmul.mubr.bf16.gmra.mrb[0].mxu0 %v212
  %v350 = vpop.f32.mrb[0].mxu0
  %v351 = vadd.f32 %v99, %v350
  %v352 = vpop.f32.mrb[0].mxu0
  %v353 = vpop.f32.mrb[0].mxu0
  %v354 = vadd.f32 %v99, %v353
  %v355 = vpop.f32.mrb[0].mxu0
  %356 = vmatprep.mubr.bf16.mxu0 0
  %357 = vmatmul.mubr.bf16.gmra.mrb[0].mxu0 %v215
  %v358 = vpop.f32.mrb[0].mxu0
  %v359 = vadd.f32 %v99, %v358
  %v360 = vpop.f32.mrb[0].mxu0
  %v361 = vpop.f32.mrb[0].mxu0
  %v362 = vadd.f32 %v99, %v361
  %v363 = vpop.f32.mrb[0].mxu0
  %364 = vmatprep.mubr.bf16.mxu0 0
  %365 = vmatmul.mubr.bf16.gmra.mrb[0].mxu0 %v218
  %v366 = vpop.f32.mrb[0].mxu0
  %v367 = vadd.f32 %v99, %v366
  %v368 = vpop.f32.mrb[0].mxu0
  %v369 = vpop.f32.mrb[0].mxu0
  %v370 = vadd.f32 %v99, %v369
  %v371 = vpop.f32.mrb[0].mxu0
  %372 = vmatprep.mubr.bf16.mxu0 0
  %373 = vmatmul.mubr.bf16.gmra.mrb[0].mxu0 %v221
  %v374 = vpop.f32.mrb[0].mxu0
  %v375 = vadd.f32 %v99, %v374
  %v376 = vpop.f32.mrb[0].mxu0
  %v377 = vpop.f32.mrb[0].mxu0
  %v378 = vadd.f32 %v99, %v377
  %v379 = vpop.f32.mrb[0].mxu0
  %380 = vmatprep.mubr.bf16.mxu0 0
  %381 = vmatmul.mubr.bf16.gmra.mrb[0].mxu0 %v224
  %v382 = vpop.f32.mrb[0].mxu0
  %v383 = vadd.f32 %v99, %v382
  %v384 = vpop.f32.mrb[0].mxu0
  %v385 = vpop.f32.mrb[0].mxu0
  %v386 = vadd.f32 %v99, %v385
  %v387 = vpop.f32.mrb[0].mxu0
  %388 = vmatprep.mubr.bf16.mxu0 0
  %389 = vmatmul.mubr.bf16.gmra.mrb[0].mxu0 %v227
  %v390 = vpop.f32.mrb[0].mxu0
  %v391 = vadd.f32 %v99, %v390
  %v392 = vpop.f32.mrb[0].mxu0
  %v393 = vpop.f32.mrb[0].mxu0
  %v394 = vadd.f32 %v99, %v393
  %v395 = vpop.f32.mrb[0].mxu0
  %396 = vdwg.mxu0
  %v397 = vld [vmem:[%s3] sm:$0xf]
  %v398 = vld [vmem:[%s3 + $0x4] sm:$0xf]
  %v399 = vld [vmem:[%s3 + $0x8] sm:$0xf]
  %v400 = vld [vmem:[%s3 + $0xc] sm:$0xf]
  %v401 = vld [vmem:[%s3 + $0x10] sm:$0xf]
  %v402 = vld [vmem:[%s3 + $0x14] sm:$0x1]
  %v403 = vlaneseq
  %v404 = vshrl.u32 %v403, 7
  %v405 = vsub.s32 1, %v404
  %v406 = vrot.slane %v94, %v405
  %v439 = vunpack.c.l.b16 %v62
  %v440 = vunpack.c.l.b16 %v63
  %v441 = vunpack.c.l.b16 %v64
  %v442 = vunpack.c.l.b16 %v65
  %v443 = vunpack.c.l.b16 %v66
  %v444 = vunpack.c.l.b16 %v67
  %v445 = vunpack.c.l.b16 %v68
  %v446 = vunpack.c.l.b16 %v69
  %v447 = vunpack.c.l.b16 %v70
  %v448 = vunpack.c.l.b16 %v71
  %v449 = vunpack.c.l.b16 %v72
  %v450 = vunpack.c.l.b16 %v73
  %v451 = vunpack.c.l.b16 %v74
  %v452 = vunpack.c.l.b16 %v75
  %v453 = vunpack.c.l.b16 %v76
  %v454 = vunpack.c.l.b16 %v77
  %v455 = vunpack.c.l.b16 %v78
  %v456 = vunpack.c.l.b16 %v79
  %v457 = vunpack.c.l.b16 %v80
  %v458 = vunpack.c.l.b16 %v81
  %v459 = vunpack.c.l.b16 %v82
  %v460 = vunpack.c.l.b16 %v83
  %v461 = vunpack.c.l.b16 %v84
  %v462 = vunpack.c.l.b16 %v85
  %v463 = vunpack.c.l.b16 %v86
  %v464 = vunpack.c.l.b16 %v87
  %v465 = vunpack.c.l.b16 %v88
  %v466 = vunpack.c.l.b16 %v89
  %v467 = vunpack.c.l.b16 %v90
  %v468 = vunpack.c.l.b16 %v91
  %v469 = vunpack.c.l.b16 %v92
  %v470 = vunpack.c.l.b16 %v93
  %v471 = vpack.c.b16 %v440, %v439
  %v472 = vpack.c.b16 %v442, %v441
  %v473 = vpack.c.b16 %v444, %v443
  %v474 = vpack.c.b16 %v446, %v445
  %v475 = vpack.c.b16 %v448, %v447
  %v476 = vpack.c.b16 %v450, %v449
  %v477 = vpack.c.b16 %v452, %v451
  %v478 = vpack.c.b16 %v454, %v453
  %v479 = vpack.c.b16 %v456, %v455
  %v480 = vpack.c.b16 %v458, %v457
  %v481 = vpack.c.b16 %v460, %v459
  %v482 = vpack.c.b16 %v462, %v461
  %v483 = vpack.c.b16 %v464, %v463
  %v484 = vpack.c.b16 %v466, %v465
  %v485 = vpack.c.b16 %v468, %v467
  %v486 = vpack.c.b16 %v470, %v469
  %v493 = vunpack.c.l.b16 %v397
  %v494 = vunpack.c.l.b16 %v398
  %v495 = vunpack.c.l.b16 %v399
  %v496 = vunpack.c.l.b16 %v400
  %v497 = vunpack.c.l.b16 %v401
  %v498 = vunpack.c.l.b16 %v402
  %v499 = vpack.c.b16 %v494, %v493
  %v500 = vpack.c.b16 %v496, %v495
  %v501 = vpack.c.b16 %v498, %v497
  %vm504 = vcmask 334848
  %v506 = vsel %vm504, %v471, 0
  %v509 = vsel %vm504, %v472, 0
  %v512 = vsel %vm504, %v473, 0
  %v515 = vsel %vm504, %v474, 0
  %v518 = vsel %vm504, %v475, 0
  %v521 = vsel %vm504, %v476, 0
  %v524 = vsel %vm504, %v477, 0
  %v527 = vsel %vm504, %v478, 0
  %v530 = vsel %vm504, %v479, 0
  %v533 = vsel %vm504, %v480, 0
  %v536 = vsel %vm504, %v481, 0
  %v539 = vsel %vm504, %v482, 0
  %v542 = vsel %vm504, %v483, 0
  %v545 = vsel %vm504, %v484, 0
  %v548 = vsel %vm504, %v485, 0
  %v551 = vsel %vm504, %v486, 0
  %vm553 = vcmask 1044480
  %v554 = vsel %vm230, 4294967295, 65535
  %v555 = vsel %vm553, %v554, 0
  %v557 = vand.u32 %v501, %v555
  %559 = vmatprep.subr.bf16.mxu0 0
  %560 = vmatpush1.bf16.msra.mxu0 %v499
  %561 = vmatprep.subr.bf16.mxu0 0
  %562 = vmatpush1.bf16.msra.mxu0 %v500
  %563 = vmatprep.subr.bf16.mxu0 0
  %564 = vmatpush1.bf16.msra.mxu0 %v557
  %565 = vmatprep.subr.bf16.mxu0 0
  %566 = vmatpush1.bf16.msra.mxu0 0
  %567 = vmatprep.subr.bf16.mxu0 0
  %568 = vmatpush1.bf16.msra.mxu0 0
  %569 = vmatprep.subr.bf16.mxu0 0
  %570 = vmatpush1.bf16.msra.mxu0 0
  %571 = vmatprep.subr.bf16.mxu0 0
  %572 = vmatpush1.bf16.msra.mxu0 0
  %573 = vmatprep.subr.bf16.mxu0 0
  %574 = vmatpush1.bf16.msra.mxu0 0
  %575 = vmatprep.subr.bf16.mxu0 0
  %576 = vmatpush1.bf16.msra.mxu0 0
  %577 = vmatprep.subr.bf16.mxu0 0
  %578 = vmatpush1.bf16.msra.mxu0 0
  %579 = vmatprep.subr.bf16.mxu0 0
  %580 = vmatpush1.bf16.msra.mxu0 0
  %581 = vmatprep.subr.bf16.mxu0 0
  %582 = vmatpush1.bf16.msra.mxu0 0
  %583 = vmatprep.subr.bf16.mxu0 0
  %584 = vmatpush1.bf16.msra.mxu0 0
  %585 = vmatprep.subr.bf16.mxu0 0
  %586 = vmatpush1.bf16.msra.mxu0 0
  %587 = vmatprep.subr.bf16.mxu0 0
  %588 = vmatpush1.bf16.msra.mxu0 0
  %589 = vmatprep.subr.bf16.mxu0 0
  %590 = vmatpush1.bf16.msra.mxu0 0
  %591 = vmatprep.mubr.bf16.mxu0 0
  %592 = vmatmul.mubr.bf16.gmra.mrb[0].mxu0 %v506
  %v593 = vpop.f32.mrb[0].mxu0
  %v594 = vadd.f32 %v406, %v593
  %v595 = vpop.f32.mrb[0].mxu0
  %v596 = vpop.f32.mrb[0].mxu0
  %v597 = vadd.f32 %v406, %v596
  %v598 = vpop.f32.mrb[0].mxu0
  %599 = vmatprep.mubr.bf16.mxu0 0
  %600 = vmatmul.mubr.bf16.gmra.mrb[0].mxu0 %v509
  %v601 = vpop.f32.mrb[0].mxu0
  %v602 = vadd.f32 %v406, %v601
  %v603 = vpop.f32.mrb[0].mxu0
  %v604 = vpop.f32.mrb[0].mxu0
  %v605 = vadd.f32 %v406, %v604
  %v606 = vpop.f32.mrb[0].mxu0
  %607 = vmatprep.mubr.bf16.mxu0 0
  %608 = vmatmul.mubr.bf16.gmra.mrb[0].mxu0 %v512
  %v609 = vpop.f32.mrb[0].mxu0
  %v610 = vadd.f32 %v406, %v609
  %v611 = vpop.f32.mrb[0].mxu0
  %v612 = vpop.f32.mrb[0].mxu0
  %v613 = vadd.f32 %v406, %v612
  %v614 = vpop.f32.mrb[0].mxu0
  %615 = vmatprep.mubr.bf16.mxu0 0
  %616 = vmatmul.mubr.bf16.gmra.mrb[0].mxu0 %v515
  %v617 = vpop.f32.mrb[0].mxu0
  %v618 = vadd.f32 %v406, %v617
  %v619 = vpop.f32.mrb[0].mxu0
  %v620 = vpop.f32.mrb[0].mxu0
  %v621 = vadd.f32 %v406, %v620
  %v622 = vpop.f32.mrb[0].mxu0
  %623 = vmatprep.mubr.bf16.mxu0 0
  %624 = vmatmul.mubr.bf16.gmra.mrb[0].mxu0 %v518
  %v625 = vpop.f32.mrb[0].mxu0
  %v626 = vadd.f32 %v406, %v625
  %v627 = vpop.f32.mrb[0].mxu0
  %v628 = vpop.f32.mrb[0].mxu0
  %v629 = vadd.f32 %v406, %v628
  %v630 = vpop.f32.mrb[0].mxu0
  %631 = vmatprep.mubr.bf16.mxu0 0
  %632 = vmatmul.mubr.bf16.gmra.mrb[0].mxu0 %v521
  %v633 = vpop.f32.mrb[0].mxu0
  %v634 = vadd.f32 %v406, %v633
  %v635 = vpop.f32.mrb[0].mxu0
  %v636 = vpop.f32.mrb[0].mxu0
  %v637 = vadd.f32 %v406, %v636
  %v638 = vpop.f32.mrb[0].mxu0
  %639 = vmatprep.mubr.bf16.mxu0 0
  %640 = vmatmul.mubr.bf16.gmra.mrb[0].mxu0 %v524
  %v641 = vpop.f32.mrb[0].mxu0
  %v642 = vadd.f32 %v406, %v641
  %v643 = vpop.f32.mrb[0].mxu0
  %v644 = vpop.f32.mrb[0].mxu0
  %v645 = vadd.f32 %v406, %v644
  %v646 = vpop.f32.mrb[0].mxu0
  %647 = vmatprep.mubr.bf16.mxu0 0
  %648 = vmatmul.mubr.bf16.gmra.mrb[0].mxu0 %v527
  %v649 = vpop.f32.mrb[0].mxu0
  %v650 = vadd.f32 %v406, %v649
  %v651 = vpop.f32.mrb[0].mxu0
  %v652 = vpop.f32.mrb[0].mxu0
  %v653 = vadd.f32 %v406, %v652
  %v654 = vpop.f32.mrb[0].mxu0
  %655 = vmatprep.mubr.bf16.mxu0 0
  %656 = vmatmul.mubr.bf16.gmra.mrb[0].mxu0 %v530
  %v657 = vpop.f32.mrb[0].mxu0
  %v658 = vadd.f32 %v406, %v657
  %v659 = vpop.f32.mrb[0].mxu0
  %v660 = vpop.f32.mrb[0].mxu0
  %v661 = vadd.f32 %v406, %v660
  %v662 = vpop.f32.mrb[0].mxu0
  %663 = vmatprep.mubr.bf16.mxu0 0
  %664 = vmatmul.mubr.bf16.gmra.mrb[0].mxu0 %v533
  %v665 = vpop.f32.mrb[0].mxu0
  %v666 = vadd.f32 %v406, %v665
  %v667 = vpop.f32.mrb[0].mxu0
  %v668 = vpop.f32.mrb[0].mxu0
  %v669 = vadd.f32 %v406, %v668
  %v670 = vpop.f32.mrb[0].mxu0
  %671 = vmatprep.mubr.bf16.mxu0 0
  %672 = vmatmul.mubr.bf16.gmra.mrb[0].mxu0 %v536
  %v673 = vpop.f32.mrb[0].mxu0
  %v674 = vadd.f32 %v406, %v673
  %v675 = vpop.f32.mrb[0].mxu0
  %v676 = vpop.f32.mrb[0].mxu0
  %v677 = vadd.f32 %v406, %v676
  %v678 = vpop.f32.mrb[0].mxu0
  %679 = vmatprep.mubr.bf16.mxu0 0
  %680 = vmatmul.mubr.bf16.gmra.mrb[0].mxu0 %v539
  %v681 = vpop.f32.mrb[0].mxu0
  %v682 = vadd.f32 %v406, %v681
  %v683 = vpop.f32.mrb[0].mxu0
  %v684 = vpop.f32.mrb[0].mxu0
  %v685 = vadd.f32 %v406, %v684
  %v686 = vpop.f32.mrb[0].mxu0
  %687 = vmatprep.mubr.bf16.mxu0 0
  %688 = vmatmul.mubr.bf16.gmra.mrb[0].mxu0 %v542
  %v689 = vpop.f32.mrb[0].mxu0
  %v690 = vadd.f32 %v406, %v689
  %v691 = vpop.f32.mrb[0].mxu0
  %v692 = vpop.f32.mrb[0].mxu0
  %v693 = vadd.f32 %v406, %v692
  %v694 = vpop.f32.mrb[0].mxu0
  %695 = vmatprep.mubr.bf16.mxu0 0
  %696 = vmatmul.mubr.bf16.gmra.mrb[0].mxu0 %v545
  %v697 = vpop.f32.mrb[0].mxu0
  %v698 = vadd.f32 %v406, %v697
  %v699 = vpop.f32.mrb[0].mxu0
  %v700 = vpop.f32.mrb[0].mxu0
  %v701 = vadd.f32 %v406, %v700
  %v702 = vpop.f32.mrb[0].mxu0
  %703 = vmatprep.mubr.bf16.mxu0 0
  %704 = vmatmul.mubr.bf16.gmra.mrb[0].mxu0 %v548
  %v705 = vpop.f32.mrb[0].mxu0
  %v706 = vadd.f32 %v406, %v705
  %v707 = vpop.f32.mrb[0].mxu0
  %v708 = vpop.f32.mrb[0].mxu0
  %v709 = vadd.f32 %v406, %v708
  %v710 = vpop.f32.mrb[0].mxu0
  %711 = vmatprep.mubr.bf16.mxu0 0
  %712 = vmatmul.mubr.bf16.gmra.mrb[0].mxu0 %v551
  %v713 = vpop.f32.mrb[0].mxu0
  %v714 = vadd.f32 %v406, %v713
  %v715 = vpop.f32.mrb[0].mxu0
  %v716 = vpop.f32.mrb[0].mxu0
  %v717 = vadd.f32 %v406, %v716
  %v718 = vpop.f32.mrb[0].mxu0
  %719 = vdwg.mxu0
  %v720 = vadd.f32 %v271, %v594
  %v721 = vadd.f32 %v274, %v597
  %v722 = vadd.f32 %v279, %v602
  %v723 = vadd.f32 %v282, %v605
  %v724 = vadd.f32 %v287, %v610
  %v725 = vadd.f32 %v290, %v613
  %v726 = vadd.f32 %v295, %v618
  %v727 = vadd.f32 %v298, %v621
  %v728 = vadd.f32 %v303, %v626
  %v729 = vadd.f32 %v306, %v629
  %v730 = vadd.f32 %v311, %v634
  %v731 = vadd.f32 %v314, %v637
  %v732 = vadd.f32 %v319, %v642
  %v733 = vadd.f32 %v322, %v645
  %v734 = vadd.f32 %v327, %v650
  %v735 = vadd.f32 %v330, %v653
  %v736 = vadd.f32 %v335, %v658
  %v737 = vadd.f32 %v338, %v661
  %v738 = vadd.f32 %v343, %v666
  %v739 = vadd.f32 %v346, %v669
  %v740 = vadd.f32 %v351, %v674
  %v741 = vadd.f32 %v354, %v677
  %v742 = vadd.f32 %v359, %v682
  %v743 = vadd.f32 %v362, %v685
  %v744 = vadd.f32 %v367, %v690
  %v745 = vadd.f32 %v370, %v693
  %v746 = vadd.f32 %v375, %v698
  %v747 = vadd.f32 %v378, %v701
  %v748 = vadd.f32 %v383, %v706
  %v749 = vadd.f32 %v386, %v709
  %v750 = vadd.f32 %v391, %v714
  %v751 = vadd.f32 %v394, %v717
  %v752 = vmax.f32 %v720, 0.0
  %v753 = vmax.f32 %v721, 0.0
  %v754 = vmax.f32 %v722, 0.0
  %v755 = vmax.f32 %v723, 0.0
  %v756 = vmax.f32 %v724, 0.0
  %v757 = vmax.f32 %v725, 0.0
  %v758 = vmax.f32 %v726, 0.0
  %v759 = vmax.f32 %v727, 0.0
  %v760 = vmax.f32 %v728, 0.0
  %v761 = vmax.f32 %v729, 0.0
  %v762 = vmax.f32 %v730, 0.0
  %v763 = vmax.f32 %v731, 0.0
  %v764 = vmax.f32 %v732, 0.0
  %v765 = vmax.f32 %v733, 0.0
  %v766 = vmax.f32 %v734, 0.0
  %v767 = vmax.f32 %v735, 0.0
  %v768 = vmax.f32 %v736, 0.0
  %v769 = vmax.f32 %v737, 0.0
  %v770 = vmax.f32 %v738, 0.0
  %v771 = vmax.f32 %v739, 0.0
  %v772 = vmax.f32 %v740, 0.0
  %v773 = vmax.f32 %v741, 0.0
  %v774 = vmax.f32 %v742, 0.0
  %v775 = vmax.f32 %v743, 0.0
  %v776 = vmax.f32 %v744, 0.0
  %v777 = vmax.f32 %v745, 0.0
  %v778 = vmax.f32 %v746, 0.0
  %v779 = vmax.f32 %v747, 0.0
  %v780 = vmax.f32 %v748, 0.0
  %v781 = vmax.f32 %v749, 0.0
  %v782 = vmax.f32 %v750, 0.0
  %v783 = vmax.f32 %v751, 0.0
  %v784 = vpack.c.bf16 %v753, %v752
  %v785 = vpack.c.bf16 %v755, %v754
  %v786 = vpack.c.bf16 %v757, %v756
  %v787 = vpack.c.bf16 %v759, %v758
  %v788 = vpack.c.bf16 %v761, %v760
  %v789 = vpack.c.bf16 %v763, %v762
  %v790 = vpack.c.bf16 %v765, %v764
  %v791 = vpack.c.bf16 %v767, %v766
  %v792 = vpack.c.bf16 %v769, %v768
  %v793 = vpack.c.bf16 %v771, %v770
  %v794 = vpack.c.bf16 %v773, %v772
  %v795 = vpack.c.bf16 %v775, %v774
  %v796 = vpack.c.bf16 %v777, %v776
  %v797 = vpack.c.bf16 %v779, %v778
  %v798 = vpack.c.bf16 %v781, %v780
  %v799 = vpack.c.bf16 %v783, %v782
  %v800 = vld [vmem:[%s4] sm:$0xf]
  %v801 = vld [vmem:[%s4 + $0x4] sm:$0xf]
  %v802 = vld [vmem:[%s4 + $0x8] sm:$0xf]
  %v803 = vld [vmem:[%s4 + $0xc] sm:$0xf]
  %v804 = vpack.c.bf16 %v597, %v594
  %v805 = vpack.c.bf16 %v605, %v602
  %v806 = vpack.c.bf16 %v613, %v610
  %v807 = vpack.c.bf16 %v621, %v618
  %v808 = vpack.c.bf16 %v629, %v626
  %v809 = vpack.c.bf16 %v637, %v634
  %v810 = vpack.c.bf16 %v645, %v642
  %v811 = vpack.c.bf16 %v653, %v650
  %v812 = vpack.c.bf16 %v661, %v658
  %v813 = vpack.c.bf16 %v669, %v666
  %v814 = vpack.c.bf16 %v677, %v674
  %v815 = vpack.c.bf16 %v685, %v682
  %v816 = vpack.c.bf16 %v693, %v690
  %v817 = vpack.c.bf16 %v701, %v698
  %v818 = vpack.c.bf16 %v709, %v706
  %v819 = vpack.c.bf16 %v717, %v714
  %v820 = vld [vmem:[%s5] sm:$0xf]
  %v821 = vld [vmem:[%s5 + $0x4] sm:$0xf]
  %v822 = vld [vmem:[%s5 + $0x8] sm:$0xf]
  %v823 = vld [vmem:[%s5 + $0xc] sm:$0xf]
  %v828 = vunpack.c.l.b16 %v820
  %v829 = vunpack.c.l.b16 %v821
  %v830 = vunpack.c.l.b16 %v822
  %v831 = vunpack.c.l.b16 %v823
  %v832 = vpack.c.b16 %v829, %v828
  %v833 = vpack.c.b16 %v831, %v830
  %vm836 = vcmask 261120
  %v838 = vsel %vm836, %v804, 0
  %v841 = vsel %vm836, %v805, 0
  %v844 = vsel %vm836, %v806, 0
  %v847 = vsel %vm836, %v807, 0
  %v850 = vsel %vm836, %v808, 0
  %v853 = vsel %vm836, %v809, 0
  %v856 = vsel %vm836, %v810, 0
  %v859 = vsel %vm836, %v811, 0
  %v862 = vsel %vm836, %v812, 0
  %v865 = vsel %vm836, %v813, 0
  %v868 = vsel %vm836, %v814, 0
  %v871 = vsel %vm836, %v815, 0
  %v874 = vsel %vm836, %v816, 0
  %v877 = vsel %vm836, %v817, 0
  %v880 = vsel %vm836, %v818, 0
  %v883 = vsel %vm836, %v819, 0
  %885 = vmatprep.subr.bf16.mxu0 0
  %886 = vmatpush1.bf16.msra.mxu0 %v832
  %887 = vmatprep.subr.bf16.mxu0 0
  %888 = vmatpush1.bf16.msra.mxu0 %v833
  %889 = vmatprep.subr.bf16.mxu0 0
  %890 = vmatpush1.bf16.msra.mxu0 0
  %891 = vmatprep.subr.bf16.mxu0 0
  %892 = vmatpush1.bf16.msra.mxu0 0
  %893 = vmatprep.subr.bf16.mxu0 0
  %894 = vmatpush1.bf16.msra.mxu0 0
  %895 = vmatprep.subr.bf16.mxu0 0
  %896 = vmatpush1.bf16.msra.mxu0 0
  %897 = vmatprep.subr.bf16.mxu0 0
  %898 = vmatpush1.bf16.msra.mxu0 0
  %899 = vmatprep.subr.bf16.mxu0 0
  %900 = vmatpush1.bf16.msra.mxu0 0
  %901 = vmatprep.subr.bf16.mxu0 0
  %902 = vmatpush1.bf16.msra.mxu0 0
  %903 = vmatprep.subr.bf16.mxu0 0
  %904 = vmatpush1.bf16.msra.mxu0 0
  %905 = vmatprep.subr.bf16.mxu0 0
  %906 = vmatpush1.bf16.msra.mxu0 0
  %907 = vmatprep.subr.bf16.mxu0 0
  %908 = vmatpush1.bf16.msra.mxu0 0
  %909 = vmatprep.subr.bf16.mxu0 0
  %910 = vmatpush1.bf16.msra.mxu0 0
  %911 = vmatprep.subr.bf16.mxu0 0
  %912 = vmatpush1.bf16.msra.mxu0 0
  %913 = vmatprep.subr.bf16.mxu0 0
  %914 = vmatpush1.bf16.msra.mxu0 0
  %915 = vmatprep.subr.bf16.mxu0 0
  %916 = vmatpush1.bf16.msra.mxu0 0
  %917 = vmatprep.mubr.bf16.mxu0 0
  %918 = vmatmul.mubr.bf16.gmra.mrb[0].mxu0 %v838
  %v919 = vpop.f32.mrb[0].mxu0
  %v920 = vadd.f32 0.0, %v919
  %v921 = vpop.f32.mrb[0].mxu0
  %v922 = vpop.f32.mrb[0].mxu0
  %v923 = vadd.f32 0.0, %v922
  %v924 = vpop.f32.mrb[0].mxu0
  %925 = vmatprep.mubr.bf16.mxu0 0
  %926 = vmatmul.mubr.bf16.gmra.mrb[0].mxu0 %v841
  %v927 = vpop.f32.mrb[0].mxu0
  %v928 = vadd.f32 0.0, %v927
  %v929 = vpop.f32.mrb[0].mxu0
  %v930 = vpop.f32.mrb[0].mxu0
  %v931 = vadd.f32 0.0, %v930
  %v932 = vpop.f32.mrb[0].mxu0
  %933 = vmatprep.mubr.bf16.mxu0 0
  %934 = vmatmul.mubr.bf16.gmra.mrb[0].mxu0 %v844
  %v935 = vpop.f32.mrb[0].mxu0
  %v936 = vadd.f32 0.0, %v935
  %v937 = vpop.f32.mrb[0].mxu0
  %v938 = vpop.f32.mrb[0].mxu0
  %v939 = vadd.f32 0.0, %v938
  %v940 = vpop.f32.mrb[0].mxu0
  %941 = vmatprep.mubr.bf16.mxu0 0
  %942 = vmatmul.mubr.bf16.gmra.mrb[0].mxu0 %v847
  %v943 = vpop.f32.mrb[0].mxu0
  %v944 = vadd.f32 0.0, %v943
  %v945 = vpop.f32.mrb[0].mxu0
  %v946 = vpop.f32.mrb[0].mxu0
  %v947 = vadd.f32 0.0, %v946
  %v948 = vpop.f32.mrb[0].mxu0
  %949 = vmatprep.mubr.bf16.mxu0 0
  %950 = vmatmul.mubr.bf16.gmra.mrb[0].mxu0 %v850
  %v951 = vpop.f32.mrb[0].mxu0
  %v952 = vadd.f32 0.0, %v951
  %v953 = vpop.f32.mrb[0].mxu0
  %v954 = vpop.f32.mrb[0].mxu0
  %v955 = vadd.f32 0.0, %v954
  %v956 = vpop.f32.mrb[0].mxu0
  %957 = vmatprep.mubr.bf16.mxu0 0
  %958 = vmatmul.mubr.bf16.gmra.mrb[0].mxu0 %v853
  %v959 = vpop.f32.mrb[0].mxu0
  %v960 = vadd.f32 0.0, %v959
  %v961 = vpop.f32.mrb[0].mxu0
  %v962 = vpop.f32.mrb[0].mxu0
  %v963 = vadd.f32 0.0, %v962
  %v964 = vpop.f32.mrb[0].mxu0
  %965 = vmatprep.mubr.bf16.mxu0 0
  %966 = vmatmul.mubr.bf16.gmra.mrb[0].mxu0 %v856
  %v967 = vpop.f32.mrb[0].mxu0
  %v968 = vadd.f32 0.0, %v967
  %v969 = vpop.f32.mrb[0].mxu0
  %v970 = vpop.f32.mrb[0].mxu0
  %v971 = vadd.f32 0.0, %v970
  %v972 = vpop.f32.mrb[0].mxu0
  %973 = vmatprep.mubr.bf16.mxu0 0
  %974 = vmatmul.mubr.bf16.gmra.mrb[0].mxu0 %v859
  %v975 = vpop.f32.mrb[0].mxu0
  %v976 = vadd.f32 0.0, %v975
  %v977 = vpop.f32.mrb[0].mxu0
  %v978 = vpop.f32.mrb[0].mxu0
  %v979 = vadd.f32 0.0, %v978
  %v980 = vpop.f32.mrb[0].mxu0
  %981 = vmatprep.mubr.bf16.mxu0 0
  %982 = vmatmul.mubr.bf16.gmra.mrb[0].mxu0 %v862
  %v983 = vpop.f32.mrb[0].mxu0
  %v984 = vadd.f32 0.0, %v983
  %v985 = vpop.f32.mrb[0].mxu0
  %v986 = vpop.f32.mrb[0].mxu0
  %v987 = vadd.f32 0.0, %v986
  %v988 = vpop.f32.mrb[0].mxu0
  %989 = vmatprep.mubr.bf16.mxu0 0
  %990 = vmatmul.mubr.bf16.gmra.mrb[0].mxu0 %v865
  %v991 = vpop.f32.mrb[0].mxu0
  %v992 = vadd.f32 0.0, %v991
  %v993 = vpop.f32.mrb[0].mxu0
  %v994 = vpop.f32.mrb[0].mxu0
  %v995 = vadd.f32 0.0, %v994
  %v996 = vpop.f32.mrb[0].mxu0
  %997 = vmatprep.mubr.bf16.mxu0 0
  %998 = vmatmul.mubr.bf16.gmra.mrb[0].mxu0 %v868
  %v999 = vpop.f32.mrb[0].mxu0
  %v1000 = vadd.f32 0.0, %v999
  %v1001 = vpop.f32.mrb[0].mxu0
  %v1002 = vpop.f32.mrb[0].mxu0
  %v1003 = vadd.f32 0.0, %v1002
  %v1004 = vpop.f32.mrb[0].mxu0
  %1005 = vmatprep.mubr.bf16.mxu0 0
  %1006 = vmatmul.mubr.bf16.gmra.mrb[0].mxu0 %v871
  %v1007 = vpop.f32.mrb[0].mxu0
  %v1008 = vadd.f32 0.0, %v1007
  %v1009 = vpop.f32.mrb[0].mxu0
  %v1010 = vpop.f32.mrb[0].mxu0
  %v1011 = vadd.f32 0.0, %v1010
  %v1012 = vpop.f32.mrb[0].mxu0
  %1013 = vmatprep.mubr.bf16.mxu0 0
  %1014 = vmatmul.mubr.bf16.gmra.mrb[0].mxu0 %v874
  %v1015 = vpop.f32.mrb[0].mxu0
  %v1016 = vadd.f32 0.0, %v1015
  %v1017 = vpop.f32.mrb[0].mxu0
  %v1018 = vpop.f32.mrb[0].mxu0
  %v1019 = vadd.f32 0.0, %v1018
  %v1020 = vpop.f32.mrb[0].mxu0
  %1021 = vmatprep.mubr.bf16.mxu0 0
  %1022 = vmatmul.mubr.bf16.gmra.mrb[0].mxu0 %v877
  %v1023 = vpop.f32.mrb[0].mxu0
  %v1024 = vadd.f32 0.0, %v1023
  %v1025 = vpop.f32.mrb[0].mxu0
  %v1026 = vpop.f32.mrb[0].mxu0
  %v1027 = vadd.f32 0.0, %v1026
  %v1028 = vpop.f32.mrb[0].mxu0
  %1029 = vmatprep.mubr.bf16.mxu0 0
  %1030 = vmatmul.mubr.bf16.gmra.mrb[0].mxu0 %v880
  %v1031 = vpop.f32.mrb[0].mxu0
  %v1032 = vadd.f32 0.0, %v1031
  %v1033 = vpop.f32.mrb[0].mxu0
  %v1034 = vpop.f32.mrb[0].mxu0
  %v1035 = vadd.f32 0.0, %v1034
  %v1036 = vpop.f32.mrb[0].mxu0
  %1037 = vmatprep.mubr.bf16.mxu0 0
  %1038 = vmatmul.mubr.bf16.gmra.mrb[0].mxu0 %v883
  %v1039 = vpop.f32.mrb[0].mxu0
  %v1040 = vadd.f32 0.0, %v1039
  %v1041 = vpop.f32.mrb[0].mxu0
  %v1042 = vpop.f32.mrb[0].mxu0
  %v1043 = vadd.f32 0.0, %v1042
  %v1044 = vpop.f32.mrb[0].mxu0
  %1045 = vdwg.mxu0
  %v1050 = vunpack.c.l.b16 %v800
  %v1051 = vunpack.c.l.b16 %v801
  %v1052 = vunpack.c.l.b16 %v802
  %v1053 = vunpack.c.l.b16 %v803
  %v1054 = vpack.c.b16 %v1051, %v1050
  %v1055 = vpack.c.b16 %v1053, %v1052
  %v1059 = vsel %vm836, %v784, 0
  %v1062 = vsel %vm836, %v785, 0
  %v1065 = vsel %vm836, %v786, 0
  %v1068 = vsel %vm836, %v787, 0
  %v1071 = vsel %vm836, %v788, 0
  %v1074 = vsel %vm836, %v789, 0
  %v1077 = vsel %vm836, %v790, 0
  %v1080 = vsel %vm836, %v791, 0
  %v1083 = vsel %vm836, %v792, 0
  %v1086 = vsel %vm836, %v793, 0
  %v1089 = vsel %vm836, %v794, 0
  %v1092 = vsel %vm836, %v795, 0
  %v1095 = vsel %vm836, %v796, 0
  %v1098 = vsel %vm836, %v797, 0
  %v1101 = vsel %vm836, %v798, 0
  %v1104 = vsel %vm836, %v799, 0
  %1106 = vmatprep.subr.bf16.mxu0 0
  %1107 = vmatpush1.bf16.msra.mxu0 %v1054
  %1108 = vmatprep.subr.bf16.mxu0 0
  %1109 = vmatpush1.bf16.msra.mxu0 %v1055
  %1110 = vmatprep.subr.bf16.mxu0 0
  %1111 = vmatpush1.bf16.msra.mxu0 0
  %1112 = vmatprep.subr.bf16.mxu0 0
  %1113 = vmatpush1.bf16.msra.mxu0 0
  %1114 = vmatprep.subr.bf16.mxu0 0
  %1115 = vmatpush1.bf16.msra.mxu0 0
  %1116 = vmatprep.subr.bf16.mxu0 0
  %1117 = vmatpush1.bf16.msra.mxu0 0
  %1118 = vmatprep.subr.bf16.mxu0 0
  %1119 = vmatpush1.bf16.msra.mxu0 0
  %1120 = vmatprep.subr.bf16.mxu0 0
  %1121 = vmatpush1.bf16.msra.mxu0 0
  %1122 = vmatprep.subr.bf16.mxu0 0
  %1123 = vmatpush1.bf16.msra.mxu0 0
  %1124 = vmatprep.subr.bf16.mxu0 0
  %1125 = vmatpush1.bf16.msra.mxu0 0
  %1126 = vmatprep.subr.bf16.mxu0 0
  %1127 = vmatpush1.bf16.msra.mxu0 0
  %1128 = vmatprep.subr.bf16.mxu0 0
  %1129 = vmatpush1.bf16.msra.mxu0 0
  %1130 = vmatprep.subr.bf16.mxu0 0
  %1131 = vmatpush1.bf16.msra.mxu0 0
  %1132 = vmatprep.subr.bf16.mxu0 0
  %1133 = vmatpush1.bf16.msra.mxu0 0
  %1134 = vmatprep.subr.bf16.mxu0 0
  %1135 = vmatpush1.bf16.msra.mxu0 0
  %1136 = vmatprep.subr.bf16.mxu0 0
  %1137 = vmatpush1.bf16.msra.mxu0 0
  %1138 = vmatprep.mubr.bf16.mxu0 0
  %1139 = vmatmul.mubr.bf16.gmra.mrb[0].mxu0 %v1059
  %v1140 = vpop.f32.mrb[0].mxu0
  %v1141 = vadd.f32 %v920, %v1140
  %v1142 = vpop.f32.mrb[0].mxu0
  %v1143 = vpop.f32.mrb[0].mxu0
  %v1144 = vadd.f32 %v923, %v1143
  %v1145 = vpop.f32.mrb[0].mxu0
  %1146 = vmatprep.mubr.bf16.mxu0 0
  %1147 = vmatmul.mubr.bf16.gmra.mrb[0].mxu0 %v1062
  %v1148 = vpop.f32.mrb[0].mxu0
  %v1149 = vadd.f32 %v928, %v1148
  %v1150 = vpop.f32.mrb[0].mxu0
  %v1151 = vpop.f32.mrb[0].mxu0
  %v1152 = vadd.f32 %v931, %v1151
  %v1153 = vpop.f32.mrb[0].mxu0
  %1154 = vmatprep.mubr.bf16.mxu0 0
  %1155 = vmatmul.mubr.bf16.gmra.mrb[0].mxu0 %v1065
  %v1156 = vpop.f32.mrb[0].mxu0
  %v1157 = vadd.f32 %v936, %v1156
  %v1158 = vpop.f32.mrb[0].mxu0
  %v1159 = vpop.f32.mrb[0].mxu0
  %v1160 = vadd.f32 %v939, %v1159
  %v1161 = vpop.f32.mrb[0].mxu0
  %1162 = vmatprep.mubr.bf16.mxu0 0
  %1163 = vmatmul.mubr.bf16.gmra.mrb[0].mxu0 %v1068
  %v1164 = vpop.f32.mrb[0].mxu0
  %v1165 = vadd.f32 %v944, %v1164
  %v1166 = vpop.f32.mrb[0].mxu0
  %v1167 = vpop.f32.mrb[0].mxu0
  %v1168 = vadd.f32 %v947, %v1167
  %v1169 = vpop.f32.mrb[0].mxu0
  %1170 = vmatprep.mubr.bf16.mxu0 0
  %1171 = vmatmul.mubr.bf16.gmra.mrb[0].mxu0 %v1071
  %v1172 = vpop.f32.mrb[0].mxu0
  %v1173 = vadd.f32 %v952, %v1172
  %v1174 = vpop.f32.mrb[0].mxu0
  %v1175 = vpop.f32.mrb[0].mxu0
  %v1176 = vadd.f32 %v955, %v1175
  %v1177 = vpop.f32.mrb[0].mxu0
  %1178 = vmatprep.mubr.bf16.mxu0 0
  %1179 = vmatmul.mubr.bf16.gmra.mrb[0].mxu0 %v1074
  %v1180 = vpop.f32.mrb[0].mxu0
  %v1181 = vadd.f32 %v960, %v1180
  %v1182 = vpop.f32.mrb[0].mxu0
  %v1183 = vpop.f32.mrb[0].mxu0
  %v1184 = vadd.f32 %v963, %v1183
  %v1185 = vpop.f32.mrb[0].mxu0
  %1186 = vmatprep.mubr.bf16.mxu0 0
  %1187 = vmatmul.mubr.bf16.gmra.mrb[0].mxu0 %v1077
  %v1188 = vpop.f32.mrb[0].mxu0
  %v1189 = vadd.f32 %v968, %v1188
  %v1190 = vpop.f32.mrb[0].mxu0
  %v1191 = vpop.f32.mrb[0].mxu0
  %v1192 = vadd.f32 %v971, %v1191
  %v1193 = vpop.f32.mrb[0].mxu0
  %1194 = vmatprep.mubr.bf16.mxu0 0
  %1195 = vmatmul.mubr.bf16.gmra.mrb[0].mxu0 %v1080
  %v1196 = vpop.f32.mrb[0].mxu0
  %v1197 = vadd.f32 %v976, %v1196
  %v1198 = vpop.f32.mrb[0].mxu0
  %v1199 = vpop.f32.mrb[0].mxu0
  %v1200 = vadd.f32 %v979, %v1199
  %v1201 = vpop.f32.mrb[0].mxu0
  %1202 = vmatprep.mubr.bf16.mxu0 0
  %1203 = vmatmul.mubr.bf16.gmra.mrb[0].mxu0 %v1083
  %v1204 = vpop.f32.mrb[0].mxu0
  %v1205 = vadd.f32 %v984, %v1204
  %v1206 = vpop.f32.mrb[0].mxu0
  %v1207 = vpop.f32.mrb[0].mxu0
  %v1208 = vadd.f32 %v987, %v1207
  %v1209 = vpop.f32.mrb[0].mxu0
  %1210 = vmatprep.mubr.bf16.mxu0 0
  %1211 = vmatmul.mubr.bf16.gmra.mrb[0].mxu0 %v1086
  %v1212 = vpop.f32.mrb[0].mxu0
  %v1213 = vadd.f32 %v992, %v1212
  %v1214 = vpop.f32.mrb[0].mxu0
  %v1215 = vpop.f32.mrb[0].mxu0
  %v1216 = vadd.f32 %v995, %v1215
  %v1217 = vpop.f32.mrb[0].mxu0
  %1218 = vmatprep.mubr.bf16.mxu0 0
  %1219 = vmatmul.mubr.bf16.gmra.mrb[0].mxu0 %v1089
  %v1220 = vpop.f32.mrb[0].mxu0
  %v1221 = vadd.f32 %v1000, %v1220
  %v1222 = vpop.f32.mrb[0].mxu0
  %v1223 = vpop.f32.mrb[0].mxu0
  %v1224 = vadd.f32 %v1003, %v1223
  %v1225 = vpop.f32.mrb[0].mxu0
  %1226 = vmatprep.mubr.bf16.mxu0 0
  %1227 = vmatmul.mubr.bf16.gmra.mrb[0].mxu0 %v1092
  %v1228 = vpop.f32.mrb[0].mxu0
  %v1229 = vadd.f32 %v1008, %v1228
  %v1230 = vpop.f32.mrb[0].mxu0
  %v1231 = vpop.f32.mrb[0].mxu0
  %v1232 = vadd.f32 %v1011, %v1231
  %v1233 = vpop.f32.mrb[0].mxu0
  %1234 = vmatprep.mubr.bf16.mxu0 0
  %1235 = vmatmul.mubr.bf16.gmra.mrb[0].mxu0 %v1095
  %v1236 = vpop.f32.mrb[0].mxu0
  %v1237 = vadd.f32 %v1016, %v1236
  %v1238 = vpop.f32.mrb[0].mxu0
  %v1239 = vpop.f32.mrb[0].mxu0
  %v1240 = vadd.f32 %v1019, %v1239
  %v1241 = vpop.f32.mrb[0].mxu0
  %1242 = vmatprep.mubr.bf16.mxu0 0
  %1243 = vmatmul.mubr.bf16.gmra.mrb[0].mxu0 %v1098
  %v1244 = vpop.f32.mrb[0].mxu0
  %v1245 = vadd.f32 %v1024, %v1244
  %v1246 = vpop.f32.mrb[0].mxu0
  %v1247 = vpop.f32.mrb[0].mxu0
  %v1248 = vadd.f32 %v1027, %v1247
  %v1249 = vpop.f32.mrb[0].mxu0
  %1250 = vmatprep.mubr.bf16.mxu0 0
  %1251 = vmatmul.mubr.bf16.gmra.mrb[0].mxu0 %v1101
  %v1252 = vpop.f32.mrb[0].mxu0
  %v1253 = vadd.f32 %v1032, %v1252
  %v1254 = vpop.f32.mrb[0].mxu0
  %v1255 = vpop.f32.mrb[0].mxu0
  %v1256 = vadd.f32 %v1035, %v1255
  %v1257 = vpop.f32.mrb[0].mxu0
  %1258 = vmatprep.mubr.bf16.mxu0 0
  %1259 = vmatmul.mubr.bf16.gmra.mrb[0].mxu0 %v1104
  %v1260 = vpop.f32.mrb[0].mxu0
  %v1261 = vadd.f32 %v1040, %v1260
  %v1262 = vpop.f32.mrb[0].mxu0
  %v1263 = vpop.f32.mrb[0].mxu0
  %v1264 = vadd.f32 %v1043, %v1263
  %v1265 = vpop.f32.mrb[0].mxu0
  %1266 = vdwg.mxu0
  %v1267 = vlaneseq
  %v1268 = vshrl.u32 %v1267, 7
  %v1269 = vsub.s32 2, %v1268
  %v1270 = vrot.slane %v94, %v1269
  %v1271 = vadd.f32 %v1141, %v1270
  %v1272 = vadd.f32 %v1144, %v1270
  %v1273 = vadd.f32 %v1149, %v1270
  %v1274 = vadd.f32 %v1152, %v1270
  %v1275 = vadd.f32 %v1157, %v1270
  %v1276 = vadd.f32 %v1160, %v1270
  %v1277 = vadd.f32 %v1165, %v1270
  %v1278 = vadd.f32 %v1168, %v1270
  %v1279 = vadd.f32 %v1173, %v1270
  %v1280 = vadd.f32 %v1176, %v1270
  %v1281 = vadd.f32 %v1181, %v1270
  %v1282 = vadd.f32 %v1184, %v1270
  %v1283 = vadd.f32 %v1189, %v1270
  %v1284 = vadd.f32 %v1192, %v1270
  %v1285 = vadd.f32 %v1197, %v1270
  %v1286 = vadd.f32 %v1200, %v1270
  %v1287 = vadd.f32 %v1205, %v1270
  %v1288 = vadd.f32 %v1208, %v1270
  %v1289 = vadd.f32 %v1213, %v1270
  %v1290 = vadd.f32 %v1216, %v1270
  %v1291 = vadd.f32 %v1221, %v1270
  %v1292 = vadd.f32 %v1224, %v1270
  %v1293 = vadd.f32 %v1229, %v1270
  %v1294 = vadd.f32 %v1232, %v1270
  %v1295 = vadd.f32 %v1237, %v1270
  %v1296 = vadd.f32 %v1240, %v1270
  %v1297 = vadd.f32 %v1245, %v1270
  %v1298 = vadd.f32 %v1248, %v1270
  %v1299 = vadd.f32 %v1253, %v1270
  %v1300 = vadd.f32 %v1256, %v1270
  %v1301 = vadd.f32 %v1261, %v1270
  %v1302 = vadd.f32 %v1264, %v1270
  %v1303 = vmax.f32 %v1271, 0.0
  %v1304 = vmax.f32 %v1272, 0.0
  %v1305 = vmax.f32 %v1273, 0.0
  %v1306 = vmax.f32 %v1274, 0.0
  %v1307 = vmax.f32 %v1275, 0.0
  %v1308 = vmax.f32 %v1276, 0.0
  %v1309 = vmax.f32 %v1277, 0.0
  %v1310 = vmax.f32 %v1278, 0.0
  %v1311 = vmax.f32 %v1279, 0.0
  %v1312 = vmax.f32 %v1280, 0.0
  %v1313 = vmax.f32 %v1281, 0.0
  %v1314 = vmax.f32 %v1282, 0.0
  %v1315 = vmax.f32 %v1283, 0.0
  %v1316 = vmax.f32 %v1284, 0.0
  %v1317 = vmax.f32 %v1285, 0.0
  %v1318 = vmax.f32 %v1286, 0.0
  %v1319 = vmax.f32 %v1287, 0.0
  %v1320 = vmax.f32 %v1288, 0.0
  %v1321 = vmax.f32 %v1289, 0.0
  %v1322 = vmax.f32 %v1290, 0.0
  %v1323 = vmax.f32 %v1291, 0.0
  %v1324 = vmax.f32 %v1292, 0.0
  %v1325 = vmax.f32 %v1293, 0.0
  %v1326 = vmax.f32 %v1294, 0.0
  %v1327 = vmax.f32 %v1295, 0.0
  %v1328 = vmax.f32 %v1296, 0.0
  %v1329 = vmax.f32 %v1297, 0.0
  %v1330 = vmax.f32 %v1298, 0.0
  %v1331 = vmax.f32 %v1299, 0.0
  %v1332 = vmax.f32 %v1300, 0.0
  %v1333 = vmax.f32 %v1301, 0.0
  %v1334 = vmax.f32 %v1302, 0.0
  %v1335 = vld [vmem:[%s6] sm:$0xf]
  %v1336 = vlaneseq
  %v1337 = vshrl.u32 %v1336, 7
  %v1338 = vsub.s32 3, %v1337
  %v1339 = vrot.slane %v94, %v1338
  %v1341 = vand.u32 %v1335, %v232
  %1343 = vmatprep.subr.bf16.mxu0 0
  %1344 = vmatpush1.bf16.msra.mxu0 %v1341
  %1345 = vmatprep.subr.bf16.mxu0 0
  %1346 = vmatpush1.bf16.msra.mxu0 0
  %1347 = vmatprep.subr.bf16.mxu0 0
  %1348 = vmatpush1.bf16.msra.mxu0 0
  %1349 = vmatprep.subr.bf16.mxu0 0
  %1350 = vmatpush1.bf16.msra.mxu0 0
  %1351 = vmatprep.subr.bf16.mxu0 0
  %1352 = vmatpush1.bf16.msra.mxu0 0
  %1353 = vmatprep.subr.bf16.mxu0 0
  %1354 = vmatpush1.bf16.msra.mxu0 0
  %1355 = vmatprep.subr.bf16.mxu0 0
  %1356 = vmatpush1.bf16.msra.mxu0 0
  %1357 = vmatprep.subr.bf16.mxu0 0
  %1358 = vmatpush1.bf16.msra.mxu0 0
  %1359 = vmatprep.subr.bf16.mxu0 0
  %1360 = vmatpush1.bf16.msra.mxu0 0
  %1361 = vmatprep.subr.bf16.mxu0 0
  %1362 = vmatpush1.bf16.msra.mxu0 0
  %1363 = vmatprep.subr.bf16.mxu0 0
  %1364 = vmatpush1.bf16.msra.mxu0 0
  %1365 = vmatprep.subr.bf16.mxu0 0
  %1366 = vmatpush1.bf16.msra.mxu0 0
  %1367 = vmatprep.subr.bf16.mxu0 0
  %1368 = vmatpush1.bf16.msra.mxu0 0
  %1369 = vmatprep.subr.bf16.mxu0 0
  %1370 = vmatpush1.bf16.msra.mxu0 0
  %1371 = vmatprep.subr.bf16.mxu0 0
  %1372 = vmatpush1.bf16.msra.mxu0 0
  %1373 = vmatprep.subr.bf16.mxu0 0
  %1374 = vmatpush1.bf16.msra.mxu0 0
  %1375 = vmatprep.mubr.bf16.mxu0 0
  %1376 = vmatmul.mubr.bf16.gmra.mrb[0].mxu0 %v182
  %v1377 = vpop.f32.mrb[0].mxu0
  %v1378 = vadd.f32 %v1339, %v1377
  %v1379 = vpop.f32.mrb[0].mxu0
  %v1380 = vpop.f32.mrb[0].mxu0
  %v1381 = vadd.f32 %v1339, %v1380
  %v1382 = vpop.f32.mrb[0].mxu0
  %1383 = vmatprep.mubr.bf16.mxu0 0
  %1384 = vmatmul.mubr.bf16.gmra.mrb[0].mxu0 %v185
  %v1385 = vpop.f32.mrb[0].mxu0
  %v1386 = vadd.f32 %v1339, %v1385
  %v1387 = vpop.f32.mrb[0].mxu0
  %v1388 = vpop.f32.mrb[0].mxu0
  %v1389 = vadd.f32 %v1339, %v1388
  %v1390 = vpop.f32.mrb[0].mxu0
  %1391 = vmatprep.mubr.bf16.mxu0 0
  %1392 = vmatmul.mubr.bf16.gmra.mrb[0].mxu0 %v188
  %v1393 = vpop.f32.mrb[0].mxu0
  %v1394 = vadd.f32 %v1339, %v1393
  %v1395 = vpop.f32.mrb[0].mxu0
  %v1396 = vpop.f32.mrb[0].mxu0
  %v1397 = vadd.f32 %v1339, %v1396
  %v1398 = vpop.f32.mrb[0].mxu0
  %1399 = vmatprep.mubr.bf16.mxu0 0
  %1400 = vmatmul.mubr.bf16.gmra.mrb[0].mxu0 %v191
  %v1401 = vpop.f32.mrb[0].mxu0
  %v1402 = vadd.f32 %v1339, %v1401
  %v1403 = vpop.f32.mrb[0].mxu0
  %v1404 = vpop.f32.mrb[0].mxu0
  %v1405 = vadd.f32 %v1339, %v1404
  %v1406 = vpop.f32.mrb[0].mxu0
  %1407 = vmatprep.mubr.bf16.mxu0 0
  %1408 = vmatmul.mubr.bf16.gmra.mrb[0].mxu0 %v194
  %v1409 = vpop.f32.mrb[0].mxu0
  %v1410 = vadd.f32 %v1339, %v1409
  %v1411 = vpop.f32.mrb[0].mxu0
  %v1412 = vpop.f32.mrb[0].mxu0
  %v1413 = vadd.f32 %v1339, %v1412
  %v1414 = vpop.f32.mrb[0].mxu0
  %1415 = vmatprep.mubr.bf16.mxu0 0
  %1416 = vmatmul.mubr.bf16.gmra.mrb[0].mxu0 %v197
  %v1417 = vpop.f32.mrb[0].mxu0
  %v1418 = vadd.f32 %v1339, %v1417
  %v1419 = vpop.f32.mrb[0].mxu0
  %v1420 = vpop.f32.mrb[0].mxu0
  %v1421 = vadd.f32 %v1339, %v1420
  %v1422 = vpop.f32.mrb[0].mxu0
  %1423 = vmatprep.mubr.bf16.mxu0 0
  %1424 = vmatmul.mubr.bf16.gmra.mrb[0].mxu0 %v200
  %v1425 = vpop.f32.mrb[0].mxu0
  %v1426 = vadd.f32 %v1339, %v1425
  %v1427 = vpop.f32.mrb[0].mxu0
  %v1428 = vpop.f32.mrb[0].mxu0
  %v1429 = vadd.f32 %v1339, %v1428
  %v1430 = vpop.f32.mrb[0].mxu0
  %1431 = vmatprep.mubr.bf16.mxu0 0
  %1432 = vmatmul.mubr.bf16.gmra.mrb[0].mxu0 %v203
  %v1433 = vpop.f32.mrb[0].mxu0
  %v1434 = vadd.f32 %v1339, %v1433
  %v1435 = vpop.f32.mrb[0].mxu0
  %v1436 = vpop.f32.mrb[0].mxu0
  %v1437 = vadd.f32 %v1339, %v1436
  %v1438 = vpop.f32.mrb[0].mxu0
  %1439 = vmatprep.mubr.bf16.mxu0 0
  %1440 = vmatmul.mubr.bf16.gmra.mrb[0].mxu0 %v206
  %v1441 = vpop.f32.mrb[0].mxu0
  %v1442 = vadd.f32 %v1339, %v1441
  %v1443 = vpop.f32.mrb[0].mxu0
  %v1444 = vpop.f32.mrb[0].mxu0
  %v1445 = vadd.f32 %v1339, %v1444
  %v1446 = vpop.f32.mrb[0].mxu0
  %1447 = vmatprep.mubr.bf16.mxu0 0
  %1448 = vmatmul.mubr.bf16.gmra.mrb[0].mxu0 %v209
  %v1449 = vpop.f32.mrb[0].mxu0
  %v1450 = vadd.f32 %v1339, %v1449
  %v1451 = vpop.f32.mrb[0].mxu0
  %v1452 = vpop.f32.mrb[0].mxu0
  %v1453 = vadd.f32 %v1339, %v1452
  %v1454 = vpop.f32.mrb[0].mxu0
  %1455 = vmatprep.mubr.bf16.mxu0 0
  %1456 = vmatmul.mubr.bf16.gmra.mrb[0].mxu0 %v212
  %v1457 = vpop.f32.mrb[0].mxu0
  %v1458 = vadd.f32 %v1339, %v1457
  %v1459 = vpop.f32.mrb[0].mxu0
  %v1460 = vpop.f32.mrb[0].mxu0
  %v1461 = vadd.f32 %v1339, %v1460
  %v1462 = vpop.f32.mrb[0].mxu0
  %1463 = vmatprep.mubr.bf16.mxu0 0
  %1464 = vmatmul.mubr.bf16.gmra.mrb[0].mxu0 %v215
  %v1465 = vpop.f32.mrb[0].mxu0
  %v1466 = vadd.f32 %v1339, %v1465
  %v1467 = vpop.f32.mrb[0].mxu0
  %v1468 = vpop.f32.mrb[0].mxu0
  %v1469 = vadd.f32 %v1339, %v1468
  %v1470 = vpop.f32.mrb[0].mxu0
  %1471 = vmatprep.mubr.bf16.mxu0 0
  %1472 = vmatmul.mubr.bf16.gmra.mrb[0].mxu0 %v218
  %v1473 = vpop.f32.mrb[0].mxu0
  %v1474 = vadd.f32 %v1339, %v1473
  %v1475 = vpop.f32.mrb[0].mxu0
  %v1476 = vpop.f32.mrb[0].mxu0
  %v1477 = vadd.f32 %v1339, %v1476
  %v1478 = vpop.f32.mrb[0].mxu0
  %1479 = vmatprep.mubr.bf16.mxu0 0
  %1480 = vmatmul.mubr.bf16.gmra.mrb[0].mxu0 %v221
  %v1481 = vpop.f32.mrb[0].mxu0
  %v1482 = vadd.f32 %v1339, %v1481
  %v1483 = vpop.f32.mrb[0].mxu0
  %v1484 = vpop.f32.mrb[0].mxu0
  %v1485 = vadd.f32 %v1339, %v1484
  %v1486 = vpop.f32.mrb[0].mxu0
  %1487 = vmatprep.mubr.bf16.mxu0 0
  %1488 = vmatmul.mubr.bf16.gmra.mrb[0].mxu0 %v224
  %v1489 = vpop.f32.mrb[0].mxu0
  %v1490 = vadd.f32 %v1339, %v1489
  %v1491 = vpop.f32.mrb[0].mxu0
  %v1492 = vpop.f32.mrb[0].mxu0
  %v1493 = vadd.f32 %v1339, %v1492
  %v1494 = vpop.f32.mrb[0].mxu0
  %1495 = vmatprep.mubr.bf16.mxu0 0
  %1496 = vmatmul.mubr.bf16.gmra.mrb[0].mxu0 %v227
  %v1497 = vpop.f32.mrb[0].mxu0
  %v1498 = vadd.f32 %v1339, %v1497
  %v1499 = vpop.f32.mrb[0].mxu0
  %v1500 = vpop.f32.mrb[0].mxu0
  %v1501 = vadd.f32 %v1339, %v1500
  %v1502 = vpop.f32.mrb[0].mxu0
  %1503 = vdwg.mxu0
  %v1504 = vadd.f32 %v1303, %v1378
  %v1505 = vadd.f32 %v1304, %v1381
  %v1506 = vadd.f32 %v1305, %v1386
  %v1507 = vadd.f32 %v1306, %v1389
  %v1508 = vadd.f32 %v1307, %v1394
  %v1509 = vadd.f32 %v1308, %v1397
  %v1510 = vadd.f32 %v1309, %v1402
  %v1511 = vadd.f32 %v1310, %v1405
  %v1512 = vadd.f32 %v1311, %v1410
  %v1513 = vadd.f32 %v1312, %v1413
  %v1514 = vadd.f32 %v1313, %v1418
  %v1515 = vadd.f32 %v1314, %v1421
  %v1516 = vadd.f32 %v1315, %v1426
  %v1517 = vadd.f32 %v1316, %v1429
  %v1518 = vadd.f32 %v1317, %v1434
  %v1519 = vadd.f32 %v1318, %v1437
  %v1520 = vadd.f32 %v1319, %v1442
  %v1521 = vadd.f32 %v1320, %v1445
  %v1522 = vadd.f32 %v1321, %v1450
  %v1523 = vadd.f32 %v1322, %v1453
  %v1524 = vadd.f32 %v1323, %v1458
  %v1525 = vadd.f32 %v1324, %v1461
  %v1526 = vadd.f32 %v1325, %v1466
  %v1527 = vadd.f32 %v1326, %v1469
  %v1528 = vadd.f32 %v1327, %v1474
  %v1529 = vadd.f32 %v1328, %v1477
  %v1530 = vadd.f32 %v1329, %v1482
  %v1531 = vadd.f32 %v1330, %v1485
  %v1532 = vadd.f32 %v1331, %v1490
  %v1533 = vadd.f32 %v1332, %v1493
  %v1534 = vadd.f32 %v1333, %v1498
  %v1535 = vadd.f32 %v1334, %v1501
  %1536 = vst.msk [vmem:[%s8] sm:$0xff] %vm836, %v1504
  %1537 = vst.msk [vmem:[%s8 + $0x8] sm:$0xff] %vm836, %v1505
  %1538 = vst.msk [vmem:[%s8 + $0x10] sm:$0xff] %vm836, %v1506
  %1539 = vst.msk [vmem:[%s8 + $0x18] sm:$0xff] %vm836, %v1507
  %1540 = vst.msk [vmem:[%s8 + $0x20] sm:$0xff] %vm836, %v1508
  %1541 = vst.msk [vmem:[%s8 + $0x28] sm:$0xff] %vm836, %v1509
  %1542 = vst.msk [vmem:[%s8 + $0x30] sm:$0xff] %vm836, %v1510
  %1543 = vst.msk [vmem:[%s8 + $0x38] sm:$0xff] %vm836, %v1511
  %1544 = vst.msk [vmem:[%s8 + $0x40] sm:$0xff] %vm836, %v1512
  %1545 = vst.msk [vmem:[%s8 + $0x48] sm:$0xff] %vm836, %v1513
  %1546 = vst.msk [vmem:[%s8 + $0x50] sm:$0xff] %vm836, %v1514
  %1547 = vst.msk [vmem:[%s8 + $0x58] sm:$0xff] %vm836, %v1515
  %1548 = vst.msk [vmem:[%s8 + $0x60] sm:$0xff] %vm836, %v1516
  %1549 = vst.msk [vmem:[%s8 + $0x68] sm:$0xff] %vm836, %v1517
  %1550 = vst.msk [vmem:[%s8 + $0x70] sm:$0xff] %vm836, %v1518
  %1551 = vst.msk [vmem:[%s8 + $0x78] sm:$0xff] %vm836, %v1519
  %1552 = vst.msk [vmem:[%s8 + $0x80] sm:$0xff] %vm836, %v1520
  %1553 = vst.msk [vmem:[%s8 + $0x88] sm:$0xff] %vm836, %v1521
  %1554 = vst.msk [vmem:[%s8 + $0x90] sm:$0xff] %vm836, %v1522
  %1555 = vst.msk [vmem:[%s8 + $0x98] sm:$0xff] %vm836, %v1523
  %1556 = vst.msk [vmem:[%s8 + $0xa0] sm:$0xff] %vm836, %v1524
  %1557 = vst.msk [vmem:[%s8 + $0xa8] sm:$0xff] %vm836, %v1525
  %1558 = vst.msk [vmem:[%s8 + $0xb0] sm:$0xff] %vm836, %v1526
  %1559 = vst.msk [vmem:[%s8 + $0xb8] sm:$0xff] %vm836, %v1527
  %1560 = vst.msk [vmem:[%s8 + $0xc0] sm:$0xff] %vm836, %v1528
  %1561 = vst.msk [vmem:[%s8 + $0xc8] sm:$0xff] %vm836, %v1529
  %1562 = vst.msk [vmem:[%s8 + $0xd0] sm:$0xff] %vm836, %v1530
  %1563 = vst.msk [vmem:[%s8 + $0xd8] sm:$0xff] %vm836, %v1531
  %1564 = vst.msk [vmem:[%s8 + $0xe0] sm:$0xff] %vm836, %v1532
  %1565 = vst.msk [vmem:[%s8 + $0xe8] sm:$0xff] %vm836, %v1533
  %1566 = vst.msk [vmem:[%s8 + $0xf0] sm:$0xff] %vm836, %v1534
  %1567 = vst.msk [vmem:[%s8 + $0xf8] sm:$0xff] %vm836, %v1535
  // Predicated region
  $region34: #{_lambda_.9} parent=0 // pred_check
    _
  $region35: #{_lambda_.9} parent=0 // pred_check_branch
    %1569 = sbr.rel (0) target = $region37
  $region36: #{_lambda_.9} parent=0 // pred_region
    _
  $region37: #{_lambda_.9} parent=0 // pred_fallthru
    _
  // Predicated region
  $region38: #{_lambda_.9} parent=0 // pred_check
    _
  $region39: #{_lambda_.9} parent=0 // pred_check_branch
    %1571 = sbr.rel (0) target = $region41
  $region40: #{_lambda_.9} parent=0 // pred_region
    _
  $region41: #{_lambda_.9} parent=0 // pred_fallthru
    _

// kernel: _lambda_.13
$region0: #{_lambda_.13}
  #allocation0 [shape = 'u32[]', space=smem, size = 0x4, offset = 0x4, fixed_abs, tag = 'smem constant byte address 0x4 - core index']
  #allocation1 [shape = 'u32[144,128]{1,0:T(1,128)}', space=vmem, size = 0x12000, scoped, tag = 'internal scratch']
  %s0 = inlined_call_operand.vmem [shape: bf16[12,16,32], index: 0, kind: input, shape index: {}]
  %s1 = inlined_call_operand.vmem [shape: f32[12,16,32], index: 1, kind: input, shape index: {}]
  %s2 = inlined_call_operand.vmem [shape: bf16[16,16], index: 2, kind: input, shape index: {}]
  %s3 = inlined_call_operand.vmem [shape: bf16[32,32], index: 3, kind: input, shape index: {}]
  %s4 = inlined_call_operand.vmem [shape: bf16[32,32], index: 4, kind: input, shape index: {}]
  %s5 = inlined_call_operand.vmem [shape: bf16[32,32], index: 5, kind: input, shape index: {}]
  %s6 = inlined_call_operand.vmem [shape: f32[16,32], index: 6, kind: input, shape index: {}]
  %s7 = inlined_call_operand.vmem [shape: f32[16,32], index: 7, kind: input, shape index: {}]
  %s8 = inlined_call_operand.vmem [shape: f32[16,32], index: 8, kind: input, shape index: {}]
  %s9 = inlined_call_operand.vmem [shape: f32[12,16,32], index: 9, kind: output, shape index: {}]
  %s10 = sld [smem:[#allocation0]]
  $region69: #{_lambda_.13} parent=0
    _
  %s12 = ssub.s32 1, %s10
  %s13 = scalar_select 0, %s12, %s10
  loop: start=0, step=1, limit=14
  $region2: #{_lambda_.13} parent=0 // loop_pre_header
    _
  $region3: #{_lambda_.13} parent=0 // loop_header
    %s15 = sphi 0, %s19
    %p16 = scmp.ge.s32.totalorder %s15, 14
    %s25 = sphi 0, %s27
    %s28 = sphi 0, %s25
    %s29 = sphi 0, %s28
    %s45 = sphi 0, %s29
    %s51 = sphi 0, %s53
    %s54 = sphi 0, %s51
    %s55 = sphi 0, %s54
    %s71 = sphi 0, %s55
    %s75 = sphi 0, %s75
    %s77 = sphi 0, %s75
    %s78 = sphi 0, %s77
    %s92 = sphi 0, %s78
    %s96 = sphi 0, %s96
    %s98 = sphi 0, %s96
    %s99 = sphi 0, %s98
    %s113 = sphi 0, %s99
    %s117 = sphi 0, %s117
    %s119 = sphi 0, %s117
    %s120 = sphi 0, %s119
    %s134 = sphi 0, %s120
    %s138 = sphi 0, %s138
    %s140 = sphi 0, %s138
    %s141 = sphi 0, %s140
    %s155 = sphi 0, %s141
    %s159 = sphi 0, %s159
    %s161 = sphi 0, %s159
    %s162 = sphi 0, %s161
    %s176 = sphi 0, %s162
    %s180 = sphi 0, %s180
    %s182 = sphi 0, %s180
    %s183 = sphi 0, %s182
    %s197 = sphi 0, %s183
    %s201 = sphi 0, %s201
    %s203 = sphi 0, %s201
    %s204 = sphi 0, %s203
    %s218 = sphi 0, %s204
    %s224 = sphi 0, %s226
    %s227 = sphi 0, %s224
    %s228 = sphi 0, %s227
    %s244 = sphi 0, %s228
  $region4: #{_lambda_.13} parent=0 // loop_header_branch
    %18 = sbr.rel (%p16) target = $region8
  $region5: #{_lambda_.13} parent=0 // loop_body
    %s20 = ssub.s32 %s15, 1
    %s21 = ssub.s32 %s15, 2
    %s22 = sadd.s32 %s15, 1
    %s23 = ssub.s32 %s15, %s22
    %p24 = scmp.eq.s32.totalorder %s23, 0
    %s26 = sadd.s32 %s25, 1
    %s27 = scalar_select %p24, %s25, %s26
    %p30 = pneg %p24
    %p31 = scmp.eq.s32.totalorder %s15, 11
    %p32 = por %p30, %p31
    %p33 = scmp.ne.s32.totalorder %s25, %s28
    %p34 = scmp.eq.s32.totalorder %s15, 0
    %p35 = por %p33, %p34
    %p36 = scmp.ne.s32.totalorder %s25, %s28
    %p37 = scmp.eq.s32.totalorder %s20, 11
    %p38 = por %p36, %p37
    %p39 = scmp.ne.s32.totalorder %s28, %s29
    %p40 = scmp.eq.s32.totalorder %s20, 0
    %p41 = por %p39, %p40
    %p42 = scmp.ne.s32.totalorder %s28, %s29
    %p43 = scmp.eq.s32.totalorder %s21, 11
    %p44 = por %p42, %p43
    %p46 = scmp.ne.s32.totalorder %s29, %s45
    %p47 = scmp.eq.s32.totalorder %s21, 0
    %p48 = por %p46, %p47
    %s49 = ssub.s32 %s15, %s22
    %p50 = scmp.eq.s32.totalorder %s49, 0
    %s52 = sadd.s32 %s51, 1
    %s53 = scalar_select %p50, %s51, %s52
    %p56 = pneg %p50
    %p57 = scmp.eq.s32.totalorder %s15, 11
    %p58 = por %p56, %p57
    %p59 = scmp.ne.s32.totalorder %s51, %s54
    %p60 = scmp.eq.s32.totalorder %s15, 0
    %p61 = por %p59, %p60
    %p62 = scmp.ne.s32.totalorder %s51, %s54
    %p63 = scmp.eq.s32.totalorder %s20, 11
    %p64 = por %p62, %p63
    %p65 = scmp.ne.s32.totalorder %s54, %s55
    %p66 = scmp.eq.s32.totalorder %s20, 0
    %p67 = por %p65, %p66
    %p68 = scmp.ne.s32.totalorder %s54, %s55
    %p69 = scmp.eq.s32.totalorder %s21, 11
    %p70 = por %p68, %p69
    %p72 = scmp.ne.s32.totalorder %s55, %s71
    %p73 = scmp.eq.s32.totalorder %s21, 0
    %p74 = por %p72, %p73
    %s76 = sadd.s32 %s75, 1
    %p79 = scmp.eq.s32.totalorder %s15, 11
    %p80 = scmp.ne.s32.totalorder %s75, %s77
    %p81 = scmp.eq.s32.totalorder %s15, 0
    %p82 = por %p80, %p81
    %p83 = scmp.ne.s32.totalorder %s75, %s77
    %p84 = scmp.eq.s32.totalorder %s20, 11
    %p85 = por %p83, %p84
    %p86 = scmp.ne.s32.totalorder %s77, %s78
    %p87 = scmp.eq.s32.totalorder %s20, 0
    %p88 = por %p86, %p87
    %p89 = scmp.ne.s32.totalorder %s77, %s78
    %p90 = scmp.eq.s32.totalorder %s21, 11
    %p91 = por %p89, %p90
    %p93 = scmp.ne.s32.totalorder %s78, %s92
    %p94 = scmp.eq.s32.totalorder %s21, 0
    %p95 = por %p93, %p94
    %s97 = sadd.s32 %s96, 1
    %p100 = scmp.eq.s32.totalorder %s15, 11
    %p101 = scmp.ne.s32.totalorder %s96, %s98
    %p102 = scmp.eq.s32.totalorder %s15, 0
    %p103 = por %p101, %p102
    %p104 = scmp.ne.s32.totalorder %s96, %s98
    %p105 = scmp.eq.s32.totalorder %s20, 11
    %p106 = por %p104, %p105
    %p107 = scmp.ne.s32.totalorder %s98, %s99
    %p108 = scmp.eq.s32.totalorder %s20, 0
    %p109 = por %p107, %p108
    %p110 = scmp.ne.s32.totalorder %s98, %s99
    %p111 = scmp.eq.s32.totalorder %s21, 11
    %p112 = por %p110, %p111
    %p114 = scmp.ne.s32.totalorder %s99, %s113
    %p115 = scmp.eq.s32.totalorder %s21, 0
    %p116 = por %p114, %p115
    %s118 = sadd.s32 %s117, 1
    %p121 = scmp.eq.s32.totalorder %s15, 11
    %p122 = scmp.ne.s32.totalorder %s117, %s119
    %p123 = scmp.eq.s32.totalorder %s15, 0
    %p124 = por %p122, %p123
    %p125 = scmp.ne.s32.totalorder %s117, %s119
    %p126 = scmp.eq.s32.totalorder %s20, 11
    %p127 = por %p125, %p126
    %p128 = scmp.ne.s32.totalorder %s119, %s120
    %p129 = scmp.eq.s32.totalorder %s20, 0
    %p130 = por %p128, %p129
    %p131 = scmp.ne.s32.totalorder %s119, %s120
    %p132 = scmp.eq.s32.totalorder %s21, 11
    %p133 = por %p131, %p132
    %p135 = scmp.ne.s32.totalorder %s120, %s134
    %p136 = scmp.eq.s32.totalorder %s21, 0
    %p137 = por %p135, %p136
    %s139 = sadd.s32 %s138, 1
    %p142 = scmp.eq.s32.totalorder %s15, 11
    %p143 = scmp.ne.s32.totalorder %s138, %s140
    %p144 = scmp.eq.s32.totalorder %s15, 0
    %p145 = por %p143, %p144
    %p146 = scmp.ne.s32.totalorder %s138, %s140
    %p147 = scmp.eq.s32.totalorder %s20, 11
    %p148 = por %p146, %p147
    %p149 = scmp.ne.s32.totalorder %s140, %s141
    %p150 = scmp.eq.s32.totalorder %s20, 0
    %p151 = por %p149, %p150
    %p152 = scmp.ne.s32.totalorder %s140, %s141
    %p153 = scmp.eq.s32.totalorder %s21, 11
    %p154 = por %p152, %p153
    %p156 = scmp.ne.s32.totalorder %s141, %s155
    %p157 = scmp.eq.s32.totalorder %s21, 0
    %p158 = por %p156, %p157
    %s160 = sadd.s32 %s159, 1
    %p163 = scmp.eq.s32.totalorder %s15, 11
    %p164 = scmp.ne.s32.totalorder %s159, %s161
    %p165 = scmp.eq.s32.totalorder %s15, 0
    %p166 = por %p164, %p165
    %p167 = scmp.ne.s32.totalorder %s159, %s161
    %p168 = scmp.eq.s32.totalorder %s20, 11
    %p169 = por %p167, %p168
    %p170 = scmp.ne.s32.totalorder %s161, %s162
    %p171 = scmp.eq.s32.totalorder %s20, 0
    %p172 = por %p170, %p171
    %p173 = scmp.ne.s32.totalorder %s161, %s162
    %p174 = scmp.eq.s32.totalorder %s21, 11
    %p175 = por %p173, %p174
    %p177 = scmp.ne.s32.totalorder %s162, %s176
    %p178 = scmp.eq.s32.totalorder %s21, 0
    %p179 = por %p177, %p178
    %s181 = sadd.s32 %s180, 1
    %p184 = scmp.eq.s32.totalorder %s15, 11
    %p185 = scmp.ne.s32.totalorder %s180, %s182
    %p186 = scmp.eq.s32.totalorder %s15, 0
    %p187 = por %p185, %p186
    %p188 = scmp.ne.s32.totalorder %s180, %s182
    %p189 = scmp.eq.s32.totalorder %s20, 11
    %p190 = por %p188, %p189
    %p191 = scmp.ne.s32.totalorder %s182, %s183
    %p192 = scmp.eq.s32.totalorder %s20, 0
    %p193 = por %p191, %p192
    %p194 = scmp.ne.s32.totalorder %s182, %s183
    %p195 = scmp.eq.s32.totalorder %s21, 11
    %p196 = por %p194, %p195
    %p198 = scmp.ne.s32.totalorder %s183, %s197
    %p199 = scmp.eq.s32.totalorder %s21, 0
    %p200 = por %p198, %p199
    %s202 = sadd.s32 %s201, 1
    %p205 = scmp.eq.s32.totalorder %s15, 11
    %p206 = scmp.ne.s32.totalorder %s201, %s203
    %p207 = scmp.eq.s32.totalorder %s15, 0
    %p208 = por %p206, %p207
    %p209 = scmp.ne.s32.totalorder %s201, %s203
    %p210 = scmp.eq.s32.totalorder %s20, 11
    %p211 = por %p209, %p210
    %p212 = scmp.ne.s32.totalorder %s203, %s204
    %p213 = scmp.eq.s32.totalorder %s20, 0
    %p214 = por %p212, %p213
    %p215 = scmp.ne.s32.totalorder %s203, %s204
    %p216 = scmp.eq.s32.totalorder %s21, 11
    %p217 = por %p215, %p216
    %p219 = scmp.ne.s32.totalorder %s204, %s218
    %p220 = scmp.eq.s32.totalorder %s21, 0
    %p221 = por %p219, %p220
    %s222 = ssub.s32 %s15, %s22
    %p223 = scmp.eq.s32.totalorder %s222, 0
    %s225 = sadd.s32 %s224, 1
    %s226 = scalar_select %p223, %s224, %s225
    %p229 = pneg %p223
    %p230 = scmp.eq.s32.totalorder %s15, 11
    %p231 = por %p229, %p230
    %p232 = scmp.ne.s32.totalorder %s224, %s227
    %p233 = scmp.eq.s32.totalorder %s15, 0
    %p234 = por %p232, %p233
    %p235 = scmp.ne.s32.totalorder %s224, %s227
    %p236 = scmp.eq.s32.totalorder %s20, 11
    %p237 = por %p235, %p236
    %p238 = scmp.ne.s32.totalorder %s227, %s228
    %p239 = scmp.eq.s32.totalorder %s20, 0
    %p240 = por %p238, %p239
    %p241 = scmp.ne.s32.totalorder %s227, %s228
    %p242 = scmp.eq.s32.totalorder %s21, 11
    %p243 = por %p241, %p242
    %p245 = scmp.ne.s32.totalorder %s228, %s244
    %p246 = scmp.eq.s32.totalorder %s21, 0
    %p247 = por %p245, %p246
    %p248 = scmp.le.s32.totalorder 1, %s15
    %p249 = scmp.lt.s32.totalorder %s15, 13
    %p250 = pnand %p248, %p249
    %p251 = pneg %p250
    // Predicated region
    $region9: #{_lambda_.13} parent=5 // pred_check
      _
    $region10: #{_lambda_.13} parent=5 // pred_check_branch
      %253 = sbr.rel (%p250) target = $region12
    $region11: #{_lambda_.13} parent=5 // pred_region
      %s254 = ssub.s32 %s15, 1
      // Predicated region
      $region13: #{_lambda_.13} parent=11 // pred_check
        %p255 = pneg %p88
      $region14: #{_lambda_.13} parent=11 // pred_check_branch
        %257 = sbr.rel (%p255) target = $region16
      $region15: #{_lambda_.13} parent=11 // pred_region
        _
      $region16: #{_lambda_.13} parent=11 // pred_fallthru
        _
      // Predicated region
      $region17: #{_lambda_.13} parent=11 // pred_check
        %p258 = pneg %p109
      $region18: #{_lambda_.13} parent=11 // pred_check_branch
        %260 = sbr.rel (%p258) target = $region20
      $region19: #{_lambda_.13} parent=11 // pred_region
        _
      $region20: #{_lambda_.13} parent=11 // pred_fallthru
        _
      // Predicated region
      $region21: #{_lambda_.13} parent=11 // pred_check
        %p261 = pneg %p130
      $region22: #{_lambda_.13} parent=11 // pred_check_branch
        %263 = sbr.rel (%p261) target = $region24
      $region23: #{_lambda_.13} parent=11 // pred_region
        _
      $region24: #{_lambda_.13} parent=11 // pred_fallthru
        _
      // Predicated region
      $region25: #{_lambda_.13} parent=11 // pred_check
        %p264 = pneg %p151
      $region26: #{_lambda_.13} parent=11 // pred_check_branch
        %266 = sbr.rel (%p264) target = $region28
      $region27: #{_lambda_.13} parent=11 // pred_region
        _
      $region28: #{_lambda_.13} parent=11 // pred_fallthru
        _
      // Predicated region
      $region29: #{_lambda_.13} parent=11 // pred_check
        %p267 = pneg %p172
      $region30: #{_lambda_.13} parent=11 // pred_check_branch
        %269 = sbr.rel (%p267) target = $region32
      $region31: #{_lambda_.13} parent=11 // pred_region
        _
      $region32: #{_lambda_.13} parent=11 // pred_fallthru
        _
      // Predicated region
      $region33: #{_lambda_.13} parent=11 // pred_check
        %p270 = pneg %p193
      $region34: #{_lambda_.13} parent=11 // pred_check_branch
        %272 = sbr.rel (%p270) target = $region36
      $region35: #{_lambda_.13} parent=11 // pred_region
        _
      $region36: #{_lambda_.13} parent=11 // pred_fallthru
        _
      // Predicated region
      $region37: #{_lambda_.13} parent=11 // pred_check
        %p273 = pneg %p214
      $region38: #{_lambda_.13} parent=11 // pred_check_branch
        %275 = sbr.rel (%p273) target = $region40
      $region39: #{_lambda_.13} parent=11 // pred_region
        _
      $region40: #{_lambda_.13} parent=11 // pred_fallthru
        _
    $region12: #{_lambda_.13} parent=5 // pred_fallthru
      _
    %p276 = scmp.lt.s32.totalorder %s15, 12
    // Predicated region
    $region41: #{_lambda_.13} parent=5 // pred_check
      %p277 = pneg %p276
    $region42: #{_lambda_.13} parent=5 // pred_check_branch
      %279 = sbr.rel (%p277) target = $region44
    $region43: #{_lambda_.13} parent=5 // pred_region
      // Predicated region
      $region45: #{_lambda_.13} parent=43 // pred_check
        %p280 = pneg %p35
      $region46: #{_lambda_.13} parent=43 // pred_check_branch
        %282 = sbr.rel (%p280) target = $region48
      $region47: #{_lambda_.13} parent=43 // pred_region
        %p283 = scmp.lt.s32.totalorder %s15, 11
        %s284 = scalar_select %p283, %s15, 11
        %s285 = smul.addr %s284, 2
        %s286 = smul.addr %s285, 4
        %s287 = scalar_lea.vmem %s0, %s286
      $region48: #{_lambda_.13} parent=43 // pred_fallthru
        _
      // Predicated region
      $region49: #{_lambda_.13} parent=43 // pred_check
        %p288 = pneg %p61
      $region50: #{_lambda_.13} parent=43 // pred_check_branch
        %290 = sbr.rel (%p288) target = $region52
      $region51: #{_lambda_.13} parent=43 // pred_region
        %p291 = scmp.lt.s32.totalorder %s15, 11
        %s292 = scalar_select %p291, %s15, 11
        %s293 = smul.addr %s292, 2
        %s294 = smul.addr %s293, 8
        %s295 = scalar_lea.vmem %s1, %s294
      $region52: #{_lambda_.13} parent=43 // pred_fallthru
        _
    $region44: #{_lambda_.13} parent=5 // pred_fallthru
      _
    %p296 = scmp.le.s32.totalorder 1, %s15
    %p297 = scmp.lt.s32.totalorder %s15, 13
    %p298 = pnand %p296, %p297
    %p299 = pneg %p298
    // Predicated region
    $region53: #{_lambda_.13} parent=5 // pred_check
      _
    $region54: #{_lambda_.13} parent=5 // pred_check_branch
      %301 = sbr.rel (%p298) target = $region56
    $region55: #{_lambda_.13} parent=5 // pred_region
      %s302 = ssub.s32 %s15, 1
      %p303 = scmp.lt.s32.totalorder %s20, 11
      %s304 = scalar_select %p303, %s20, 11
      %s305 = smul.addr %s304, 2
      %s306 = smul.addr %s305, 4
      %s307 = scalar_lea.vmem %s0, %s306
      %p308 = pneg %p41
      %p309 = pneg %p38
      %p310 = scmp.lt.s32.totalorder %s20, 11
      %s311 = scalar_select %p310, %s20, 11
      %s312 = smul.addr %s311, 2
      %s313 = smul.addr %s312, 8
      %s314 = scalar_lea.vmem %s1, %s313
      %p315 = pneg %p67
      %p316 = pneg %p64
      %p317 = pneg %p88
      %p318 = pneg %p85
      %p319 = pneg %p109
      %p320 = pneg %p106
      %p321 = pneg %p130
      %p322 = pneg %p127
      %p323 = pneg %p151
      %p324 = pneg %p148
      %p325 = pneg %p172
      %p326 = pneg %p169
      %p327 = pneg %p193
      %p328 = pneg %p190
      %p329 = pneg %p214
      %p330 = pneg %p211
      %p331 = pneg %p240
      %p332 = pneg %p237
      %p333 = scmp.lt.s32.totalorder %s20, 11
      %s334 = scalar_select %p333, %s20, 11
      %s335 = smul.addr %s334, 2
      %s336 = smul.addr %s335, 8
      %s337 = scalar_lea.vmem %s9, %s336
      %p338 = scmp.lt.s32.totalorder %s20, 11
      %s339 = scalar_select %p338, %s20, 11
      %s340 = smul.addr %s339, 2
      %s341 = smul.addr %s340, 4
      %s342 = scalar_lea.vmem %s0, %s341
      %p343 = scmp.lt.s32.totalorder %s20, 11
      %s344 = scalar_select %p343, %s20, 11
      %s345 = smul.addr %s344, 2
      %s346 = smul.addr %s345, 8
      %s347 = scalar_lea.vmem %s1, %s346
      %p348 = scmp.lt.s32.totalorder %s20, 11
      %s349 = scalar_select %p348, %s20, 11
      %s350 = smul.addr %s349, 2
      %s351 = smul.addr %s350, 8
      %s352 = scalar_lea.vmem %s9, %s351
      %v354 = vld [vmem:[%s342] sm:$0xf]
      %v355 = vld [vmem:[%s342 + $0x4] sm:$0xf]
      %v356 = vld [vmem:[%s3] sm:$0xf]
      %v357 = vld [vmem:[%s3 + $0x4] sm:$0xf]
      %v358 = vld [vmem:[%s3 + $0x8] sm:$0xf]
      %v359 = vld [vmem:[%s3 + $0xc] sm:$0xf]
      %v360 = vld [vmem:[%s6] sm:$0xff]
      %v361 = vld [vmem:[%s6 + $0x8] sm:$0xff]
      %v364 = vunpack.c.l.b16 %v354
      %v365 = vunpack.c.l.b16 %v355
      %v366 = vpack.c.b16 %v365, %v364
      %v371 = vunpack.c.l.b16 %v356
      %v372 = vunpack.c.l.b16 %v357
      %v373 = vunpack.c.l.b16 %v358
      %v374 = vunpack.c.l.b16 %v359
      %v375 = vpack.c.b16 %v372, %v371
      %v376 = vpack.c.b16 %v374, %v373
      %vm379 = vcmask 261120
      %v381 = vsel %vm379, %v366, 0
      %383 = vmatprep.subr.bf16.mxu0 0
      %384 = vmatpush1.bf16.msra.mxu0 %v375
      %385 = vmatprep.subr.bf16.mxu0 0
      %386 = vmatpush1.bf16.msra.mxu0 %v376
      %387 = vmatprep.subr.bf16.mxu0 0
      %388 = vmatpush1.bf16.msra.mxu0 0
      %389 = vmatprep.subr.bf16.mxu0 0
      %390 = vmatpush1.bf16.msra.mxu0 0
      %391 = vmatprep.subr.bf16.mxu0 0
      %392 = vmatpush1.bf16.msra.mxu0 0
      %393 = vmatprep.subr.bf16.mxu0 0
      %394 = vmatpush1.bf16.msra.mxu0 0
      %395 = vmatprep.subr.bf16.mxu0 0
      %396 = vmatpush1.bf16.msra.mxu0 0
      %397 = vmatprep.subr.bf16.mxu0 0
      %398 = vmatpush1.bf16.msra.mxu0 0
      %399 = vmatprep.subr.bf16.mxu0 0
      %400 = vmatpush1.bf16.msra.mxu0 0
      %401 = vmatprep.subr.bf16.mxu0 0
      %402 = vmatpush1.bf16.msra.mxu0 0
      %403 = vmatprep.subr.bf16.mxu0 0
      %404 = vmatpush1.bf16.msra.mxu0 0
      %405 = vmatprep.subr.bf16.mxu0 0
      %406 = vmatpush1.bf16.msra.mxu0 0
      %407 = vmatprep.subr.bf16.mxu0 0
      %408 = vmatpush1.bf16.msra.mxu0 0
      %409 = vmatprep.subr.bf16.mxu0 0
      %410 = vmatpush1.bf16.msra.mxu0 0
      %411 = vmatprep.subr.bf16.mxu0 0
      %412 = vmatpush1.bf16.msra.mxu0 0
      %413 = vmatprep.subr.bf16.mxu0 0
      %414 = vmatpush1.bf16.msra.mxu0 0
      %415 = vmatprep.mubr.bf16.mxu0 0
      %416 = vmatmul.mubr.bf16.gmra.mrb[0].mxu0 %v381
      %v417 = vpop.f32.mrb[0].mxu0
      %v418 = vadd.f32 %v360, %v417
      %v419 = vpop.f32.mrb[0].mxu0
      %v420 = vpop.f32.mrb[0].mxu0
      %v421 = vadd.f32 %v361, %v420
      %v422 = vpop.f32.mrb[0].mxu0
      %423 = vdwg.mxu0
      %v424 = vld [vmem:[%s4] sm:$0xf]
      %v425 = vld [vmem:[%s4 + $0x4] sm:$0xf]
      %v426 = vld [vmem:[%s4 + $0x8] sm:$0xf]
      %v427 = vld [vmem:[%s4 + $0xc] sm:$0xf]
      %v428 = vld [vmem:[%s7] sm:$0xff]
      %v429 = vld [vmem:[%s7 + $0x8] sm:$0xff]
      %v434 = vunpack.c.l.b16 %v424
      %v435 = vunpack.c.l.b16 %v425
      %v436 = vunpack.c.l.b16 %v426
      %v437 = vunpack.c.l.b16 %v427
      %v438 = vpack.c.b16 %v435, %v434
      %v439 = vpack.c.b16 %v437, %v436
      %442 = vmatprep.subr.bf16.mxu0 0
      %443 = vmatpush1.bf16.msra.mxu0 %v438
      %444 = vmatprep.subr.bf16.mxu0 0
      %445 = vmatpush1.bf16.msra.mxu0 %v439
      %446 = vmatprep.subr.bf16.mxu0 0
      %447 = vmatpush1.bf16.msra.mxu0 0
      %448 = vmatprep.subr.bf16.mxu0 0
      %449 = vmatpush1.bf16.msra.mxu0 0
      %450 = vmatprep.subr.bf16.mxu0 0
      %451 = vmatpush1.bf16.msra.mxu0 0
      %452 = vmatprep.subr.bf16.mxu0 0
      %453 = vmatpush1.bf16.msra.mxu0 0
      %454 = vmatprep.subr.bf16.mxu0 0
      %455 = vmatpush1.bf16.msra.mxu0 0
      %456 = vmatprep.subr.bf16.mxu0 0
      %457 = vmatpush1.bf16.msra.mxu0 0
      %458 = vmatprep.subr.bf16.mxu0 0
      %459 = vmatpush1.bf16.msra.mxu0 0
      %460 = vmatprep.subr.bf16.mxu0 0
      %461 = vmatpush1.bf16.msra.mxu0 0
      %462 = vmatprep.subr.bf16.mxu0 0
      %463 = vmatpush1.bf16.msra.mxu0 0
      %464 = vmatprep.subr.bf16.mxu0 0
      %465 = vmatpush1.bf16.msra.mxu0 0
      %466 = vmatprep.subr.bf16.mxu0 0
      %467 = vmatpush1.bf16.msra.mxu0 0
      %468 = vmatprep.subr.bf16.mxu0 0
      %469 = vmatpush1.bf16.msra.mxu0 0
      %470 = vmatprep.subr.bf16.mxu0 0
      %471 = vmatpush1.bf16.msra.mxu0 0
      %472 = vmatprep.subr.bf16.mxu0 0
      %473 = vmatpush1.bf16.msra.mxu0 0
      %474 = vmatprep.mubr.bf16.mxu0 0
      %475 = vmatmul.mubr.bf16.gmra.mrb[0].mxu0 %v381
      %v476 = vpop.f32.mrb[0].mxu0
      %v477 = vadd.f32 %v428, %v476
      %v478 = vpop.f32.mrb[0].mxu0
      %v479 = vpop.f32.mrb[0].mxu0
      %v480 = vadd.f32 %v429, %v479
      %v481 = vpop.f32.mrb[0].mxu0
      %482 = vdwg.mxu0
      %v483 = vld [vmem:[%s5] sm:$0xf]
      %v484 = vld [vmem:[%s5 + $0x4] sm:$0xf]
      %v485 = vld [vmem:[%s5 + $0x8] sm:$0xf]
      %v486 = vld [vmem:[%s5 + $0xc] sm:$0xf]
      %v487 = vld [vmem:[%s8] sm:$0xff]
      %v488 = vld [vmem:[%s8 + $0x8] sm:$0xff]
      %v493 = vunpack.c.l.b16 %v483
      %v494 = vunpack.c.l.b16 %v484
      %v495 = vunpack.c.l.b16 %v485
      %v496 = vunpack.c.l.b16 %v486
      %v497 = vpack.c.b16 %v494, %v493
      %v498 = vpack.c.b16 %v496, %v495
      %501 = vmatprep.subr.bf16.mxu0 0
      %502 = vmatpush1.bf16.msra.mxu0 %v497
      %503 = vmatprep.subr.bf16.mxu0 0
      %504 = vmatpush1.bf16.msra.mxu0 %v498
      %505 = vmatprep.subr.bf16.mxu0 0
      %506 = vmatpush1.bf16.msra.mxu0 0
      %507 = vmatprep.subr.bf16.mxu0 0
      %508 = vmatpush1.bf16.msra.mxu0 0
      %509 = vmatprep.subr.bf16.mxu0 0
      %510 = vmatpush1.bf16.msra.mxu0 0
      %511 = vmatprep.subr.bf16.mxu0 0
      %512 = vmatpush1.bf16.msra.mxu0 0
      %513 = vmatprep.subr.bf16.mxu0 0
      %514 = vmatpush1.bf16.msra.mxu0 0
      %515 = vmatprep.subr.bf16.mxu0 0
      %516 = vmatpush1.bf16.msra.mxu0 0
      %517 = vmatprep.subr.bf16.mxu0 0
      %518 = vmatpush1.bf16.msra.mxu0 0
      %519 = vmatprep.subr.bf16.mxu0 0
      %520 = vmatpush1.bf16.msra.mxu0 0
      %521 = vmatprep.subr.bf16.mxu0 0
      %522 = vmatpush1.bf16.msra.mxu0 0
      %523 = vmatprep.subr.bf16.mxu0 0
      %524 = vmatpush1.bf16.msra.mxu0 0
      %525 = vmatprep.subr.bf16.mxu0 0
      %526 = vmatpush1.bf16.msra.mxu0 0
      %527 = vmatprep.subr.bf16.mxu0 0
      %528 = vmatpush1.bf16.msra.mxu0 0
      %529 = vmatprep.subr.bf16.mxu0 0
      %530 = vmatpush1.bf16.msra.mxu0 0
      %531 = vmatprep.subr.bf16.mxu0 0
      %532 = vmatpush1.bf16.msra.mxu0 0
      %533 = vmatprep.mubr.bf16.mxu0 0
      %534 = vmatmul.mubr.bf16.gmra.mrb[0].mxu0 %v381
      %v535 = vpop.f32.mrb[0].mxu0
      %v536 = vadd.f32 %v487, %v535
      %v537 = vpop.f32.mrb[0].mxu0
      %v538 = vpop.f32.mrb[0].mxu0
      %v539 = vadd.f32 %v488, %v538
      %v540 = vpop.f32.mrb[0].mxu0
      %541 = vdwg.mxu0
      %v542 = vld [vmem:[%s2] sm:$0xf]
      %v543 = vld [vmem:[%s2 + $0x4] sm:$0xf]
      %v544 = vpack.c.bf16 %v421, %v418
      %v547 = vunpack.c.l.b16 %v542
      %v548 = vunpack.c.l.b16 %v543
      %v549 = vpack.c.b16 %v548, %v547
      %vm550 = vcmask 130048
      %v552 = vsel %vm550, %v549, 0
      %554 = vmatprep.subr.bf16.mxu0 0
      %555 = vmatpush1.bf16.msra.mxu0 %v544
      %556 = vmatprep.subr.bf16.mxu0 0
      %557 = vmatpush1.bf16.msra.mxu0 0
      %558 = vmatprep.subr.bf16.mxu0 0
      %559 = vmatpush1.bf16.msra.mxu0 0
      %560 = vmatprep.subr.bf16.mxu0 0
      %561 = vmatpush1.bf16.msra.mxu0 0
      %562 = vmatprep.subr.bf16.mxu0 0
      %563 = vmatpush1.bf16.msra.mxu0 0
      %564 = vmatprep.subr.bf16.mxu0 0
      %565 = vmatpush1.bf16.msra.mxu0 0
      %566 = vmatprep.subr.bf16.mxu0 0
      %567 = vmatpush1.bf16.msra.mxu0 0
      %568 = vmatprep.subr.bf16.mxu0 0
      %569 = vmatpush1.bf16.msra.mxu0 0
      %570 = vmatprep.subr.bf16.mxu0 0
      %571 = vmatpush1.bf16.msra.mxu0 0
      %572 = vmatprep.subr.bf16.mxu0 0
      %573 = vmatpush1.bf16.msra.mxu0 0
      %574 = vmatprep.subr.bf16.mxu0 0
      %575 = vmatpush1.bf16.msra.mxu0 0
      %576 = vmatprep.subr.bf16.mxu0 0
      %577 = vmatpush1.bf16.msra.mxu0 0
      %578 = vmatprep.subr.bf16.mxu0 0
      %579 = vmatpush1.bf16.msra.mxu0 0
      %580 = vmatprep.subr.bf16.mxu0 0
      %581 = vmatpush1.bf16.msra.mxu0 0
      %582 = vmatprep.subr.bf16.mxu0 0
      %583 = vmatpush1.bf16.msra.mxu0 0
      %584 = vmatprep.subr.bf16.mxu0 0
      %585 = vmatpush1.bf16.msra.mxu0 0
      %586 = vmatprep.mubr.bf16.mxu0 0
      %587 = vmatmul.mubr.bf16.gmra.mrb[0].mxu0 %v552
      %v588 = vpop.f32.mrb[0].mxu0
      %v589 = vadd.f32 0.0, %v588
      %v590 = vpop.f32.mrb[0].mxu0
      %v591 = vpop.f32.mrb[0].mxu0
      %v592 = vadd.f32 0.0, %v591
      %v593 = vpop.f32.mrb[0].mxu0
      %594 = vdwg.mxu0
      %v595 = vmul.f32 %v477, %v589
      %v596 = vmul.f32 %v480, %v592
      %v597 = vadd.f32 %v595, %v536
      %v598 = vadd.f32 %v596, %v539
      %vm599 = vcmp.gt.f32.partialorder %v597, 0.0
      %vm600 = vcmp.gt.f32.partialorder %v598, 0.0
      %v601 = vmin.f32 %v597, 0.0
      %v602 = vmin.f32 %v598, 0.0
      %v603 = vmul.f32 %v601, 1.442695
      %v604 = vpow.pop %v603
      %v605 = vmul.f32 %v602, 1.442695
      %v606 = vpow.pop %v605
      %v607 = vsub.f32 %v604, 1.0
      %v608 = vsub.f32 %v606, 1.0
      %v609 = vsel %vm599, %v597, %v607
      %v610 = vsel %vm600, %v598, %v608
      %v611 = vld [vmem:[%s347] sm:$0xff]
      %v612 = vld [vmem:[%s347 + $0x8] sm:$0xff]
      %v613 = vadd.f32 %v609, %v611
      %v614 = vadd.f32 %v610, %v612
      %615 = vst.msk [vmem:[%s352] sm:$0xff] %vm379, %v613
      %616 = vst.msk [vmem:[%s352 + $0x8] sm:$0xff] %vm379, %v614
      %p617 = scmp.lt.s32.totalorder %s20, 11
      %s618 = scalar_select %p617, %s20, 11
      %s619 = smul.addr %s618, 2
      %s620 = smul.addr %s619, 8
      %s621 = scalar_lea.vmem %s9, %s620
      // Predicated region
      $region57: #{_lambda_.13} parent=55 // pred_check
        %p622 = pneg %p237
      $region58: #{_lambda_.13} parent=55 // pred_check_branch
        %624 = sbr.rel (%p622) target = $region60
      $region59: #{_lambda_.13} parent=55 // pred_region
        _
      $region60: #{_lambda_.13} parent=55 // pred_fallthru
        _
    $region56: #{_lambda_.13} parent=5 // pred_fallthru
      _
    %p625 = scmp.le.s32.totalorder 2, %s15
    // Predicated region
    $region61: #{_lambda_.13} parent=5 // pred_check
      %p626 = pneg %p625
    $region62: #{_lambda_.13} parent=5 // pred_check_branch
      %628 = sbr.rel (%p626) target = $region64
    $region63: #{_lambda_.13} parent=5 // pred_region
      %s629 = ssub.s32 %s15, 2
      // Predicated region
      $region65: #{_lambda_.13} parent=63 // pred_check
        %p630 = pneg %p243
      $region66: #{_lambda_.13} parent=63 // pred_check_branch
        %632 = sbr.rel (%p630) target = $region68
      $region67: #{_lambda_.13} parent=63 // pred_region
        %p633 = scmp.lt.s32.totalorder %s21, 11
        %s634 = scalar_select %p633, %s21, 11
        %s635 = smul.addr %s634, 2
        %s636 = smul.addr %s635, 8
        %s637 = scalar_lea.vmem %s9, %s636
      $region68: #{_lambda_.13} parent=63 // pred_fallthru
        _
    $region64: #{_lambda_.13} parent=5 // pred_fallthru
      _
  $region6: #{_lambda_.13} parent=0 // loop_footer
    %s19 = sadd.s32 1, %s15
  $region7: #{_lambda_.13} parent=0 // loop_footer_branch
    %14 = sbr.rel target = $region3
  $region8: #{_lambda_.13} parent=0 // loop_exit
    _

// kernel: _lambda_.14
$region0: #{_lambda_.14}
  #allocation0 [shape = 'u32[]', space=smem, size = 0x4, offset = 0x4, fixed_abs, tag = 'smem constant byte address 0x4 - core index']
  #allocation1 [shape = 'u32[144,128]{1,0:T(1,128)}', space=vmem, size = 0x12000, scoped, tag = 'internal scratch']
  %s0 = inlined_call_operand.vmem [shape: bf16[2,6,16,32], index: 0, kind: input, shape index: {}]
  %s1 = inlined_call_operand.vmem [shape: bf16[96,32], index: 1, kind: input, shape index: {}]
  %s2 = inlined_call_operand.vmem [shape: bf16[96,32], index: 2, kind: input, shape index: {}]
  %s3 = inlined_call_operand.vmem [shape: f32[1,32], index: 3, kind: input, shape index: {}]
  %s4 = inlined_call_operand.vmem [shape: f32[1,32], index: 4, kind: input, shape index: {}]
  %s5 = inlined_call_operand.vmem [shape: f32[2,2,16,32], index: 5, kind: output, shape index: {}]
  %s6 = sld [smem:[#allocation0]]
  $region53: #{_lambda_.14} parent=0
    _
  %s8 = ssub.s32 1, %s6
  %s9 = scalar_select 0, %s8, %s6
  loop: start=0, step=1, limit=4
  $region2: #{_lambda_.14} parent=0 // loop_pre_header
    _
  $region3: #{_lambda_.14} parent=0 // loop_header
    %s11 = sphi 0, %s15
    %p12 = scmp.ge.s32.totalorder %s11, 4
    %s18 = sphi 0, %s30
    %s19 = sphi 0, %s26
    %s20 = sphi 0, %s18
    %s21 = sphi 0, %s19
    %s22 = sphi 0, %s20
    %s23 = sphi 0, %s21
    %s35 = sphi 0, %s37
    %s38 = sphi 0, %s35
    %s39 = sphi 0, %s38
    %s55 = sphi 0, %s39
    %s59 = sphi 0, %s59
    %s61 = sphi 0, %s59
    %s62 = sphi 0, %s61
    %s76 = sphi 0, %s62
    %s80 = sphi 0, %s80
    %s82 = sphi 0, %s80
    %s83 = sphi 0, %s82
    %s97 = sphi 0, %s83
    %s101 = sphi 0, %s101
    %s103 = sphi 0, %s101
    %s104 = sphi 0, %s103
    %s118 = sphi 0, %s104
    %s122 = sphi 0, %s122
    %s124 = sphi 0, %s122
    %s125 = sphi 0, %s124
    %s139 = sphi 0, %s125
    %s147 = sphi 0, %s149
    %s150 = sphi 0, %s147
    %s151 = sphi 0, %s150
    %s167 = sphi 0, %s151
  $region4: #{_lambda_.14} parent=0 // loop_header_branch
    %14 = sbr.rel (%p12) target = $region8
  $region5: #{_lambda_.14} parent=0 // loop_body
    %s16 = ssub.s32 %s11, 1
    %s17 = ssub.s32 %s11, 2
    %s24 = sadd.s32 1, %s19
    %p25 = scmp.ge.s32.totalorder %s24, 1
    %s26 = scalar_select %p25, 0, %s24
    %s27 = sadd.s32 1, %s18
    %s28 = scalar_select %p25, %s27, %s18
    %p29 = scmp.ge.s32.totalorder %s28, 2
    %s30 = scalar_select %p29, 0, %s28
    %s31 = ssub.s32 %s18, %s30
    %s32 = ssub.s32 %s19, %s26
    %s33 = sor.u32 %s31, %s32
    %p34 = scmp.eq.s32.totalorder %s33, 0
    %s36 = sadd.s32 %s35, 1
    %s37 = scalar_select %p34, %s35, %s36
    %p40 = pneg %p34
    %p41 = scmp.eq.s32.totalorder %s11, 1
    %p42 = por %p40, %p41
    %p43 = scmp.ne.s32.totalorder %s35, %s38
    %p44 = scmp.eq.s32.totalorder %s11, 0
    %p45 = por %p43, %p44
    %p46 = scmp.ne.s32.totalorder %s35, %s38
    %p47 = scmp.eq.s32.totalorder %s16, 1
    %p48 = por %p46, %p47
    %p49 = scmp.ne.s32.totalorder %s38, %s39
    %p50 = scmp.eq.s32.totalorder %s16, 0
    %p51 = por %p49, %p50
    %p52 = scmp.ne.s32.totalorder %s38, %s39
    %p53 = scmp.eq.s32.totalorder %s17, 1
    %p54 = por %p52, %p53
    %p56 = scmp.ne.s32.totalorder %s39, %s55
    %p57 = scmp.eq.s32.totalorder %s17, 0
    %p58 = por %p56, %p57
    %s60 = sadd.s32 %s59, 1
    %p63 = scmp.eq.s32.totalorder %s11, 1
    %p64 = scmp.ne.s32.totalorder %s59, %s61
    %p65 = scmp.eq.s32.totalorder %s11, 0
    %p66 = por %p64, %p65
    %p67 = scmp.ne.s32.totalorder %s59, %s61
    %p68 = scmp.eq.s32.totalorder %s16, 1
    %p69 = por %p67, %p68
    %p70 = scmp.ne.s32.totalorder %s61, %s62
    %p71 = scmp.eq.s32.totalorder %s16, 0
    %p72 = por %p70, %p71
    %p73 = scmp.ne.s32.totalorder %s61, %s62
    %p74 = scmp.eq.s32.totalorder %s17, 1
    %p75 = por %p73, %p74
    %p77 = scmp.ne.s32.totalorder %s62, %s76
    %p78 = scmp.eq.s32.totalorder %s17, 0
    %p79 = por %p77, %p78
    %s81 = sadd.s32 %s80, 1
    %p84 = scmp.eq.s32.totalorder %s11, 1
    %p85 = scmp.ne.s32.totalorder %s80, %s82
    %p86 = scmp.eq.s32.totalorder %s11, 0
    %p87 = por %p85, %p86
    %p88 = scmp.ne.s32.totalorder %s80, %s82
    %p89 = scmp.eq.s32.totalorder %s16, 1
    %p90 = por %p88, %p89
    %p91 = scmp.ne.s32.totalorder %s82, %s83
    %p92 = scmp.eq.s32.totalorder %s16, 0
    %p93 = por %p91, %p92
    %p94 = scmp.ne.s32.totalorder %s82, %s83
    %p95 = scmp.eq.s32.totalorder %s17, 1
    %p96 = por %p94, %p95
    %p98 = scmp.ne.s32.totalorder %s83, %s97
    %p99 = scmp.eq.s32.totalorder %s17, 0
    %p100 = por %p98, %p99
    %s102 = sadd.s32 %s101, 1
    %p105 = scmp.eq.s32.totalorder %s11, 1
    %p106 = scmp.ne.s32.totalorder %s101, %s103
    %p107 = scmp.eq.s32.totalorder %s11, 0
    %p108 = por %p106, %p107
    %p109 = scmp.ne.s32.totalorder %s101, %s103
    %p110 = scmp.eq.s32.totalorder %s16, 1
    %p111 = por %p109, %p110
    %p112 = scmp.ne.s32.totalorder %s103, %s104
    %p113 = scmp.eq.s32.totalorder %s16, 0
    %p114 = por %p112, %p113
    %p115 = scmp.ne.s32.totalorder %s103, %s104
    %p116 = scmp.eq.s32.totalorder %s17, 1
    %p117 = por %p115, %p116
    %p119 = scmp.ne.s32.totalorder %s104, %s118
    %p120 = scmp.eq.s32.totalorder %s17, 0
    %p121 = por %p119, %p120
    %s123 = sadd.s32 %s122, 1
    %p126 = scmp.eq.s32.totalorder %s11, 1
    %p127 = scmp.ne.s32.totalorder %s122, %s124
    %p128 = scmp.eq.s32.totalorder %s11, 0
    %p129 = por %p127, %p128
    %p130 = scmp.ne.s32.totalorder %s122, %s124
    %p131 = scmp.eq.s32.totalorder %s16, 1
    %p132 = por %p130, %p131
    %p133 = scmp.ne.s32.totalorder %s124, %s125
    %p134 = scmp.eq.s32.totalorder %s16, 0
    %p135 = por %p133, %p134
    %p136 = scmp.ne.s32.totalorder %s124, %s125
    %p137 = scmp.eq.s32.totalorder %s17, 1
    %p138 = por %p136, %p137
    %p140 = scmp.ne.s32.totalorder %s125, %s139
    %p141 = scmp.eq.s32.totalorder %s17, 0
    %p142 = por %p140, %p141
    %s143 = ssub.s32 %s18, %s30
    %s144 = ssub.s32 %s19, %s26
    %s145 = sor.u32 %s143, %s144
    %p146 = scmp.eq.s32.totalorder %s145, 0
    %s148 = sadd.s32 %s147, 1
    %s149 = scalar_select %p146, %s147, %s148
    %p152 = pneg %p146
    %p153 = scmp.eq.s32.totalorder %s11, 1
    %p154 = por %p152, %p153
    %p155 = scmp.ne.s32.totalorder %s147, %s150
    %p156 = scmp.eq.s32.totalorder %s11, 0
    %p157 = por %p155, %p156
    %p158 = scmp.ne.s32.totalorder %s147, %s150
    %p159 = scmp.eq.s32.totalorder %s16, 1
    %p160 = por %p158, %p159
    %p161 = scmp.ne.s32.totalorder %s150, %s151
    %p162 = scmp.eq.s32.totalorder %s16, 0
    %p163 = por %p161, %p162
    %p164 = scmp.ne.s32.totalorder %s150, %s151
    %p165 = scmp.eq.s32.totalorder %s17, 1
    %p166 = por %p164, %p165
    %p168 = scmp.ne.s32.totalorder %s151, %s167
    %p169 = scmp.eq.s32.totalorder %s17, 0
    %p170 = por %p168, %p169
    %p171 = scmp.le.s32.totalorder 1, %s11
    %p172 = scmp.lt.s32.totalorder %s11, 3
    %p173 = pnand %p171, %p172
    %p174 = pneg %p173
    // Predicated region
    $region9: #{_lambda_.14} parent=5 // pred_check
      _
    $region10: #{_lambda_.14} parent=5 // pred_check_branch
      %176 = sbr.rel (%p173) target = $region12
    $region11: #{_lambda_.14} parent=5 // pred_region
      %s177 = ssub.s32 %s11, 1
      // Predicated region
      $region13: #{_lambda_.14} parent=11 // pred_check
        %p178 = pneg %p72
      $region14: #{_lambda_.14} parent=11 // pred_check_branch
        %180 = sbr.rel (%p178) target = $region16
      $region15: #{_lambda_.14} parent=11 // pred_region
        _
      $region16: #{_lambda_.14} parent=11 // pred_fallthru
        _
      // Predicated region
      $region17: #{_lambda_.14} parent=11 // pred_check
        %p181 = pneg %p93
      $region18: #{_lambda_.14} parent=11 // pred_check_branch
        %183 = sbr.rel (%p181) target = $region20
      $region19: #{_lambda_.14} parent=11 // pred_region
        _
      $region20: #{_lambda_.14} parent=11 // pred_fallthru
        _
      // Predicated region
      $region21: #{_lambda_.14} parent=11 // pred_check
        %p184 = pneg %p114
      $region22: #{_lambda_.14} parent=11 // pred_check_branch
        %186 = sbr.rel (%p184) target = $region24
      $region23: #{_lambda_.14} parent=11 // pred_region
        _
      $region24: #{_lambda_.14} parent=11 // pred_fallthru
        _
      // Predicated region
      $region25: #{_lambda_.14} parent=11 // pred_check
        %p187 = pneg %p135
      $region26: #{_lambda_.14} parent=11 // pred_check_branch
        %189 = sbr.rel (%p187) target = $region28
      $region27: #{_lambda_.14} parent=11 // pred_region
        _
      $region28: #{_lambda_.14} parent=11 // pred_fallthru
        _
    $region12: #{_lambda_.14} parent=5 // pred_fallthru
      _
    %p190 = scmp.lt.s32.totalorder %s11, 2
    // Predicated region
    $region29: #{_lambda_.14} parent=5 // pred_check
      %p191 = pneg %p190
    $region30: #{_lambda_.14} parent=5 // pred_check_branch
      %193 = sbr.rel (%p191) target = $region32
    $region31: #{_lambda_.14} parent=5 // pred_region
      // Predicated region
      $region33: #{_lambda_.14} parent=31 // pred_check
        %p194 = pneg %p45
      $region34: #{_lambda_.14} parent=31 // pred_check_branch
        %196 = sbr.rel (%p194) target = $region36
      $region35: #{_lambda_.14} parent=31 // pred_region
        %s197 = smul.u32 2, %s19
        %p198 = scmp.lt.s32.totalorder %s18, 1
        %s199 = scalar_select %p198, %s18, 1
        %p200 = scmp.lt.s32.totalorder %s197, 1
        %s201 = scalar_select %p200, %s197, 1
        %s202 = smul.addr %s199, 12
        %s203 = sadd.s32 %s201, %s202
        %s204 = smul.addr %s203, 4
        %s205 = scalar_lea.vmem %s0, %s204
        %s206 = smul.u32 2, %s19
      $region36: #{_lambda_.14} parent=31 // pred_fallthru
        _
    $region32: #{_lambda_.14} parent=5 // pred_fallthru
      _
    %p207 = scmp.le.s32.totalorder 1, %s11
    %p208 = scmp.lt.s32.totalorder %s11, 3
    %p209 = pnand %p207, %p208
    %p210 = pneg %p209
    // Predicated region
    $region37: #{_lambda_.14} parent=5 // pred_check
      _
    $region38: #{_lambda_.14} parent=5 // pred_check_branch
      %212 = sbr.rel (%p209) target = $region40
    $region39: #{_lambda_.14} parent=5 // pred_region
      %s213 = ssub.s32 %s11, 1
      %s214 = smul.u32 2, %s21
      %p215 = scmp.lt.s32.totalorder %s20, 1
      %s216 = scalar_select %p215, %s20, 1
      %p217 = scmp.lt.s32.totalorder %s214, 1
      %s218 = scalar_select %p217, %s214, 1
      %s219 = smul.addr %s216, 12
      %s220 = sadd.s32 %s218, %s219
      %s221 = smul.addr %s220, 4
      %s222 = scalar_lea.vmem %s0, %s221
      %p223 = pneg %p51
      %p224 = pneg %p48
      %p225 = pneg %p72
      %p226 = pneg %p69
      %p227 = pneg %p93
      %p228 = pneg %p90
      %p229 = pneg %p114
      %p230 = pneg %p111
      %p231 = pneg %p135
      %p232 = pneg %p132
      %p233 = pneg %p163
      %p234 = pneg %p160
      %s235 = smul.u32 2, %s21
      %p236 = scmp.lt.s32.totalorder %s20, 1
      %s237 = scalar_select %p236, %s20, 1
      %p238 = scmp.lt.s32.totalorder %s235, 1
      %s239 = scalar_select %p238, %s235, 1
      %s240 = smul.addr %s237, 4
      %s241 = sadd.s32 %s239, %s240
      %s242 = smul.addr %s241, 8
      %s243 = scalar_lea.vmem %s5, %s242
      %s244 = smul.u32 2, %s21
      %p245 = scmp.lt.s32.totalorder %s20, 1
      %s246 = scalar_select %p245, %s20, 1
      %p247 = scmp.lt.s32.totalorder %s244, 1
      %s248 = scalar_select %p247, %s244, 1
      %s249 = smul.addr %s246, 12
      %s250 = sadd.s32 %s248, %s249
      %s251 = smul.addr %s250, 4
      %s252 = scalar_lea.vmem %s0, %s251
      %s253 = smul.u32 2, %s21
      %s254 = smul.u32 2, %s21
      %p255 = scmp.lt.s32.totalorder %s20, 1
      %s256 = scalar_select %p255, %s20, 1
      %p257 = scmp.lt.s32.totalorder %s254, 1
      %s258 = scalar_select %p257, %s254, 1
      %s259 = smul.addr %s256, 4
      %s260 = sadd.s32 %s258, %s259
      %s261 = smul.addr %s260, 8
      %s262 = scalar_lea.vmem %s5, %s261
      %s263 = smul.u32 2, %s21
      %v265 = vld [vmem:[%s252] sm:$0xf]
      %v266 = vld [vmem:[%s252 + $0x4] sm:$0xf]
      %v267 = vld [vmem:[%s252 + $0x8] sm:$0xf]
      %v268 = vld [vmem:[%s252 + $0xc] sm:$0xf]
      %s269 = scalar_lea.vmem %s252, 16
      %v270 = vld [vmem:[%s269] sm:$0xf]
      %v271 = vld [vmem:[%s269 + $0x4] sm:$0xf]
      %v272 = vld [vmem:[%s269 + $0x8] sm:$0xf]
      %v273 = vld [vmem:[%s269 + $0xc] sm:$0xf]
      %s274 = scalar_lea.vmem %s252, 32
      %v275 = vld [vmem:[%s274] sm:$0xf]
      %v276 = vld [vmem:[%s274 + $0x4] sm:$0xf]
      %v277 = vld [vmem:[%s274 + $0x8] sm:$0xf]
      %v278 = vld [vmem:[%s274 + $0xc] sm:$0xf]
      %v283 = vunpack.c.l.b16 %v265
      %v284 = vunpack.c.l.b16 %v266
      %v285 = vunpack.c.l.b16 %v267
      %v286 = vunpack.c.l.b16 %v268
      %v287 = vpack.c.b16 %v284, %v283
      %v288 = vpack.c.b16 %v286, %v285
      %v293 = vunpack.c.l.b16 %v270
      %v294 = vunpack.c.l.b16 %v271
      %v295 = vunpack.c.l.b16 %v272
      %v296 = vunpack.c.l.b16 %v273
      %v297 = vpack.c.b16 %v294, %v293
      %v298 = vpack.c.b16 %v296, %v295
      %299 = vrot.lane.b32.xlu0 %v297, 32
      %v300 = vpop.permute.xlu0 %299
      %301 = vrot.lane.b32.xlu0 %v298, 32
      %v302 = vpop.permute.xlu0 %301
      %v307 = vunpack.c.l.b16 %v275
      %v308 = vunpack.c.l.b16 %v276
      %v309 = vunpack.c.l.b16 %v277
      %v310 = vunpack.c.l.b16 %v278
      %v311 = vpack.c.b16 %v308, %v307
      %v312 = vpack.c.b16 %v310, %v309
      %313 = vrot.lane.b32.xlu0 %v311, 64
      %v314 = vpop.permute.xlu0 %313
      %315 = vrot.lane.b32.xlu0 %v312, 64
      %v316 = vpop.permute.xlu0 %315
      %vm317 = vcmask 261120
      %v320 = vsel %vm317, %v287, %v300
      %v323 = vsel %vm317, %v288, %v302
      %vm324 = vcmask 523264
      %v326 = vsel %vm324, %v320, %v314
      %v328 = vsel %vm324, %v323, %v316
      %v329 = vld [vmem:[%s1] sm:$0xf]
      %v330 = vld [vmem:[%s1 + $0x4] sm:$0xf]
      %v331 = vld [vmem:[%s1 + $0x8] sm:$0xf]
      %v332 = vld [vmem:[%s1 + $0xc] sm:$0xf]
      %v333 = vld [vmem:[%s1 + $0x10] sm:$0xf]
      %v334 = vld [vmem:[%s1 + $0x14] sm:$0xf]
      %v335 = vld [vmem:[%s1 + $0x18] sm:$0xf]
      %v336 = vld [vmem:[%s1 + $0x1c] sm:$0xf]
      %v337 = vld [vmem:[%s1 + $0x20] sm:$0xf]
      %v338 = vld [vmem:[%s1 + $0x24] sm:$0xf]
      %v339 = vld [vmem:[%s1 + $0x28] sm:$0xf]
      %v340 = vld [vmem:[%s1 + $0x2c] sm:$0xf]
      %v341 = vld [vmem:[%s3] sm:$0x1]
      %v343 = vlaneseq
      %v344 = vshrl.u32 %v343, 7
      %v345 = vsub.s32 0, %v344
      %v346 = vrot.slane %v341, %v345
      %v360 = vunpack.c.l.b16 %v329
      %v361 = vunpack.c.l.b16 %v330
      %v362 = vunpack.c.l.b16 %v331
      %v363 = vunpack.c.l.b16 %v332
      %v364 = vunpack.c.l.b16 %v333
      %v365 = vunpack.c.l.b16 %v334
      %v366 = vunpack.c.l.b16 %v335
      %v367 = vunpack.c.l.b16 %v336
      %v368 = vunpack.c.l.b16 %v337
      %v369 = vunpack.c.l.b16 %v338
      %v370 = vunpack.c.l.b16 %v339
      %v371 = vunpack.c.l.b16 %v340
      %v372 = vpack.c.b16 %v361, %v360
      %v373 = vpack.c.b16 %v363, %v362
      %v374 = vpack.c.b16 %v365, %v364
      %v375 = vpack.c.b16 %v367, %v366
      %v376 = vpack.c.b16 %v369, %v368
      %v377 = vpack.c.b16 %v371, %v370
      %vm384 = vcmask 785408
      %v385 = vsel %vm384, %v326, 0
      %v387 = vsel %vm384, %v328, 0
      %389 = vmatprep.subr.bf16.mxu0 0
      %390 = vmatpush1.bf16.msra.mxu0 %v372
      %391 = vmatprep.subr.bf16.mxu0 0
      %392 = vmatpush1.bf16.msra.mxu0 %v373
      %393 = vmatprep.subr.bf16.mxu0 0
      %394 = vmatpush1.bf16.msra.mxu0 %v374
      %395 = vmatprep.subr.bf16.mxu0 0
      %396 = vmatpush1.bf16.msra.mxu0 %v375
      %397 = vmatprep.subr.bf16.mxu0 0
      %398 = vmatpush1.bf16.msra.mxu0 %v376
      %399 = vmatprep.subr.bf16.mxu0 0
      %400 = vmatpush1.bf16.msra.mxu0 %v377
      %401 = vmatprep.subr.bf16.mxu0 0
      %402 = vmatpush1.bf16.msra.mxu0 0
      %403 = vmatprep.subr.bf16.mxu0 0
      %404 = vmatpush1.bf16.msra.mxu0 0
      %405 = vmatprep.subr.bf16.mxu0 0
      %406 = vmatpush1.bf16.msra.mxu0 0
      %407 = vmatprep.subr.bf16.mxu0 0
      %408 = vmatpush1.bf16.msra.mxu0 0
      %409 = vmatprep.subr.bf16.mxu0 0
      %410 = vmatpush1.bf16.msra.mxu0 0
      %411 = vmatprep.subr.bf16.mxu0 0
      %412 = vmatpush1.bf16.msra.mxu0 0
      %413 = vmatprep.subr.bf16.mxu0 0
      %414 = vmatpush1.bf16.msra.mxu0 0
      %415 = vmatprep.subr.bf16.mxu0 0
      %416 = vmatpush1.bf16.msra.mxu0 0
      %417 = vmatprep.subr.bf16.mxu0 0
      %418 = vmatpush1.bf16.msra.mxu0 0
      %419 = vmatprep.subr.bf16.mxu0 0
      %420 = vmatpush1.bf16.msra.mxu0 0
      %421 = vmatprep.mubr.bf16.mxu0 0
      %422 = vmatmul.mubr.bf16.gmra.mrb[0].mxu0 %v385
      %v423 = vpop.f32.mrb[0].mxu0
      %v424 = vadd.f32 %v346, %v423
      %v425 = vpop.f32.mrb[0].mxu0
      %v426 = vpop.f32.mrb[0].mxu0
      %v427 = vadd.f32 %v346, %v426
      %v428 = vpop.f32.mrb[0].mxu0
      %429 = vmatprep.mubr.bf16.mxu0 0
      %430 = vmatmul.mubr.bf16.gmra.mrb[0].mxu0 %v387
      %v431 = vpop.f32.mrb[0].mxu0
      %v432 = vadd.f32 %v346, %v431
      %v433 = vpop.f32.mrb[0].mxu0
      %v434 = vpop.f32.mrb[0].mxu0
      %v435 = vadd.f32 %v346, %v434
      %v436 = vpop.f32.mrb[0].mxu0
      %437 = vdwg.mxu0
      %v438 = vld [vmem:[%s2] sm:$0xf]
      %v439 = vld [vmem:[%s2 + $0x4] sm:$0xf]
      %v440 = vld [vmem:[%s2 + $0x8] sm:$0xf]
      %v441 = vld [vmem:[%s2 + $0xc] sm:$0xf]
      %v442 = vld [vmem:[%s2 + $0x10] sm:$0xf]
      %v443 = vld [vmem:[%s2 + $0x14] sm:$0xf]
      %v444 = vld [vmem:[%s2 + $0x18] sm:$0xf]
      %v445 = vld [vmem:[%s2 + $0x1c] sm:$0xf]
      %v446 = vld [vmem:[%s2 + $0x20] sm:$0xf]
      %v447 = vld [vmem:[%s2 + $0x24] sm:$0xf]
      %v448 = vld [vmem:[%s2 + $0x28] sm:$0xf]
      %v449 = vld [vmem:[%s2 + $0x2c] sm:$0xf]
      %v450 = vld [vmem:[%s4] sm:$0x1]
      %v452 = vlaneseq
      %v453 = vshrl.u32 %v452, 7
      %v454 = vsub.s32 0, %v453
      %v455 = vrot.slane %v450, %v454
      %v469 = vunpack.c.l.b16 %v438
      %v470 = vunpack.c.l.b16 %v439
      %v471 = vunpack.c.l.b16 %v440
      %v472 = vunpack.c.l.b16 %v441
      %v473 = vunpack.c.l.b16 %v442
      %v474 = vunpack.c.l.b16 %v443
      %v475 = vunpack.c.l.b16 %v444
      %v476 = vunpack.c.l.b16 %v445
      %v477 = vunpack.c.l.b16 %v446
      %v478 = vunpack.c.l.b16 %v447
      %v479 = vunpack.c.l.b16 %v448
      %v480 = vunpack.c.l.b16 %v449
      %v481 = vpack.c.b16 %v470, %v469
      %v482 = vpack.c.b16 %v472, %v471
      %v483 = vpack.c.b16 %v474, %v473
      %v484 = vpack.c.b16 %v476, %v475
      %v485 = vpack.c.b16 %v478, %v477
      %v486 = vpack.c.b16 %v480, %v479
      %493 = vmatprep.subr.bf16.mxu0 0
      %494 = vmatpush1.bf16.msra.mxu0 %v481
      %495 = vmatprep.subr.bf16.mxu0 0
      %496 = vmatpush1.bf16.msra.mxu0 %v482
      %497 = vmatprep.subr.bf16.mxu0 0
      %498 = vmatpush1.bf16.msra.mxu0 %v483
      %499 = vmatprep.subr.bf16.mxu0 0
      %500 = vmatpush1.bf16.msra.mxu0 %v484
      %501 = vmatprep.subr.bf16.mxu0 0
      %502 = vmatpush1.bf16.msra.mxu0 %v485
      %503 = vmatprep.subr.bf16.mxu0 0
      %504 = vmatpush1.bf16.msra.mxu0 %v486
      %505 = vmatprep.subr.bf16.mxu0 0
      %506 = vmatpush1.bf16.msra.mxu0 0
      %507 = vmatprep.subr.bf16.mxu0 0
      %508 = vmatpush1.bf16.msra.mxu0 0
      %509 = vmatprep.subr.bf16.mxu0 0
      %510 = vmatpush1.bf16.msra.mxu0 0
      %511 = vmatprep.subr.bf16.mxu0 0
      %512 = vmatpush1.bf16.msra.mxu0 0
      %513 = vmatprep.subr.bf16.mxu0 0
      %514 = vmatpush1.bf16.msra.mxu0 0
      %515 = vmatprep.subr.bf16.mxu0 0
      %516 = vmatpush1.bf16.msra.mxu0 0
      %517 = vmatprep.subr.bf16.mxu0 0
      %518 = vmatpush1.bf16.msra.mxu0 0
      %519 = vmatprep.subr.bf16.mxu0 0
      %520 = vmatpush1.bf16.msra.mxu0 0
      %521 = vmatprep.subr.bf16.mxu0 0
      %522 = vmatpush1.bf16.msra.mxu0 0
      %523 = vmatprep.subr.bf16.mxu0 0
      %524 = vmatpush1.bf16.msra.mxu0 0
      %525 = vmatprep.mubr.bf16.mxu0 0
      %526 = vmatmul.mubr.bf16.gmra.mrb[0].mxu0 %v385
      %v527 = vpop.f32.mrb[0].mxu0
      %v528 = vadd.f32 %v455, %v527
      %v529 = vpop.f32.mrb[0].mxu0
      %v530 = vpop.f32.mrb[0].mxu0
      %v531 = vadd.f32 %v455, %v530
      %v532 = vpop.f32.mrb[0].mxu0
      %533 = vmatprep.mubr.bf16.mxu0 0
      %534 = vmatmul.mubr.bf16.gmra.mrb[0].mxu0 %v387
      %v535 = vpop.f32.mrb[0].mxu0
      %v536 = vadd.f32 %v455, %v535
      %v537 = vpop.f32.mrb[0].mxu0
      %v538 = vpop.f32.mrb[0].mxu0
      %v539 = vadd.f32 %v455, %v538
      %v540 = vpop.f32.mrb[0].mxu0
      %541 = vdwg.mxu0
      %v542 = vtanh.pop %v424
      %v543 = vtanh.pop %v427
      %v544 = vtanh.pop %v432
      %v545 = vtanh.pop %v435
      %v546 = vxor.u32 %v528, 2147483648
      %v547 = vxor.u32 %v531, 2147483648
      %v548 = vxor.u32 %v536, 2147483648
      %v549 = vxor.u32 %v539, 2147483648
      %v550 = vmul.f32 %v546, 1.442695
      %v551 = vpow.pop %v550
      %v552 = vmul.f32 %v547, 1.442695
      %v553 = vpow.pop %v552
      %v554 = vmul.f32 %v548, 1.442695
      %v555 = vpow.pop %v554
      %v556 = vmul.f32 %v549, 1.442695
      %v557 = vpow.pop %v556
      %v558 = vadd.f32 %v551, 1.0
      %v559 = vadd.f32 %v553, 1.0
      %v560 = vadd.f32 %v555, 1.0
      %v561 = vadd.f32 %v557, 1.0
      %v562 = vrcp.pop %v558
      %v563 = vmul.f32 1.0, %v562
      %v564 = vrcp.pop %v559
      %v565 = vmul.f32 1.0, %v564
      %v566 = vrcp.pop %v560
      %v567 = vmul.f32 1.0, %v566
      %v568 = vrcp.pop %v561
      %v569 = vmul.f32 1.0, %v568
      %v570 = vmul.f32 %v542, %v563
      %v571 = vmul.f32 %v543, %v565
      %v572 = vmul.f32 %v544, %v567
      %v573 = vmul.f32 %v545, %v569
      %574 = vst.msk [vmem:[%s262] sm:$0xff] %vm317, %v570
      %575 = vst.msk [vmem:[%s262 + $0x8] sm:$0xff] %vm317, %v571
      %576 = vst.msk [vmem:[%s262 + $0x10] sm:$0xff] %vm317, %v572
      %577 = vst.msk [vmem:[%s262 + $0x18] sm:$0xff] %vm317, %v573
      %s578 = smul.u32 2, %s21
      %p579 = scmp.lt.s32.totalorder %s20, 1
      %s580 = scalar_select %p579, %s20, 1
      %p581 = scmp.lt.s32.totalorder %s578, 1
      %s582 = scalar_select %p581, %s578, 1
      %s583 = smul.addr %s580, 4
      %s584 = sadd.s32 %s582, %s583
      %s585 = smul.addr %s584, 8
      %s586 = scalar_lea.vmem %s5, %s585
      // Predicated region
      $region41: #{_lambda_.14} parent=39 // pred_check
        %p587 = pneg %p160
      $region42: #{_lambda_.14} parent=39 // pred_check_branch
        %589 = sbr.rel (%p587) target = $region44
      $region43: #{_lambda_.14} parent=39 // pred_region
        %s590 = smul.u32 2, %s21
      $region44: #{_lambda_.14} parent=39 // pred_fallthru
        _
    $region40: #{_lambda_.14} parent=5 // pred_fallthru
      _
    %p591 = scmp.le.s32.totalorder 2, %s11
    // Predicated region
    $region45: #{_lambda_.14} parent=5 // pred_check
      %p592 = pneg %p591
    $region46: #{_lambda_.14} parent=5 // pred_check_branch
      %594 = sbr.rel (%p592) target = $region48
    $region47: #{_lambda_.14} parent=5 // pred_region
      %s595 = ssub.s32 %s11, 2
      // Predicated region
      $region49: #{_lambda_.14} parent=47 // pred_check
        %p596 = pneg %p166
      $region50: #{_lambda_.14} parent=47 // pred_check_branch
        %598 = sbr.rel (%p596) target = $region52
      $region51: #{_lambda_.14} parent=47 // pred_region
        %s599 = smul.u32 2, %s23
        %p600 = scmp.lt.s32.totalorder %s22, 1
        %s601 = scalar_select %p600, %s22, 1
        %p602 = scmp.lt.s32.totalorder %s599, 1
        %s603 = scalar_select %p602, %s599, 1
        %s604 = smul.addr %s601, 4
        %s605 = sadd.s32 %s603, %s604
        %s606 = smul.addr %s605, 8
        %s607 = scalar_lea.vmem %s5, %s606
      $region52: #{_lambda_.14} parent=47 // pred_fallthru
        _
    $region48: #{_lambda_.14} parent=5 // pred_fallthru
      _
  $region6: #{_lambda_.14} parent=0 // loop_footer
    %s15 = sadd.s32 1, %s11
  $region7: #{_lambda_.14} parent=0 // loop_footer_branch
    %10 = sbr.rel target = $region3
  $region8: #{_lambda_.14} parent=0 // loop_exit
    _

// kernel: _lambda_.16
$region0: #{_lambda_.16}
  #allocation0 [shape = 'u32[]', space=smem, size = 0x4, offset = 0x4, fixed_abs, tag = 'smem constant byte address 0x4 - core index']
  #allocation1 [shape = 'u32[144,128]{1,0:T(1,128)}', space=vmem, size = 0x12000, scoped, tag = 'internal scratch']
  %s0 = inlined_call_operand.vmem [shape: bf16[4,16,32], index: 0, kind: input, shape index: {}]
  %s1 = inlined_call_operand.vmem [shape: f32[4,16,32], index: 1, kind: input, shape index: {}]
  %s2 = inlined_call_operand.vmem [shape: bf16[16,16], index: 2, kind: input, shape index: {}]
  %s3 = inlined_call_operand.vmem [shape: bf16[32,32], index: 3, kind: input, shape index: {}]
  %s4 = inlined_call_operand.vmem [shape: bf16[32,32], index: 4, kind: input, shape index: {}]
  %s5 = inlined_call_operand.vmem [shape: bf16[32,32], index: 5, kind: input, shape index: {}]
  %s6 = inlined_call_operand.vmem [shape: f32[16,32], index: 6, kind: input, shape index: {}]
  %s7 = inlined_call_operand.vmem [shape: f32[16,32], index: 7, kind: input, shape index: {}]
  %s8 = inlined_call_operand.vmem [shape: f32[16,32], index: 8, kind: input, shape index: {}]
  %s9 = inlined_call_operand.vmem [shape: f32[4,16,32], index: 9, kind: output, shape index: {}]
  %s10 = sld [smem:[#allocation0]]
  $region69: #{_lambda_.16} parent=0
    _
  %s12 = ssub.s32 1, %s10
  %s13 = scalar_select 0, %s12, %s10
  loop: start=0, step=1, limit=6
  $region2: #{_lambda_.16} parent=0 // loop_pre_header
    _
  $region3: #{_lambda_.16} parent=0 // loop_header
    %s15 = sphi 0, %s19
    %p16 = scmp.ge.s32.totalorder %s15, 6
    %s25 = sphi 0, %s27
    %s28 = sphi 0, %s25
    %s29 = sphi 0, %s28
    %s45 = sphi 0, %s29
    %s51 = sphi 0, %s53
    %s54 = sphi 0, %s51
    %s55 = sphi 0, %s54
    %s71 = sphi 0, %s55
    %s75 = sphi 0, %s75
    %s77 = sphi 0, %s75
    %s78 = sphi 0, %s77
    %s92 = sphi 0, %s78
    %s96 = sphi 0, %s96
    %s98 = sphi 0, %s96
    %s99 = sphi 0, %s98
    %s113 = sphi 0, %s99
    %s117 = sphi 0, %s117
    %s119 = sphi 0, %s117
    %s120 = sphi 0, %s119
    %s134 = sphi 0, %s120
    %s138 = sphi 0, %s138
    %s140 = sphi 0, %s138
    %s141 = sphi 0, %s140
    %s155 = sphi 0, %s141
    %s159 = sphi 0, %s159
    %s161 = sphi 0, %s159
    %s162 = sphi 0, %s161
    %s176 = sphi 0, %s162
    %s180 = sphi 0, %s180
    %s182 = sphi 0, %s180
    %s183 = sphi 0, %s182
    %s197 = sphi 0, %s183
    %s201 = sphi 0, %s201
    %s203 = sphi 0, %s201
    %s204 = sphi 0, %s203
    %s218 = sphi 0, %s204
    %s224 = sphi 0, %s226
    %s227 = sphi 0, %s224
    %s228 = sphi 0, %s227
    %s244 = sphi 0, %s228
  $region4: #{_lambda_.16} parent=0 // loop_header_branch
    %18 = sbr.rel (%p16) target = $region8
  $region5: #{_lambda_.16} parent=0 // loop_body
    %s20 = ssub.s32 %s15, 1
    %s21 = ssub.s32 %s15, 2
    %s22 = sadd.s32 %s15, 1
    %s23 = ssub.s32 %s15, %s22
    %p24 = scmp.eq.s32.totalorder %s23, 0
    %s26 = sadd.s32 %s25, 1
    %s27 = scalar_select %p24, %s25, %s26
    %p30 = pneg %p24
    %p31 = scmp.eq.s32.totalorder %s15, 3
    %p32 = por %p30, %p31
    %p33 = scmp.ne.s32.totalorder %s25, %s28
    %p34 = scmp.eq.s32.totalorder %s15, 0
    %p35 = por %p33, %p34
    %p36 = scmp.ne.s32.totalorder %s25, %s28
    %p37 = scmp.eq.s32.totalorder %s20, 3
    %p38 = por %p36, %p37
    %p39 = scmp.ne.s32.totalorder %s28, %s29
    %p40 = scmp.eq.s32.totalorder %s20, 0
    %p41 = por %p39, %p40
    %p42 = scmp.ne.s32.totalorder %s28, %s29
    %p43 = scmp.eq.s32.totalorder %s21, 3
    %p44 = por %p42, %p43
    %p46 = scmp.ne.s32.totalorder %s29, %s45
    %p47 = scmp.eq.s32.totalorder %s21, 0
    %p48 = por %p46, %p47
    %s49 = ssub.s32 %s15, %s22
    %p50 = scmp.eq.s32.totalorder %s49, 0
    %s52 = sadd.s32 %s51, 1
    %s53 = scalar_select %p50, %s51, %s52
    %p56 = pneg %p50
    %p57 = scmp.eq.s32.totalorder %s15, 3
    %p58 = por %p56, %p57
    %p59 = scmp.ne.s32.totalorder %s51, %s54
    %p60 = scmp.eq.s32.totalorder %s15, 0
    %p61 = por %p59, %p60
    %p62 = scmp.ne.s32.totalorder %s51, %s54
    %p63 = scmp.eq.s32.totalorder %s20, 3
    %p64 = por %p62, %p63
    %p65 = scmp.ne.s32.totalorder %s54, %s55
    %p66 = scmp.eq.s32.totalorder %s20, 0
    %p67 = por %p65, %p66
    %p68 = scmp.ne.s32.totalorder %s54, %s55
    %p69 = scmp.eq.s32.totalorder %s21, 3
    %p70 = por %p68, %p69
    %p72 = scmp.ne.s32.totalorder %s55, %s71
    %p73 = scmp.eq.s32.totalorder %s21, 0
    %p74 = por %p72, %p73
    %s76 = sadd.s32 %s75, 1
    %p79 = scmp.eq.s32.totalorder %s15, 3
    %p80 = scmp.ne.s32.totalorder %s75, %s77
    %p81 = scmp.eq.s32.totalorder %s15, 0
    %p82 = por %p80, %p81
    %p83 = scmp.ne.s32.totalorder %s75, %s77
    %p84 = scmp.eq.s32.totalorder %s20, 3
    %p85 = por %p83, %p84
    %p86 = scmp.ne.s32.totalorder %s77, %s78
    %p87 = scmp.eq.s32.totalorder %s20, 0
    %p88 = por %p86, %p87
    %p89 = scmp.ne.s32.totalorder %s77, %s78
    %p90 = scmp.eq.s32.totalorder %s21, 3
    %p91 = por %p89, %p90
    %p93 = scmp.ne.s32.totalorder %s78, %s92
    %p94 = scmp.eq.s32.totalorder %s21, 0
    %p95 = por %p93, %p94
    %s97 = sadd.s32 %s96, 1
    %p100 = scmp.eq.s32.totalorder %s15, 3
    %p101 = scmp.ne.s32.totalorder %s96, %s98
    %p102 = scmp.eq.s32.totalorder %s15, 0
    %p103 = por %p101, %p102
    %p104 = scmp.ne.s32.totalorder %s96, %s98
    %p105 = scmp.eq.s32.totalorder %s20, 3
    %p106 = por %p104, %p105
    %p107 = scmp.ne.s32.totalorder %s98, %s99
    %p108 = scmp.eq.s32.totalorder %s20, 0
    %p109 = por %p107, %p108
    %p110 = scmp.ne.s32.totalorder %s98, %s99
    %p111 = scmp.eq.s32.totalorder %s21, 3
    %p112 = por %p110, %p111
    %p114 = scmp.ne.s32.totalorder %s99, %s113
    %p115 = scmp.eq.s32.totalorder %s21, 0
    %p116 = por %p114, %p115
    %s118 = sadd.s32 %s117, 1
    %p121 = scmp.eq.s32.totalorder %s15, 3
    %p122 = scmp.ne.s32.totalorder %s117, %s119
    %p123 = scmp.eq.s32.totalorder %s15, 0
    %p124 = por %p122, %p123
    %p125 = scmp.ne.s32.totalorder %s117, %s119
    %p126 = scmp.eq.s32.totalorder %s20, 3
    %p127 = por %p125, %p126
    %p128 = scmp.ne.s32.totalorder %s119, %s120
    %p129 = scmp.eq.s32.totalorder %s20, 0
    %p130 = por %p128, %p129
    %p131 = scmp.ne.s32.totalorder %s119, %s120
    %p132 = scmp.eq.s32.totalorder %s21, 3
    %p133 = por %p131, %p132
    %p135 = scmp.ne.s32.totalorder %s120, %s134
    %p136 = scmp.eq.s32.totalorder %s21, 0
    %p137 = por %p135, %p136
    %s139 = sadd.s32 %s138, 1
    %p142 = scmp.eq.s32.totalorder %s15, 3
    %p143 = scmp.ne.s32.totalorder %s138, %s140
    %p144 = scmp.eq.s32.totalorder %s15, 0
    %p145 = por %p143, %p144
    %p146 = scmp.ne.s32.totalorder %s138, %s140
    %p147 = scmp.eq.s32.totalorder %s20, 3
    %p148 = por %p146, %p147
    %p149 = scmp.ne.s32.totalorder %s140, %s141
    %p150 = scmp.eq.s32.totalorder %s20, 0
    %p151 = por %p149, %p150
    %p152 = scmp.ne.s32.totalorder %s140, %s141
    %p153 = scmp.eq.s32.totalorder %s21, 3
    %p154 = por %p152, %p153
    %p156 = scmp.ne.s32.totalorder %s141, %s155
    %p157 = scmp.eq.s32.totalorder %s21, 0
    %p158 = por %p156, %p157
    %s160 = sadd.s32 %s159, 1
    %p163 = scmp.eq.s32.totalorder %s15, 3
    %p164 = scmp.ne.s32.totalorder %s159, %s161
    %p165 = scmp.eq.s32.totalorder %s15, 0
    %p166 = por %p164, %p165
    %p167 = scmp.ne.s32.totalorder %s159, %s161
    %p168 = scmp.eq.s32.totalorder %s20, 3
    %p169 = por %p167, %p168
    %p170 = scmp.ne.s32.totalorder %s161, %s162
    %p171 = scmp.eq.s32.totalorder %s20, 0
    %p172 = por %p170, %p171
    %p173 = scmp.ne.s32.totalorder %s161, %s162
    %p174 = scmp.eq.s32.totalorder %s21, 3
    %p175 = por %p173, %p174
    %p177 = scmp.ne.s32.totalorder %s162, %s176
    %p178 = scmp.eq.s32.totalorder %s21, 0
    %p179 = por %p177, %p178
    %s181 = sadd.s32 %s180, 1
    %p184 = scmp.eq.s32.totalorder %s15, 3
    %p185 = scmp.ne.s32.totalorder %s180, %s182
    %p186 = scmp.eq.s32.totalorder %s15, 0
    %p187 = por %p185, %p186
    %p188 = scmp.ne.s32.totalorder %s180, %s182
    %p189 = scmp.eq.s32.totalorder %s20, 3
    %p190 = por %p188, %p189
    %p191 = scmp.ne.s32.totalorder %s182, %s183
    %p192 = scmp.eq.s32.totalorder %s20, 0
    %p193 = por %p191, %p192
    %p194 = scmp.ne.s32.totalorder %s182, %s183
    %p195 = scmp.eq.s32.totalorder %s21, 3
    %p196 = por %p194, %p195
    %p198 = scmp.ne.s32.totalorder %s183, %s197
    %p199 = scmp.eq.s32.totalorder %s21, 0
    %p200 = por %p198, %p199
    %s202 = sadd.s32 %s201, 1
    %p205 = scmp.eq.s32.totalorder %s15, 3
    %p206 = scmp.ne.s32.totalorder %s201, %s203
    %p207 = scmp.eq.s32.totalorder %s15, 0
    %p208 = por %p206, %p207
    %p209 = scmp.ne.s32.totalorder %s201, %s203
    %p210 = scmp.eq.s32.totalorder %s20, 3
    %p211 = por %p209, %p210
    %p212 = scmp.ne.s32.totalorder %s203, %s204
    %p213 = scmp.eq.s32.totalorder %s20, 0
    %p214 = por %p212, %p213
    %p215 = scmp.ne.s32.totalorder %s203, %s204
    %p216 = scmp.eq.s32.totalorder %s21, 3
    %p217 = por %p215, %p216
    %p219 = scmp.ne.s32.totalorder %s204, %s218
    %p220 = scmp.eq.s32.totalorder %s21, 0
    %p221 = por %p219, %p220
    %s222 = ssub.s32 %s15, %s22
    %p223 = scmp.eq.s32.totalorder %s222, 0
    %s225 = sadd.s32 %s224, 1
    %s226 = scalar_select %p223, %s224, %s225
    %p229 = pneg %p223
    %p230 = scmp.eq.s32.totalorder %s15, 3
    %p231 = por %p229, %p230
    %p232 = scmp.ne.s32.totalorder %s224, %s227
    %p233 = scmp.eq.s32.totalorder %s15, 0
    %p234 = por %p232, %p233
    %p235 = scmp.ne.s32.totalorder %s224, %s227
    %p236 = scmp.eq.s32.totalorder %s20, 3
    %p237 = por %p235, %p236
    %p238 = scmp.ne.s32.totalorder %s227, %s228
    %p239 = scmp.eq.s32.totalorder %s20, 0
    %p240 = por %p238, %p239
    %p241 = scmp.ne.s32.totalorder %s227, %s228
    %p242 = scmp.eq.s32.totalorder %s21, 3
    %p243 = por %p241, %p242
    %p245 = scmp.ne.s32.totalorder %s228, %s244
    %p246 = scmp.eq.s32.totalorder %s21, 0
    %p247 = por %p245, %p246
    %p248 = scmp.le.s32.totalorder 1, %s15
    %p249 = scmp.lt.s32.totalorder %s15, 5
    %p250 = pnand %p248, %p249
    %p251 = pneg %p250
    // Predicated region
    $region9: #{_lambda_.16} parent=5 // pred_check
      _
    $region10: #{_lambda_.16} parent=5 // pred_check_branch
      %253 = sbr.rel (%p250) target = $region12
    $region11: #{_lambda_.16} parent=5 // pred_region
      %s254 = ssub.s32 %s15, 1
      // Predicated region
      $region13: #{_lambda_.16} parent=11 // pred_check
        %p255 = pneg %p88
      $region14: #{_lambda_.16} parent=11 // pred_check_branch
        %257 = sbr.rel (%p255) target = $region16
      $region15: #{_lambda_.16} parent=11 // pred_region
        _
      $region16: #{_lambda_.16} parent=11 // pred_fallthru
        _
      // Predicated region
      $region17: #{_lambda_.16} parent=11 // pred_check
        %p258 = pneg %p109
      $region18: #{_lambda_.16} parent=11 // pred_check_branch
        %260 = sbr.rel (%p258) target = $region20
      $region19: #{_lambda_.16} parent=11 // pred_region
        _
      $region20: #{_lambda_.16} parent=11 // pred_fallthru
        _
      // Predicated region
      $region21: #{_lambda_.16} parent=11 // pred_check
        %p261 = pneg %p130
      $region22: #{_lambda_.16} parent=11 // pred_check_branch
        %263 = sbr.rel (%p261) target = $region24
      $region23: #{_lambda_.16} parent=11 // pred_region
        _
      $region24: #{_lambda_.16} parent=11 // pred_fallthru
        _
      // Predicated region
      $region25: #{_lambda_.16} parent=11 // pred_check
        %p264 = pneg %p151
      $region26: #{_lambda_.16} parent=11 // pred_check_branch
        %266 = sbr.rel (%p264) target = $region28
      $region27: #{_lambda_.16} parent=11 // pred_region
        _
      $region28: #{_lambda_.16} parent=11 // pred_fallthru
        _
      // Predicated region
      $region29: #{_lambda_.16} parent=11 // pred_check
        %p267 = pneg %p172
      $region30: #{_lambda_.16} parent=11 // pred_check_branch
        %269 = sbr.rel (%p267) target = $region32
      $region31: #{_lambda_.16} parent=11 // pred_region
        _
      $region32: #{_lambda_.16} parent=11 // pred_fallthru
        _
      // Predicated region
      $region33: #{_lambda_.16} parent=11 // pred_check
        %p270 = pneg %p193
      $region34: #{_lambda_.16} parent=11 // pred_check_branch
        %272 = sbr.rel (%p270) target = $region36
      $region35: #{_lambda_.16} parent=11 // pred_region
        _
      $region36: #{_lambda_.16} parent=11 // pred_fallthru
        _
      // Predicated region
      $region37: #{_lambda_.16} parent=11 // pred_check
        %p273 = pneg %p214
      $region38: #{_lambda_.16} parent=11 // pred_check_branch
        %275 = sbr.rel (%p273) target = $region40
      $region39: #{_lambda_.16} parent=11 // pred_region
        _
      $region40: #{_lambda_.16} parent=11 // pred_fallthru
        _
    $region12: #{_lambda_.16} parent=5 // pred_fallthru
      _
    %p276 = scmp.lt.s32.totalorder %s15, 4
    // Predicated region
    $region41: #{_lambda_.16} parent=5 // pred_check
      %p277 = pneg %p276
    $region42: #{_lambda_.16} parent=5 // pred_check_branch
      %279 = sbr.rel (%p277) target = $region44
    $region43: #{_lambda_.16} parent=5 // pred_region
      // Predicated region
      $region45: #{_lambda_.16} parent=43 // pred_check
        %p280 = pneg %p35
      $region46: #{_lambda_.16} parent=43 // pred_check_branch
        %282 = sbr.rel (%p280) target = $region48
      $region47: #{_lambda_.16} parent=43 // pred_region
        %p283 = scmp.lt.s32.totalorder %s15, 3
        %s284 = scalar_select %p283, %s15, 3
        %s285 = smul.addr %s284, 2
        %s286 = smul.addr %s285, 4
        %s287 = scalar_lea.vmem %s0, %s286
      $region48: #{_lambda_.16} parent=43 // pred_fallthru
        _
      // Predicated region
      $region49: #{_lambda_.16} parent=43 // pred_check
        %p288 = pneg %p61
      $region50: #{_lambda_.16} parent=43 // pred_check_branch
        %290 = sbr.rel (%p288) target = $region52
      $region51: #{_lambda_.16} parent=43 // pred_region
        %p291 = scmp.lt.s32.totalorder %s15, 3
        %s292 = scalar_select %p291, %s15, 3
        %s293 = smul.addr %s292, 2
        %s294 = smul.addr %s293, 8
        %s295 = scalar_lea.vmem %s1, %s294
      $region52: #{_lambda_.16} parent=43 // pred_fallthru
        _
    $region44: #{_lambda_.16} parent=5 // pred_fallthru
      _
    %p296 = scmp.le.s32.totalorder 1, %s15
    %p297 = scmp.lt.s32.totalorder %s15, 5
    %p298 = pnand %p296, %p297
    %p299 = pneg %p298
    // Predicated region
    $region53: #{_lambda_.16} parent=5 // pred_check
      _
    $region54: #{_lambda_.16} parent=5 // pred_check_branch
      %301 = sbr.rel (%p298) target = $region56
    $region55: #{_lambda_.16} parent=5 // pred_region
      %s302 = ssub.s32 %s15, 1
      %p303 = scmp.lt.s32.totalorder %s20, 3
      %s304 = scalar_select %p303, %s20, 3
      %s305 = smul.addr %s304, 2
      %s306 = smul.addr %s305, 4
      %s307 = scalar_lea.vmem %s0, %s306
      %p308 = pneg %p41
      %p309 = pneg %p38
      %p310 = scmp.lt.s32.totalorder %s20, 3
      %s311 = scalar_select %p310, %s20, 3
      %s312 = smul.addr %s311, 2
      %s313 = smul.addr %s312, 8
      %s314 = scalar_lea.vmem %s1, %s313
      %p315 = pneg %p67
      %p316 = pneg %p64
      %p317 = pneg %p88
      %p318 = pneg %p85
      %p319 = pneg %p109
      %p320 = pneg %p106
      %p321 = pneg %p130
      %p322 = pneg %p127
      %p323 = pneg %p151
      %p324 = pneg %p148
      %p325 = pneg %p172
      %p326 = pneg %p169
      %p327 = pneg %p193
      %p328 = pneg %p190
      %p329 = pneg %p214
      %p330 = pneg %p211
      %p331 = pneg %p240
      %p332 = pneg %p237
      %p333 = scmp.lt.s32.totalorder %s20, 3
      %s334 = scalar_select %p333, %s20, 3
      %s335 = smul.addr %s334, 2
      %s336 = smul.addr %s335, 8
      %s337 = scalar_lea.vmem %s9, %s336
      %p338 = scmp.lt.s32.totalorder %s20, 3
      %s339 = scalar_select %p338, %s20, 3
      %s340 = smul.addr %s339, 2
      %s341 = smul.addr %s340, 4
      %s342 = scalar_lea.vmem %s0, %s341
      %p343 = scmp.lt.s32.totalorder %s20, 3
      %s344 = scalar_select %p343, %s20, 3
      %s345 = smul.addr %s344, 2
      %s346 = smul.addr %s345, 8
      %s347 = scalar_lea.vmem %s1, %s346
      %p348 = scmp.lt.s32.totalorder %s20, 3
      %s349 = scalar_select %p348, %s20, 3
      %s350 = smul.addr %s349, 2
      %s351 = smul.addr %s350, 8
      %s352 = scalar_lea.vmem %s9, %s351
      %v354 = vld [vmem:[%s342] sm:$0xf]
      %v355 = vld [vmem:[%s342 + $0x4] sm:$0xf]
      %v356 = vld [vmem:[%s3] sm:$0xf]
      %v357 = vld [vmem:[%s3 + $0x4] sm:$0xf]
      %v358 = vld [vmem:[%s3 + $0x8] sm:$0xf]
      %v359 = vld [vmem:[%s3 + $0xc] sm:$0xf]
      %v360 = vld [vmem:[%s6] sm:$0xff]
      %v361 = vld [vmem:[%s6 + $0x8] sm:$0xff]
      %v364 = vunpack.c.l.b16 %v354
      %v365 = vunpack.c.l.b16 %v355
      %v366 = vpack.c.b16 %v365, %v364
      %v371 = vunpack.c.l.b16 %v356
      %v372 = vunpack.c.l.b16 %v357
      %v373 = vunpack.c.l.b16 %v358
      %v374 = vunpack.c.l.b16 %v359
      %v375 = vpack.c.b16 %v372, %v371
      %v376 = vpack.c.b16 %v374, %v373
      %vm379 = vcmask 261120
      %v381 = vsel %vm379, %v366, 0
      %383 = vmatprep.subr.bf16.mxu0 0
      %384 = vmatpush1.bf16.msra.mxu0 %v375
      %385 = vmatprep.subr.bf16.mxu0 0
      %386 = vmatpush1.bf16.msra.mxu0 %v376
      %387 = vmatprep.subr.bf16.mxu0 0
      %388 = vmatpush1.bf16.msra.mxu0 0
      %389 = vmatprep.subr.bf16.mxu0 0
      %390 = vmatpush1.bf16.msra.mxu0 0
      %391 = vmatprep.subr.bf16.mxu0 0
      %392 = vmatpush1.bf16.msra.mxu0 0
      %393 = vmatprep.subr.bf16.mxu0 0
      %394 = vmatpush1.bf16.msra.mxu0 0
      %395 = vmatprep.subr.bf16.mxu0 0
      %396 = vmatpush1.bf16.msra.mxu0 0
      %397 = vmatprep.subr.bf16.mxu0 0
      %398 = vmatpush1.bf16.msra.mxu0 0
      %399 = vmatprep.subr.bf16.mxu0 0
      %400 = vmatpush1.bf16.msra.mxu0 0
      %401 = vmatprep.subr.bf16.mxu0 0
      %402 = vmatpush1.bf16.msra.mxu0 0
      %403 = vmatprep.subr.bf16.mxu0 0
      %404 = vmatpush1.bf16.msra.mxu0 0
      %405 = vmatprep.subr.bf16.mxu0 0
      %406 = vmatpush1.bf16.msra.mxu0 0
      %407 = vmatprep.subr.bf16.mxu0 0
      %408 = vmatpush1.bf16.msra.mxu0 0
      %409 = vmatprep.subr.bf16.mxu0 0
      %410 = vmatpush1.bf16.msra.mxu0 0
      %411 = vmatprep.subr.bf16.mxu0 0
      %412 = vmatpush1.bf16.msra.mxu0 0
      %413 = vmatprep.subr.bf16.mxu0 0
      %414 = vmatpush1.bf16.msra.mxu0 0
      %415 = vmatprep.mubr.bf16.mxu0 0
      %416 = vmatmul.mubr.bf16.gmra.mrb[0].mxu0 %v381
      %v417 = vpop.f32.mrb[0].mxu0
      %v418 = vadd.f32 %v360, %v417
      %v419 = vpop.f32.mrb[0].mxu0
      %v420 = vpop.f32.mrb[0].mxu0
      %v421 = vadd.f32 %v361, %v420
      %v422 = vpop.f32.mrb[0].mxu0
      %423 = vdwg.mxu0
      %v424 = vld [vmem:[%s4] sm:$0xf]
      %v425 = vld [vmem:[%s4 + $0x4] sm:$0xf]
      %v426 = vld [vmem:[%s4 + $0x8] sm:$0xf]
      %v427 = vld [vmem:[%s4 + $0xc] sm:$0xf]
      %v428 = vld [vmem:[%s7] sm:$0xff]
      %v429 = vld [vmem:[%s7 + $0x8] sm:$0xff]
      %v434 = vunpack.c.l.b16 %v424
      %v435 = vunpack.c.l.b16 %v425
      %v436 = vunpack.c.l.b16 %v426
      %v437 = vunpack.c.l.b16 %v427
      %v438 = vpack.c.b16 %v435, %v434
      %v439 = vpack.c.b16 %v437, %v436
      %442 = vmatprep.subr.bf16.mxu0 0
      %443 = vmatpush1.bf16.msra.mxu0 %v438
      %444 = vmatprep.subr.bf16.mxu0 0
      %445 = vmatpush1.bf16.msra.mxu0 %v439
      %446 = vmatprep.subr.bf16.mxu0 0
      %447 = vmatpush1.bf16.msra.mxu0 0
      %448 = vmatprep.subr.bf16.mxu0 0
      %449 = vmatpush1.bf16.msra.mxu0 0
      %450 = vmatprep.subr.bf16.mxu0 0
      %451 = vmatpush1.bf16.msra.mxu0 0
      %452 = vmatprep.subr.bf16.mxu0 0
      %453 = vmatpush1.bf16.msra.mxu0 0
      %454 = vmatprep.subr.bf16.mxu0 0
      %455 = vmatpush1.bf16.msra.mxu0 0
      %456 = vmatprep.subr.bf16.mxu0 0
      %457 = vmatpush1.bf16.msra.mxu0 0
      %458 = vmatprep.subr.bf16.mxu0 0
      %459 = vmatpush1.bf16.msra.mxu0 0
      %460 = vmatprep.subr.bf16.mxu0 0
      %461 = vmatpush1.bf16.msra.mxu0 0
      %462 = vmatprep.subr.bf16.mxu0 0
      %463 = vmatpush1.bf16.msra.mxu0 0
      %464 = vmatprep.subr.bf16.mxu0 0
      %465 = vmatpush1.bf16.msra.mxu0 0
      %466 = vmatprep.subr.bf16.mxu0 0
      %467 = vmatpush1.bf16.msra.mxu0 0
      %468 = vmatprep.subr.bf16.mxu0 0
      %469 = vmatpush1.bf16.msra.mxu0 0
      %470 = vmatprep.subr.bf16.mxu0 0
      %471 = vmatpush1.bf16.msra.mxu0 0
      %472 = vmatprep.subr.bf16.mxu0 0
      %473 = vmatpush1.bf16.msra.mxu0 0
      %474 = vmatprep.mubr.bf16.mxu0 0
      %475 = vmatmul.mubr.bf16.gmra.mrb[0].mxu0 %v381
      %v476 = vpop.f32.mrb[0].mxu0
      %v477 = vadd.f32 %v428, %v476
      %v478 = vpop.f32.mrb[0].mxu0
      %v479 = vpop.f32.mrb[0].mxu0
      %v480 = vadd.f32 %v429, %v479
      %v481 = vpop.f32.mrb[0].mxu0
      %482 = vdwg.mxu0
      %v483 = vld [vmem:[%s5] sm:$0xf]
      %v484 = vld [vmem:[%s5 + $0x4] sm:$0xf]
      %v485 = vld [vmem:[%s5 + $0x8] sm:$0xf]
      %v486 = vld [vmem:[%s5 + $0xc] sm:$0xf]
      %v487 = vld [vmem:[%s8] sm:$0xff]
      %v488 = vld [vmem:[%s8 + $0x8] sm:$0xff]
      %v493 = vunpack.c.l.b16 %v483
      %v494 = vunpack.c.l.b16 %v484
      %v495 = vunpack.c.l.b16 %v485
      %v496 = vunpack.c.l.b16 %v486
      %v497 = vpack.c.b16 %v494, %v493
      %v498 = vpack.c.b16 %v496, %v495
      %501 = vmatprep.subr.bf16.mxu0 0
      %502 = vmatpush1.bf16.msra.mxu0 %v497
      %503 = vmatprep.subr.bf16.mxu0 0
      %504 = vmatpush1.bf16.msra.mxu0 %v498
      %505 = vmatprep.subr.bf16.mxu0 0
      %506 = vmatpush1.bf16.msra.mxu0 0
      %507 = vmatprep.subr.bf16.mxu0 0
      %508 = vmatpush1.bf16.msra.mxu0 0
      %509 = vmatprep.subr.bf16.mxu0 0
      %510 = vmatpush1.bf16.msra.mxu0 0
      %511 = vmatprep.subr.bf16.mxu0 0
      %512 = vmatpush1.bf16.msra.mxu0 0
      %513 = vmatprep.subr.bf16.mxu0 0
      %514 = vmatpush1.bf16.msra.mxu0 0
      %515 = vmatprep.subr.bf16.mxu0 0
      %516 = vmatpush1.bf16.msra.mxu0 0
      %517 = vmatprep.subr.bf16.mxu0 0
      %518 = vmatpush1.bf16.msra.mxu0 0
      %519 = vmatprep.subr.bf16.mxu0 0
      %520 = vmatpush1.bf16.msra.mxu0 0
      %521 = vmatprep.subr.bf16.mxu0 0
      %522 = vmatpush1.bf16.msra.mxu0 0
      %523 = vmatprep.subr.bf16.mxu0 0
      %524 = vmatpush1.bf16.msra.mxu0 0
      %525 = vmatprep.subr.bf16.mxu0 0
      %526 = vmatpush1.bf16.msra.mxu0 0
      %527 = vmatprep.subr.bf16.mxu0 0
      %528 = vmatpush1.bf16.msra.mxu0 0
      %529 = vmatprep.subr.bf16.mxu0 0
      %530 = vmatpush1.bf16.msra.mxu0 0
      %531 = vmatprep.subr.bf16.mxu0 0
      %532 = vmatpush1.bf16.msra.mxu0 0
      %533 = vmatprep.mubr.bf16.mxu0 0
      %534 = vmatmul.mubr.bf16.gmra.mrb[0].mxu0 %v381
      %v535 = vpop.f32.mrb[0].mxu0
      %v536 = vadd.f32 %v487, %v535
      %v537 = vpop.f32.mrb[0].mxu0
      %v538 = vpop.f32.mrb[0].mxu0
      %v539 = vadd.f32 %v488, %v538
      %v540 = vpop.f32.mrb[0].mxu0
      %541 = vdwg.mxu0
      %v542 = vld [vmem:[%s2] sm:$0xf]
      %v543 = vld [vmem:[%s2 + $0x4] sm:$0xf]
      %v544 = vpack.c.bf16 %v421, %v418
      %v547 = vunpack.c.l.b16 %v542
      %v548 = vunpack.c.l.b16 %v543
      %v549 = vpack.c.b16 %v548, %v547
      %vm550 = vcmask 130048
      %v552 = vsel %vm550, %v549, 0
      %554 = vmatprep.subr.bf16.mxu0 0
      %555 = vmatpush1.bf16.msra.mxu0 %v544
      %556 = vmatprep.subr.bf16.mxu0 0
      %557 = vmatpush1.bf16.msra.mxu0 0
      %558 = vmatprep.subr.bf16.mxu0 0
      %559 = vmatpush1.bf16.msra.mxu0 0
      %560 = vmatprep.subr.bf16.mxu0 0
      %561 = vmatpush1.bf16.msra.mxu0 0
      %562 = vmatprep.subr.bf16.mxu0 0
      %563 = vmatpush1.bf16.msra.mxu0 0
      %564 = vmatprep.subr.bf16.mxu0 0
      %565 = vmatpush1.bf16.msra.mxu0 0
      %566 = vmatprep.subr.bf16.mxu0 0
      %567 = vmatpush1.bf16.msra.mxu0 0
      %568 = vmatprep.subr.bf16.mxu0 0
      %569 = vmatpush1.bf16.msra.mxu0 0
      %570 = vmatprep.subr.bf16.mxu0 0
      %571 = vmatpush1.bf16.msra.mxu0 0
      %572 = vmatprep.subr.bf16.mxu0 0
      %573 = vmatpush1.bf16.msra.mxu0 0
      %574 = vmatprep.subr.bf16.mxu0 0
      %575 = vmatpush1.bf16.msra.mxu0 0
      %576 = vmatprep.subr.bf16.mxu0 0
      %577 = vmatpush1.bf16.msra.mxu0 0
      %578 = vmatprep.subr.bf16.mxu0 0
      %579 = vmatpush1.bf16.msra.mxu0 0
      %580 = vmatprep.subr.bf16.mxu0 0
      %581 = vmatpush1.bf16.msra.mxu0 0
      %582 = vmatprep.subr.bf16.mxu0 0
      %583 = vmatpush1.bf16.msra.mxu0 0
      %584 = vmatprep.subr.bf16.mxu0 0
      %585 = vmatpush1.bf16.msra.mxu0 0
      %586 = vmatprep.mubr.bf16.mxu0 0
      %587 = vmatmul.mubr.bf16.gmra.mrb[0].mxu0 %v552
      %v588 = vpop.f32.mrb[0].mxu0
      %v589 = vadd.f32 0.0, %v588
      %v590 = vpop.f32.mrb[0].mxu0
      %v591 = vpop.f32.mrb[0].mxu0
      %v592 = vadd.f32 0.0, %v591
      %v593 = vpop.f32.mrb[0].mxu0
      %594 = vdwg.mxu0
      %v595 = vmul.f32 %v477, %v589
      %v596 = vmul.f32 %v480, %v592
      %v597 = vadd.f32 %v595, %v536
      %v598 = vadd.f32 %v596, %v539
      %vm599 = vcmp.gt.f32.partialorder %v597, 0.0
      %vm600 = vcmp.gt.f32.partialorder %v598, 0.0
      %v601 = vmin.f32 %v597, 0.0
      %v602 = vmin.f32 %v598, 0.0
      %v603 = vmul.f32 %v601, 1.442695
      %v604 = vpow.pop %v603
      %v605 = vmul.f32 %v602, 1.442695
      %v606 = vpow.pop %v605
      %v607 = vsub.f32 %v604, 1.0
      %v608 = vsub.f32 %v606, 1.0
      %v609 = vsel %vm599, %v597, %v607
      %v610 = vsel %vm600, %v598, %v608
      %v611 = vld [vmem:[%s347] sm:$0xff]
      %v612 = vld [vmem:[%s347 + $0x8] sm:$0xff]
      %v613 = vadd.f32 %v609, %v611
      %v614 = vadd.f32 %v610, %v612
      %615 = vst.msk [vmem:[%s352] sm:$0xff] %vm379, %v613
      %616 = vst.msk [vmem:[%s352 + $0x8] sm:$0xff] %vm379, %v614
      %p617 = scmp.lt.s32.totalorder %s20, 3
      %s618 = scalar_select %p617, %s20, 3
      %s619 = smul.addr %s618, 2
      %s620 = smul.addr %s619, 8
      %s621 = scalar_lea.vmem %s9, %s620
      // Predicated region
      $region57: #{_lambda_.16} parent=55 // pred_check
        %p622 = pneg %p237
      $region58: #{_lambda_.16} parent=55 // pred_check_branch
        %624 = sbr.rel (%p622) target = $region60
      $region59: #{_lambda_.16} parent=55 // pred_region
        _
      $region60: #{_lambda_.16} parent=55 // pred_fallthru
        _
    $region56: #{_lambda_.16} parent=5 // pred_fallthru
      _
    %p625 = scmp.le.s32.totalorder 2, %s15
    // Predicated region
    $region61: #{_lambda_.16} parent=5 // pred_check
      %p626 = pneg %p625
    $region62: #{_lambda_.16} parent=5 // pred_check_branch
      %628 = sbr.rel (%p626) target = $region64
    $region63: #{_lambda_.16} parent=5 // pred_region
      %s629 = ssub.s32 %s15, 2
      // Predicated region
      $region65: #{_lambda_.16} parent=63 // pred_check
        %p630 = pneg %p243
      $region66: #{_lambda_.16} parent=63 // pred_check_branch
        %632 = sbr.rel (%p630) target = $region68
      $region67: #{_lambda_.16} parent=63 // pred_region
        %p633 = scmp.lt.s32.totalorder %s21, 3
        %s634 = scalar_select %p633, %s21, 3
        %s635 = smul.addr %s634, 2
        %s636 = smul.addr %s635, 8
        %s637 = scalar_lea.vmem %s9, %s636
      $region68: #{_lambda_.16} parent=63 // pred_fallthru
        _
    $region64: #{_lambda_.16} parent=5 // pred_fallthru
      _
  $region6: #{_lambda_.16} parent=0 // loop_footer
    %s19 = sadd.s32 1, %s15
  $region7: #{_lambda_.16} parent=0 // loop_footer_branch
    %14 = sbr.rel target = $region3
  $region8: #{_lambda_.16} parent=0 // loop_exit
    _

// kernel: _lambda_.17
$region0: #{_lambda_.17}
  #allocation0 [shape = 'u32[]', space=smem, size = 0x4, offset = 0x4, fixed_abs, tag = 'smem constant byte address 0x4 - core index']
  #allocation1 [shape = 'u32[144,128]{1,0:T(1,128)}', space=vmem, size = 0x12000, scoped, tag = 'internal scratch']
  %s0 = inlined_call_operand.vmem [shape: bf16[32,32], index: 0, kind: input, shape index: {}]
  %s1 = inlined_call_operand.vmem [shape: bf16[32,64], index: 1, kind: input, shape index: {}]
  %s2 = inlined_call_operand.vmem [shape: bf16[64,64], index: 2, kind: input, shape index: {}]
  %s3 = inlined_call_operand.vmem [shape: bf16[64,64], index: 3, kind: input, shape index: {}]
  %s4 = inlined_call_operand.vmem [shape: bf16[64,64], index: 4, kind: input, shape index: {}]
  %s5 = inlined_call_operand.vmem [shape: bf16[64,12], index: 5, kind: input, shape index: {}]
  %s6 = inlined_call_operand.vmem [shape: f32[4,64], index: 6, kind: input, shape index: {}]
  %s7 = inlined_call_operand.vmem [shape: f32[1,12], index: 7, kind: input, shape index: {}]
  %s8 = inlined_call_operand.vmem [shape: f32[32,12], index: 8, kind: output, shape index: {}]
  %s9 = sld [smem:[#allocation0]]
  $region42: #{_lambda_.17} parent=0
    _
  %s11 = ssub.s32 1, %s9
  %s12 = scalar_select 0, %s11, %s9
  // Predicated region
  $region2: #{_lambda_.17} parent=0 // pred_check
    _
  $region3: #{_lambda_.17} parent=0 // pred_check_branch
    %14 = sbr.rel (0) target = $region5
  $region4: #{_lambda_.17} parent=0 // pred_region
    _
  $region5: #{_lambda_.17} parent=0 // pred_fallthru
    _
  // Predicated region
  $region6: #{_lambda_.17} parent=0 // pred_check
    _
  $region7: #{_lambda_.17} parent=0 // pred_check_branch
    %16 = sbr.rel (0) target = $region9
  $region8: #{_lambda_.17} parent=0 // pred_region
    _
  $region9: #{_lambda_.17} parent=0 // pred_fallthru
    _
  // Predicated region
  $region10: #{_lambda_.17} parent=0 // pred_check
    _
  $region11: #{_lambda_.17} parent=0 // pred_check_branch
    %18 = sbr.rel (0) target = $region13
  $region12: #{_lambda_.17} parent=0 // pred_region
    _
  $region13: #{_lambda_.17} parent=0 // pred_fallthru
    _
  // Predicated region
  $region14: #{_lambda_.17} parent=0 // pred_check
    _
  $region15: #{_lambda_.17} parent=0 // pred_check_branch
    %20 = sbr.rel (0) target = $region17
  $region16: #{_lambda_.17} parent=0 // pred_region
    _
  $region17: #{_lambda_.17} parent=0 // pred_fallthru
    _
  // Predicated region
  $region18: #{_lambda_.17} parent=0 // pred_check
    _
  $region19: #{_lambda_.17} parent=0 // pred_check_branch
    %22 = sbr.rel (0) target = $region21
  $region20: #{_lambda_.17} parent=0 // pred_region
    _
  $region21: #{_lambda_.17} parent=0 // pred_fallthru
    _
  // Predicated region
  $region22: #{_lambda_.17} parent=0 // pred_check
    _
  $region23: #{_lambda_.17} parent=0 // pred_check_branch
    %24 = sbr.rel (0) target = $region25
  $region24: #{_lambda_.17} parent=0 // pred_region
    _
  $region25: #{_lambda_.17} parent=0 // pred_fallthru
    _
  // Predicated region
  $region26: #{_lambda_.17} parent=0 // pred_check
    _
  $region27: #{_lambda_.17} parent=0 // pred_check_branch
    %26 = sbr.rel (0) target = $region29
  $region28: #{_lambda_.17} parent=0 // pred_region
    _
  $region29: #{_lambda_.17} parent=0 // pred_fallthru
    _
  // Predicated region
  $region30: #{_lambda_.17} parent=0 // pred_check
    _
  $region31: #{_lambda_.17} parent=0 // pred_check_branch
    %28 = sbr.rel (0) target = $region33
  $region32: #{_lambda_.17} parent=0 // pred_region
    _
  $region33: #{_lambda_.17} parent=0 // pred_fallthru
    _
  %v30 = vld [vmem:[%s6] sm:$0xf]
  %v31 = vld [vmem:[%s0] sm:$0xf]
  %v32 = vld [vmem:[%s0 + $0x4] sm:$0xf]
  %v33 = vld [vmem:[%s0 + $0x8] sm:$0xf]
  %v34 = vld [vmem:[%s0 + $0xc] sm:$0xf]
  %v35 = vld [vmem:[%s1] sm:$0xf]
  %v36 = vld [vmem:[%s1 + $0x4] sm:$0xf]
  %v37 = vld [vmem:[%s1 + $0x8] sm:$0xf]
  %v38 = vld [vmem:[%s1 + $0xc] sm:$0xf]
  %v39 = vlaneseq
  %v40 = vshrl.u32 %v39, 7
  %v41 = vsub.s32 0, %v40
  %v42 = vrot.slane %v30, %v41
  %v47 = vunpack.c.l.b16 %v31
  %v48 = vunpack.c.l.b16 %v32
  %v49 = vunpack.c.l.b16 %v33
  %v50 = vunpack.c.l.b16 %v34
  %v51 = vpack.c.b16 %v48, %v47
  %v52 = vpack.c.b16 %v50, %v49
  %v57 = vunpack.c.l.b16 %v35
  %v58 = vunpack.c.l.b16 %v36
  %v59 = vunpack.c.l.b16 %v37
  %v60 = vunpack.c.l.b16 %v38
  %v61 = vpack.c.b16 %v58, %v57
  %v62 = vpack.c.b16 %v60, %v59
  %vm65 = vcmask 261120
  %v67 = vsel %vm65, %v51, 0
  %v70 = vsel %vm65, %v52, 0
  %72 = vmatprep.subr.bf16.mxu0 0
  %73 = vmatpush1.bf16.msra.mxu0 %v61
  %74 = vmatprep.subr.bf16.mxu0 0
  %75 = vmatpush1.bf16.msra.mxu0 %v62
  %76 = vmatprep.subr.bf16.mxu0 0
  %77 = vmatpush1.bf16.msra.mxu0 0
  %78 = vmatprep.subr.bf16.mxu0 0
  %79 = vmatpush1.bf16.msra.mxu0 0
  %80 = vmatprep.subr.bf16.mxu0 0
  %81 = vmatpush1.bf16.msra.mxu0 0
  %82 = vmatprep.subr.bf16.mxu0 0
  %83 = vmatpush1.bf16.msra.mxu0 0
  %84 = vmatprep.subr.bf16.mxu0 0
  %85 = vmatpush1.bf16.msra.mxu0 0
  %86 = vmatprep.subr.bf16.mxu0 0
  %87 = vmatpush1.bf16.msra.mxu0 0
  %88 = vmatprep.subr.bf16.mxu0 0
  %89 = vmatpush1.bf16.msra.mxu0 0
  %90 = vmatprep.subr.bf16.mxu0 0
  %91 = vmatpush1.bf16.msra.mxu0 0
  %92 = vmatprep.subr.bf16.mxu0 0
  %93 = vmatpush1.bf16.msra.mxu0 0
  %94 = vmatprep.subr.bf16.mxu0 0
  %95 = vmatpush1.bf16.msra.mxu0 0
  %96 = vmatprep.subr.bf16.mxu0 0
  %97 = vmatpush1.bf16.msra.mxu0 0
  %98 = vmatprep.subr.bf16.mxu0 0
  %99 = vmatpush1.bf16.msra.mxu0 0
  %100 = vmatprep.subr.bf16.mxu0 0
  %101 = vmatpush1.bf16.msra.mxu0 0
  %102 = vmatprep.subr.bf16.mxu0 0
  %103 = vmatpush1.bf16.msra.mxu0 0
  %104 = vmatprep.mubr.bf16.mxu0 0
  %105 = vmatmul.mubr.bf16.gmra.mrb[0].mxu0 %v67
  %v106 = vpop.f32.mrb[0].mxu0
  %v107 = vadd.f32 %v42, %v106
  %v108 = vpop.f32.mrb[0].mxu0
  %v109 = vpop.f32.mrb[0].mxu0
  %v110 = vadd.f32 %v42, %v109
  %v111 = vpop.f32.mrb[0].mxu0
  %112 = vmatprep.mubr.bf16.mxu0 0
  %113 = vmatmul.mubr.bf16.gmra.mrb[0].mxu0 %v70
  %v114 = vpop.f32.mrb[0].mxu0
  %v115 = vadd.f32 %v42, %v114
  %v116 = vpop.f32.mrb[0].mxu0
  %v117 = vpop.f32.mrb[0].mxu0
  %v118 = vadd.f32 %v42, %v117
  %v119 = vpop.f32.mrb[0].mxu0
  %120 = vdwg.mxu0
  %v121 = vmax.f32 %v107, 0.0
  %v122 = vmax.f32 %v110, 0.0
  %v123 = vmax.f32 %v115, 0.0
  %v124 = vmax.f32 %v118, 0.0
  %v125 = vpack.c.bf16 %v122, %v121
  %v126 = vpack.c.bf16 %v124, %v123
  %v127 = vld [vmem:[%s2] sm:$0xf]
  %v128 = vld [vmem:[%s2 + $0x4] sm:$0xf]
  %v129 = vld [vmem:[%s2 + $0x8] sm:$0xf]
  %v130 = vld [vmem:[%s2 + $0xc] sm:$0xf]
  %v131 = vld [vmem:[%s2 + $0x10] sm:$0xf]
  %v132 = vld [vmem:[%s2 + $0x14] sm:$0xf]
  %v133 = vld [vmem:[%s2 + $0x18] sm:$0xf]
  %v134 = vld [vmem:[%s2 + $0x1c] sm:$0xf]
  %v135 = vlaneseq
  %v136 = vshrl.u32 %v135, 7
  %v137 = vsub.s32 1, %v136
  %v138 = vrot.slane %v30, %v137
  %v147 = vunpack.c.l.b16 %v127
  %v148 = vunpack.c.l.b16 %v128
  %v149 = vunpack.c.l.b16 %v129
  %v150 = vunpack.c.l.b16 %v130
  %v151 = vunpack.c.l.b16 %v131
  %v152 = vunpack.c.l.b16 %v132
  %v153 = vunpack.c.l.b16 %v133
  %v154 = vunpack.c.l.b16 %v134
  %v155 = vpack.c.b16 %v148, %v147
  %v156 = vpack.c.b16 %v150, %v149
  %v157 = vpack.c.b16 %v152, %v151
  %v158 = vpack.c.b16 %v154, %v153
  %vm163 = vcmask 523264
  %v165 = vsel %vm163, %v125, 0
  %v168 = vsel %vm163, %v126, 0
  %170 = vmatprep.subr.bf16.mxu0 0
  %171 = vmatpush1.bf16.msra.mxu0 %v155
  %172 = vmatprep.subr.bf16.mxu0 0
  %173 = vmatpush1.bf16.msra.mxu0 %v156
  %174 = vmatprep.subr.bf16.mxu0 0
  %175 = vmatpush1.bf16.msra.mxu0 %v157
  %176 = vmatprep.subr.bf16.mxu0 0
  %177 = vmatpush1.bf16.msra.mxu0 %v158
  %178 = vmatprep.subr.bf16.mxu0 0
  %179 = vmatpush1.bf16.msra.mxu0 0
  %180 = vmatprep.subr.bf16.mxu0 0
  %181 = vmatpush1.bf16.msra.mxu0 0
  %182 = vmatprep.subr.bf16.mxu0 0
  %183 = vmatpush1.bf16.msra.mxu0 0
  %184 = vmatprep.subr.bf16.mxu0 0
  %185 = vmatpush1.bf16.msra.mxu0 0
  %186 = vmatprep.subr.bf16.mxu0 0
  %187 = vmatpush1.bf16.msra.mxu0 0
  %188 = vmatprep.subr.bf16.mxu0 0
  %189 = vmatpush1.bf16.msra.mxu0 0
  %190 = vmatprep.subr.bf16.mxu0 0
  %191 = vmatpush1.bf16.msra.mxu0 0
  %192 = vmatprep.subr.bf16.mxu0 0
  %193 = vmatpush1.bf16.msra.mxu0 0
  %194 = vmatprep.subr.bf16.mxu0 0
  %195 = vmatpush1.bf16.msra.mxu0 0
  %196 = vmatprep.subr.bf16.mxu0 0
  %197 = vmatpush1.bf16.msra.mxu0 0
  %198 = vmatprep.subr.bf16.mxu0 0
  %199 = vmatpush1.bf16.msra.mxu0 0
  %200 = vmatprep.subr.bf16.mxu0 0
  %201 = vmatpush1.bf16.msra.mxu0 0
  %202 = vmatprep.mubr.bf16.mxu0 0
  %203 = vmatmul.mubr.bf16.gmra.mrb[0].mxu0 %v165
  %v204 = vpop.f32.mrb[0].mxu0
  %v205 = vadd.f32 %v138, %v204
  %v206 = vpop.f32.mrb[0].mxu0
  %v207 = vpop.f32.mrb[0].mxu0
  %v208 = vadd.f32 %v138, %v207
  %v209 = vpop.f32.mrb[0].mxu0
  %210 = vmatprep.mubr.bf16.mxu0 0
  %211 = vmatmul.mubr.bf16.gmra.mrb[0].mxu0 %v168
  %v212 = vpop.f32.mrb[0].mxu0
  %v213 = vadd.f32 %v138, %v212
  %v214 = vpop.f32.mrb[0].mxu0
  %v215 = vpop.f32.mrb[0].mxu0
  %v216 = vadd.f32 %v138, %v215
  %v217 = vpop.f32.mrb[0].mxu0
  %218 = vdwg.mxu0
  %v219 = vmax.f32 %v205, 0.0
  %v220 = vmax.f32 %v208, 0.0
  %v221 = vmax.f32 %v213, 0.0
  %v222 = vmax.f32 %v216, 0.0
  %v223 = vpack.c.bf16 %v220, %v219
  %v224 = vpack.c.bf16 %v222, %v221
  %v225 = vld [vmem:[%s3] sm:$0xf]
  %v226 = vld [vmem:[%s3 + $0x4] sm:$0xf]
  %v227 = vld [vmem:[%s3 + $0x8] sm:$0xf]
  %v228 = vld [vmem:[%s3 + $0xc] sm:$0xf]
  %v229 = vld [vmem:[%s3 + $0x10] sm:$0xf]
  %v230 = vld [vmem:[%s3 + $0x14] sm:$0xf]
  %v231 = vld [vmem:[%s3 + $0x18] sm:$0xf]
  %v232 = vld [vmem:[%s3 + $0x1c] sm:$0xf]
  %v233 = vlaneseq
  %v234 = vshrl.u32 %v233, 7
  %v235 = vsub.s32 2, %v234
  %v236 = vrot.slane %v30, %v235
  %v245 = vunpack.c.l.b16 %v225
  %v246 = vunpack.c.l.b16 %v226
  %v247 = vunpack.c.l.b16 %v227
  %v248 = vunpack.c.l.b16 %v228
  %v249 = vunpack.c.l.b16 %v229
  %v250 = vunpack.c.l.b16 %v230
  %v251 = vunpack.c.l.b16 %v231
  %v252 = vunpack.c.l.b16 %v232
  %v253 = vpack.c.b16 %v246, %v245
  %v254 = vpack.c.b16 %v248, %v247
  %v255 = vpack.c.b16 %v250, %v249
  %v256 = vpack.c.b16 %v252, %v251
  %v262 = vsel %vm163, %v223, 0
  %v265 = vsel %vm163, %v224, 0
  %267 = vmatprep.subr.bf16.mxu0 0
  %268 = vmatpush1.bf16.msra.mxu0 %v253
  %269 = vmatprep.subr.bf16.mxu0 0
  %270 = vmatpush1.bf16.msra.mxu0 %v254
  %271 = vmatprep.subr.bf16.mxu0 0
  %272 = vmatpush1.bf16.msra.mxu0 %v255
  %273 = vmatprep.subr.bf16.mxu0 0
  %274 = vmatpush1.bf16.msra.mxu0 %v256
  %275 = vmatprep.subr.bf16.mxu0 0
  %276 = vmatpush1.bf16.msra.mxu0 0
  %277 = vmatprep.subr.bf16.mxu0 0
  %278 = vmatpush1.bf16.msra.mxu0 0
  %279 = vmatprep.subr.bf16.mxu0 0
  %280 = vmatpush1.bf16.msra.mxu0 0
  %281 = vmatprep.subr.bf16.mxu0 0
  %282 = vmatpush1.bf16.msra.mxu0 0
  %283 = vmatprep.subr.bf16.mxu0 0
  %284 = vmatpush1.bf16.msra.mxu0 0
  %285 = vmatprep.subr.bf16.mxu0 0
  %286 = vmatpush1.bf16.msra.mxu0 0
  %287 = vmatprep.subr.bf16.mxu0 0
  %288 = vmatpush1.bf16.msra.mxu0 0
  %289 = vmatprep.subr.bf16.mxu0 0
  %290 = vmatpush1.bf16.msra.mxu0 0
  %291 = vmatprep.subr.bf16.mxu0 0
  %292 = vmatpush1.bf16.msra.mxu0 0
  %293 = vmatprep.subr.bf16.mxu0 0
  %294 = vmatpush1.bf16.msra.mxu0 0
  %295 = vmatprep.subr.bf16.mxu0 0
  %296 = vmatpush1.bf16.msra.mxu0 0
  %297 = vmatprep.subr.bf16.mxu0 0
  %298 = vmatpush1.bf16.msra.mxu0 0
  %299 = vmatprep.mubr.bf16.mxu0 0
  %300 = vmatmul.mubr.bf16.gmra.mrb[0].mxu0 %v262
  %v301 = vpop.f32.mrb[0].mxu0
  %v302 = vadd.f32 %v236, %v301
  %v303 = vpop.f32.mrb[0].mxu0
  %v304 = vpop.f32.mrb[0].mxu0
  %v305 = vadd.f32 %v236, %v304
  %v306 = vpop.f32.mrb[0].mxu0
  %307 = vmatprep.mubr.bf16.mxu0 0
  %308 = vmatmul.mubr.bf16.gmra.mrb[0].mxu0 %v265
  %v309 = vpop.f32.mrb[0].mxu0
  %v310 = vadd.f32 %v236, %v309
  %v311 = vpop.f32.mrb[0].mxu0
  %v312 = vpop.f32.mrb[0].mxu0
  %v313 = vadd.f32 %v236, %v312
  %v314 = vpop.f32.mrb[0].mxu0
  %315 = vdwg.mxu0
  %v316 = vmax.f32 %v302, 0.0
  %v317 = vmax.f32 %v305, 0.0
  %v318 = vmax.f32 %v310, 0.0
  %v319 = vmax.f32 %v313, 0.0
  %v320 = vpack.c.bf16 %v317, %v316
  %v321 = vpack.c.bf16 %v319, %v318
  %v322 = vld [vmem:[%s4] sm:$0xf]
  %v323 = vld [vmem:[%s4 + $0x4] sm:$0xf]
  %v324 = vld [vmem:[%s4 + $0x8] sm:$0xf]
  %v325 = vld [vmem:[%s4 + $0xc] sm:$0xf]
  %v326 = vld [vmem:[%s4 + $0x10] sm:$0xf]
  %v327 = vld [vmem:[%s4 + $0x14] sm:$0xf]
  %v328 = vld [vmem:[%s4 + $0x18] sm:$0xf]
  %v329 = vld [vmem:[%s4 + $0x1c] sm:$0xf]
  %v330 = vlaneseq
  %v331 = vshrl.u32 %v330, 7
  %v332 = vsub.s32 3, %v331
  %v333 = vrot.slane %v30, %v332
  %v342 = vunpack.c.l.b16 %v322
  %v343 = vunpack.c.l.b16 %v323
  %v344 = vunpack.c.l.b16 %v324
  %v345 = vunpack.c.l.b16 %v325
  %v346 = vunpack.c.l.b16 %v326
  %v347 = vunpack.c.l.b16 %v327
  %v348 = vunpack.c.l.b16 %v328
  %v349 = vunpack.c.l.b16 %v329
  %v350 = vpack.c.b16 %v343, %v342
  %v351 = vpack.c.b16 %v345, %v344
  %v352 = vpack.c.b16 %v347, %v346
  %v353 = vpack.c.b16 %v349, %v348
  %v359 = vsel %vm163, %v320, 0
  %v362 = vsel %vm163, %v321, 0
  %364 = vmatprep.subr.bf16.mxu0 0
  %365 = vmatpush1.bf16.msra.mxu0 %v350
  %366 = vmatprep.subr.bf16.mxu0 0
  %367 = vmatpush1.bf16.msra.mxu0 %v351
  %368 = vmatprep.subr.bf16.mxu0 0
  %369 = vmatpush1.bf16.msra.mxu0 %v352
  %370 = vmatprep.subr.bf16.mxu0 0
  %371 = vmatpush1.bf16.msra.mxu0 %v353
  %372 = vmatprep.subr.bf16.mxu0 0
  %373 = vmatpush1.bf16.msra.mxu0 0
  %374 = vmatprep.subr.bf16.mxu0 0
  %375 = vmatpush1.bf16.msra.mxu0 0
  %376 = vmatprep.subr.bf16.mxu0 0
  %377 = vmatpush1.bf16.msra.mxu0 0
  %378 = vmatprep.subr.bf16.mxu0 0
  %379 = vmatpush1.bf16.msra.mxu0 0
  %380 = vmatprep.subr.bf16.mxu0 0
  %381 = vmatpush1.bf16.msra.mxu0 0
  %382 = vmatprep.subr.bf16.mxu0 0
  %383 = vmatpush1.bf16.msra.mxu0 0
  %384 = vmatprep.subr.bf16.mxu0 0
  %385 = vmatpush1.bf16.msra.mxu0 0
  %386 = vmatprep.subr.bf16.mxu0 0
  %387 = vmatpush1.bf16.msra.mxu0 0
  %388 = vmatprep.subr.bf16.mxu0 0
  %389 = vmatpush1.bf16.msra.mxu0 0
  %390 = vmatprep.subr.bf16.mxu0 0
  %391 = vmatpush1.bf16.msra.mxu0 0
  %392 = vmatprep.subr.bf16.mxu0 0
  %393 = vmatpush1.bf16.msra.mxu0 0
  %394 = vmatprep.subr.bf16.mxu0 0
  %395 = vmatpush1.bf16.msra.mxu0 0
  %396 = vmatprep.mubr.bf16.mxu0 0
  %397 = vmatmul.mubr.bf16.gmra.mrb[0].mxu0 %v359
  %v398 = vpop.f32.mrb[0].mxu0
  %v399 = vadd.f32 %v333, %v398
  %v400 = vpop.f32.mrb[0].mxu0
  %v401 = vpop.f32.mrb[0].mxu0
  %v402 = vadd.f32 %v333, %v401
  %v403 = vpop.f32.mrb[0].mxu0
  %404 = vmatprep.mubr.bf16.mxu0 0
  %405 = vmatmul.mubr.bf16.gmra.mrb[0].mxu0 %v362
  %v406 = vpop.f32.mrb[0].mxu0
  %v407 = vadd.f32 %v333, %v406
  %v408 = vpop.f32.mrb[0].mxu0
  %v409 = vpop.f32.mrb[0].mxu0
  %v410 = vadd.f32 %v333, %v409
  %v411 = vpop.f32.mrb[0].mxu0
  %412 = vdwg.mxu0
  %v413 = vmax.f32 %v399, 0.0
  %v414 = vmax.f32 %v402, 0.0
  %v415 = vmax.f32 %v407, 0.0
  %v416 = vmax.f32 %v410, 0.0
  %v417 = vpack.c.bf16 %v414, %v413
  %v418 = vpack.c.bf16 %v416, %v415
  %v419 = vld [vmem:[%s5] sm:$0xf]
  %v420 = vld [vmem:[%s5 + $0x4] sm:$0xf]
  %v421 = vld [vmem:[%s5 + $0x8] sm:$0xf]
  %v422 = vld [vmem:[%s5 + $0xc] sm:$0xf]
  %v423 = vld [vmem:[%s5 + $0x10] sm:$0xf]
  %v424 = vld [vmem:[%s5 + $0x14] sm:$0xf]
  %v425 = vld [vmem:[%s5 + $0x18] sm:$0xf]
  %v426 = vld [vmem:[%s5 + $0x1c] sm:$0xf]
  %v427 = vld [vmem:[%s7] sm:$0x1]
  %v429 = vlaneseq
  %v430 = vshrl.u32 %v429, 7
  %v431 = vsub.s32 0, %v430
  %v432 = vrot.slane %v427, %v431
  %v442 = vunpack.c.l.b16 %v419
  %v443 = vunpack.c.l.b16 %v420
  %v444 = vunpack.c.l.b16 %v421
  %v445 = vunpack.c.l.b16 %v422
  %v446 = vunpack.c.l.b16 %v423
  %v447 = vunpack.c.l.b16 %v424
  %v448 = vunpack.c.l.b16 %v425
  %v449 = vunpack.c.l.b16 %v426
  %v450 = vpack.c.b16 %v443, %v442
  %v451 = vpack.c.b16 %v445, %v444
  %v452 = vpack.c.b16 %v447, %v446
  %v453 = vpack.c.b16 %v449, %v448
  %v459 = vsel %vm163, %v417, 0
  %v462 = vsel %vm163, %v418, 0
  %464 = vmatprep.subr.bf16.mxu0 0
  %465 = vmatpush1.bf16.msra.mxu0 %v450
  %466 = vmatprep.subr.bf16.mxu0 0
  %467 = vmatpush1.bf16.msra.mxu0 %v451
  %468 = vmatprep.subr.bf16.mxu0 0
  %469 = vmatpush1.bf16.msra.mxu0 %v452
  %470 = vmatprep.subr.bf16.mxu0 0
  %471 = vmatpush1.bf16.msra.mxu0 %v453
  %472 = vmatprep.subr.bf16.mxu0 0
  %473 = vmatpush1.bf16.msra.mxu0 0
  %474 = vmatprep.subr.bf16.mxu0 0
  %475 = vmatpush1.bf16.msra.mxu0 0
  %476 = vmatprep.subr.bf16.mxu0 0
  %477 = vmatpush1.bf16.msra.mxu0 0
  %478 = vmatprep.subr.bf16.mxu0 0
  %479 = vmatpush1.bf16.msra.mxu0 0
  %480 = vmatprep.subr.bf16.mxu0 0
  %481 = vmatpush1.bf16.msra.mxu0 0
  %482 = vmatprep.subr.bf16.mxu0 0
  %483 = vmatpush1.bf16.msra.mxu0 0
  %484 = vmatprep.subr.bf16.mxu0 0
  %485 = vmatpush1.bf16.msra.mxu0 0
  %486 = vmatprep.subr.bf16.mxu0 0
  %487 = vmatpush1.bf16.msra.mxu0 0
  %488 = vmatprep.subr.bf16.mxu0 0
  %489 = vmatpush1.bf16.msra.mxu0 0
  %490 = vmatprep.subr.bf16.mxu0 0
  %491 = vmatpush1.bf16.msra.mxu0 0
  %492 = vmatprep.subr.bf16.mxu0 0
  %493 = vmatpush1.bf16.msra.mxu0 0
  %494 = vmatprep.subr.bf16.mxu0 0
  %495 = vmatpush1.bf16.msra.mxu0 0
  %496 = vmatprep.mubr.bf16.mxu0 0
  %497 = vmatmul.mubr.bf16.gmra.mrb[0].mxu0 %v459
  %v498 = vpop.f32.mrb[0].mxu0
  %v499 = vadd.f32 %v432, %v498
  %v500 = vpop.f32.mrb[0].mxu0
  %v501 = vpop.f32.mrb[0].mxu0
  %v502 = vadd.f32 %v432, %v501
  %v503 = vpop.f32.mrb[0].mxu0
  %504 = vmatprep.mubr.bf16.mxu0 0
  %505 = vmatmul.mubr.bf16.gmra.mrb[0].mxu0 %v462
  %v506 = vpop.f32.mrb[0].mxu0
  %v507 = vadd.f32 %v432, %v506
  %v508 = vpop.f32.mrb[0].mxu0
  %v509 = vpop.f32.mrb[0].mxu0
  %v510 = vadd.f32 %v432, %v509
  %v511 = vpop.f32.mrb[0].mxu0
  %512 = vdwg.mxu0
  %vm513 = vcmask 97280
  %514 = vst.msk [vmem:[%s8] sm:$0xff] %vm513, %v499
  %515 = vst.msk [vmem:[%s8 + $0x8] sm:$0xff] %vm513, %v502
  %516 = vst.msk [vmem:[%s8 + $0x10] sm:$0xff] %vm513, %v507
  %517 = vst.msk [vmem:[%s8 + $0x18] sm:$0xff] %vm513, %v510
  // Predicated region
  $region34: #{_lambda_.17} parent=0 // pred_check
    _
  $region35: #{_lambda_.17} parent=0 // pred_check_branch
    %519 = sbr.rel (0) target = $region37
  $region36: #{_lambda_.17} parent=0 // pred_region
    _
  $region37: #{_lambda_.17} parent=0 // pred_fallthru
    _
  // Predicated region
  $region38: #{_lambda_.17} parent=0 // pred_check
    _
  $region39: #{_lambda_.17} parent=0 // pred_check_branch
    %521 = sbr.rel (0) target = $region41
  $region40: #{_lambda_.17} parent=0 // pred_region
    _
  $region41: #{_lambda_.17} parent=0 // pred_fallthru
    _

</llo_original>
